<compile_context>
chip_gen: v7x
topology: tpu7x:2x2x1
jax: 0.10.0
libtpu: 0.0.40
codegen_flags: <defaults>
</compile_context>

<pallas_src>
import functools

import jax
import jax.numpy as jnp
from jax import lax
from jax.experimental import pallas as pl
from jax.experimental.pallas import tpu as pltpu

LANE = 128
HALO_ROWS = 2  # rows in the bottom-halo input view (fixed by the BlockSpec)


def _round_up(x, m):
    return (x + m - 1) // m * m


# ----------------------------------------------------------------------------
# Pallas kernel: fused 3x3 conv (stride 1, pre-padded input) + bias + ReLU
# ----------------------------------------------------------------------------
def _repvgg_conv3x3_kernel(xm_ref, xh_ref, w_ref, b_ref, o_ref, col_ref):
    # xm_ref : (1, TH,  W+2, Cin)  main rows of the padded input (compute dtype)
    # xh_ref : (1, 2,   W+2, Cin)  2-row halo just below the main rows
    # w_ref  : (3, 3*Cin, TCo)     folded weights, indexed [kh, kw*Cin+ci, co]
    # b_ref  : (1, TCo)            folded bias (f32)
    # o_ref  : (1, TH, W, TCo)     output tile
    # col_ref: (TH+2, W, 3*Cin)    VMEM scratch, kw-im2col buffer
    TH, W, TCo = o_ref.shape[1], o_ref.shape[2], o_ref.shape[3]
    Cin = xm_ref.shape[3]

    # Pack the three kw-shifted views once (3 VMEM copies instead of 9 per-tap
    # slice+reshape materializations); kh slicing below is a free row offset.
    # TODO(synk): if the bundle dump shows the 2 vector-extended slots
    # saturated by these sublane-misaligned copies (they share slots with
    # vmatmul), move the shifted packing to 3 local VMEM->VMEM
    # pltpu.make_async_copy's overlapped with the previous tile's matmuls.
    for kw in range(3):
        col_ref[0:TH, :, kw * Cin:(kw + 1) * Cin] = xm_ref[0, :, kw:kw + W, :]
        col_ref[TH:TH + HALO_ROWS, :, kw * Cin:(kw + 1) * Cin] = \
            xh_ref[0, :, kw:kw + W, :]

    M = TH * W
    # kh = 0 initializes the accumulator: no (M x TCo) f32 bias-broadcast
    # materialization / extra VPU pass.  The col_ref slice+reshape is a
    # zero-copy view (W % 8 == 0 and 3*Cin % 128 == 0).
    acc = jnp.dot(col_ref[0:TH, :, :].reshape(M, 3 * Cin), w_ref[0],
                  preferred_element_type=jnp.float32)
    for kh in range(1, 3):
        acc = acc + jnp.dot(col_ref[kh:kh + TH, :, :].reshape(M, 3 * Cin),
                            w_ref[kh], preferred_element_type=jnp.float32)
    # Bias folded into the ReLU/cast epilogue (it already touches every
    # element, so the broadcast add co-issues essentially for free).
    out = jnp.maximum(acc + b_ref[...], 0.0)
    o_ref[...] = out.reshape(1, TH, W, TCo).astype(o_ref.dtype)


# ----------------------------------------------------------------------------
# Generation detection + tile sizing
# ----------------------------------------------------------------------------
def _chip_flavor():
    try:
        kind = jax.devices()[0].device_kind.lower()
    except Exception:
        kind = ""
    is_v7x = ("v7" in kind) or ("7x" in kind)
    is_v5e = ("v5 lite" in kind) or ("v5e" in kind) or ("v5lite" in kind)
    return is_v7x, is_v5e


def _vmem_capacity_bytes(is_v7x):
    hw_cap = 64 * 1024 * 1024 if is_v7x else 128 * 1024 * 1024
    try:
        cap = int(pltpu.get_tpu_info().vmem_capacity_bytes)
    except Exception:
        return hw_cap
    # Clamp: on v7x get_tpu_info may report per-chip (128 MiB) rather than
    # per-TensorCore (64 MiB); never size tiles above the per-TC budget.
    return min(cap, hw_cap)


def _tile_vmem_bytes(th, w8, cin_p, tco, in_bytes, out_bytes, w_bufs):
    main = 2 * th * (w8 + 2) * cin_p * in_bytes            # double-buffered rows
    halo = 2 * HALO_ROWS * (w8 + 2) * cin_p * in_bytes
    wgt = w_bufs * (3 * (3 * cin_p) * tco * in_bytes + tco * 4)
    out = 2 * th * w8 * tco * out_bytes                    # double-buffered out
    col = (th + 2) * w8 * (3 * cin_p) * in_bytes           # im2col scratch
    acc = 2 * th * w8 * tco * 4                            # f32 acc + dot temp
    return main + halo + wgt + out + col + acc


def _pick_tiles(H, w8, cin_p, cout_p, in_bytes, out_bytes, vmem_cap,
                is_v5e, w_bufs):
    # v5e's MXU is 128 wide: a 256-wide Cout tile gives no MXU benefit there
    # but doubles accumulator/epilogue store pressure on its single vst slot.
    if is_v5e:
        tco = LANE
    else:
        tco = 256 if cout_p % 256 == 0 else LANE
    budget = int(0.55 * vmem_cap)   # headroom for compiler scratch / spills
    th = min(_round_up(max(H, 8), 8), 128)
    while th > 8 and _tile_vmem_bytes(th, w8, cin_p, tco, in_bytes, out_bytes,
                                      w_bufs) > budget:
        th -= 8
    while tco > LANE and _tile_vmem_bytes(th, w8, cin_p, tco, in_bytes,
                                          out_bytes, w_bufs) > budget:
        tco -= LANE
    # TODO(synk): if the estimate still exceeds the budget at th=8 / tco=128
    # (wide W with C>=256 on v7x), add a lane-dense W-column tile axis.
    return th, tco


# ----------------------------------------------------------------------------
# Wrapper: NHWC hot path (keep activations NHWC end-to-end across blocks)
# ----------------------------------------------------------------------------
@functools.partial(jax.jit, static_argnames=("compute_dtype", "out_dtype",
                                             "row_tile", "cout_tile"))
def repvgg_block_pallas_nhwc(x_nhwc, w_eq, b_eq, *, compute_dtype=jnp.bfloat16,
                             out_dtype=None, row_tile=None, cout_tile=None):
    """Folded RepVGG block: ReLU(conv3x3(x, w_eq) + b_eq), NHWC in / NHWC out.

    x_nhwc: (N, H, W, Cin); w_eq: (Cout, Cin, 3, 3) (PyTorch OIHW); b_eq: (Cout,)
    Output dtype defaults to compute_dtype (bf16) so activations stay bf16
    NHWC end-to-end — an intentional accuracy/perf tradeoff vs PyTorch f32.
    """
    N, H, W, Cin = x_nhwc.shape
    Cout = w_eq.shape[0]
    assert w_eq.shape == (Cout, Cin, 3, 3)

    if out_dtype is None:
        out_dtype = compute_dtype
    in_bytes = jnp.dtype(compute_dtype).itemsize
    out_bytes = jnp.dtype(out_dtype).itemsize

    cin_p = _round_up(Cin, LANE)     # K padded to lane multiple (>=128)
    cout_p = _round_up(Cout, LANE)   # lane-dense output channels
    w8 = _round_up(W, 8)             # sublane-friendly width
    # TODO(synk): for Cin=64 stages, half of every K group is zero padding; an
    # im2col over kh *and* kw (K=9*Cin) would cut MXU K-work ~45% but needs
    # masked lane stores — prototype and measure before adopting.

    is_v7x, is_v5e = _chip_flavor()
    vmem_cap = _vmem_capacity_bytes(is_v7x)

    # Weight/bias block index only changes with the outermost Cout-tile axis,
    # so on v7x (64 MiB/TC) single-buffer them and reclaim the second buffer.
    wb_kwargs = {}
    w_bufs = 2
    if is_v7x and hasattr(pl, "Buffered"):
        wb_kwargs = dict(pipeline_mode=pl.Buffered(1))
        w_bufs = 1
    # TODO(synk): fp8 folded weights (per-Cout scale in the epilogue) would
    # halve the weight VMEM tile / HBM stream on v7x; validate accuracy.
    # TODO(synk): on v5e/v6e, pipeline_mode=pl.Buffered(3) on the main-rows
    # spec can hide HBM latency for early memory-bound (C<=128) layers.

    th, tco = _pick_tiles(H, w8, cin_p, cout_p, in_bytes, out_bytes, vmem_cap,
                          is_v5e, w_bufs)
    if row_tile is not None:
        th = int(row_tile)
    if cout_tile is not None:
        tco = int(cout_tile)
    assert tco % LANE == 0 and cout_p % tco == 0
    n_co = cout_p // tco

    # Megacore coverage (v7x has 2 TensorCores): with n_co == 1 and N == 1,
    # make sure the row axis provides at least 2 grid points.
    if is_v7x and row_tile is None and N == 1 and n_co == 1 and H > 8:
        th = min(th, _round_up((H + 1) // 2, 8))

    assert th % 8 == 0
    # The halo index_map below returns (h+1)*(th//HALO_ROWS): it is only valid
    # because the halo block has exactly HALO_ROWS rows and th % HALO_ROWS == 0.
    assert th % HALO_ROWS == 0

    hp = _round_up(H, th)
    n_h = hp // th

    # Single fused pad: +1 spatial halo, H/W round-up, channel pad to a lane
    # multiple.  (Only remaining wrapper pass over the activation.)
    xp = jnp.pad(x_nhwc.astype(compute_dtype),
                 ((0, 0), (1, 1 + hp - H), (1, 1 + w8 - W), (0, cin_p - Cin)))

    # Folded weights -> (kh, kw*Cin_p + ci, co), matching the im2col layout.
    w_hwio = jnp.transpose(w_eq, (2, 3, 1, 0))                       # (3,3,Ci,Co)
    w_hwio = jnp.pad(w_hwio, ((0, 0), (0, 0),
                              (0, cin_p - Cin), (0, cout_p - Cout)))
    w_k = w_hwio.reshape(3, 3 * cin_p, cout_p).astype(compute_dtype)
    b_p = jnp.pad(b_eq.astype(jnp.float32), (0, cout_p - Cout)).reshape(1, cout_p)

    vmem_limit = max(32 * 1024 * 1024,
                     min(int(0.75 * vmem_cap), 96 * 1024 * 1024))

    # Cout-tile OUTERMOST (weights fetched only n_co times, not N*n_co),
    # batch in the middle, rows innermost.
    grid = (n_co, N, n_h)
    out = pl.pallas_call(
        _repvgg_conv3x3_kernel,
        out_shape=jax.ShapeDtypeStruct((N, hp, w8, cout_p), out_dtype),
        grid_spec=pltpu.PrefetchScalarGridSpec(
            num_scalar_prefetch=0,
            grid=grid,
            in_specs=[
                # main TH rows of the padded input (with left/right halo cols)
                pl.BlockSpec((1, th, w8 + 2, cin_p),
                             lambda c, n, h: (n, h, 0, 0)),
                # HALO_ROWS rows directly below the main rows (same array);
                # block index is in units of HALO_ROWS rows.
                pl.BlockSpec((1, HALO_ROWS, w8 + 2, cin_p),
                             lambda c, n, h: (n, (h + 1) * (th // HALO_ROWS), 0, 0)),
                # folded weights + bias, resident across the batch/row loops
                pl.BlockSpec((3, 3 * cin_p, tco),
                             lambda c, n, h: (0, 0, c), **wb_kwargs),
                pl.BlockSpec((1, tco), lambda c, n, h: (0, c), **wb_kwargs),
            ],
            out_specs=pl.BlockSpec((1, th, w8, tco),
                                   lambda c, n, h: (n, h, 0, c)),
            scratch_shapes=[pltpu.VMEM((th + 2, w8, 3 * cin_p), compute_dtype)],
        ),
        compiler_params=pltpu.CompilerParams(
            dimension_semantics=("parallel", "parallel", "parallel"),
            vmem_limit_bytes=vmem_limit,
        ),
    )(xp, xp, w_k, b_p)

    return out[:, :H, :W, :Cout]


def repvgg_block_pallas(x_nchw, w_eq, b_eq, **kw):
    """PyTorch-layout (NCHW) adapter.  In a real network keep activations NHWC
    end-to-end and call repvgg_block_pallas_nhwc directly: the two transposes
    here are full HBM passes that exist only to bridge layouts."""
    x_nhwc = jnp.transpose(x_nchw, (0, 2, 3, 1))
    out = repvgg_block_pallas_nhwc(x_nhwc, w_eq, b_eq, **kw)
    return jnp.transpose(out, (0, 3, 1, 2))


# ----------------------------------------------------------------------------
# Parameter construction + RepVGG folding (plain-JAX glue)
# ----------------------------------------------------------------------------
def _fold_bn(w, gamma, beta, mean, var, eps=1e-5):
    """Fold inference-mode BN into conv weight/bias. w: (O, I, kh, kw)."""
    std = jnp.sqrt(var + eps)
    scale = gamma / std
    w_f = w * scale[:, None, None, None]
    b_f = beta - mean * scale
    return w_f, b_f


def make_repvgg_params(key, inp, oup):
    ks = jax.random.split(key, 12)
    # 3x3 branch
    w3 = jax.random.normal(ks[0], (oup, inp, 3, 3), jnp.float32) * 0.1
    g3 = 1.0 + 0.1 * jax.random.normal(ks[1], (oup,), jnp.float32)
    be3 = 0.1 * jax.random.normal(ks[2], (oup,), jnp.float32)
    m3 = 0.1 * jax.random.normal(ks[3], (oup,), jnp.float32)
    v3 = jnp.abs(jax.random.normal(ks[4], (oup,), jnp.float32)) + 0.5
    # 1x1 branch
    w1 = jax.random.normal(ks[5], (oup, inp, 1, 1), jnp.float32) * 0.1
    g1 = 1.0 + 0.1 * jax.random.normal(ks[6], (oup,), jnp.float32)
    be1 = 0.1 * jax.random.normal(ks[7], (oup,), jnp.float32)
    m1 = 0.1 * jax.random.normal(ks[8], (oup,), jnp.float32)
    v1 = jnp.abs(jax.random.normal(ks[9], (oup,), jnp.float32)) + 0.5
    # identity BN branch (only exists when oup == inp and stride == 1)
    gid = 1.0 + 0.1 * jax.random.normal(ks[10], (inp,), jnp.float32)
    beid = 0.1 * jax.random.normal(ks[11], (inp,), jnp.float32)
    mid = jnp.zeros((inp,), jnp.float32)
    vid = jnp.ones((inp,), jnp.float32)
    return dict(w3=w3, g3=g3, be3=be3, m3=m3, v3=v3,
                w1=w1, g1=g1, be1=be1, m1=m1, v1=v1,
                gid=gid, beid=beid, mid=mid, vid=vid)


def fold_to_equivalent_3x3(p, inp, oup):
    # The identity-branch folding below is only valid in this configuration;
    # fail loudly rather than producing silently wrong weights.
    assert inp == oup, "RepVGG identity branch requires oup == inp"
    assert p["w3"].shape == (oup, inp, 3, 3), "groups != 1 is not supported here"
    w3f, b3f = _fold_bn(p["w3"], p["g3"], p["be3"], p["m3"], p["v3"])
    w1f, b1f = _fold_bn(p["w1"], p["g1"], p["be1"], p["m1"], p["v1"])
    # identity branch as a 1x1 conv with identity weight, then fold its BN
    wid = jnp.eye(inp, dtype=jnp.float32).reshape(oup, inp, 1, 1)
    widf, bidf = _fold_bn(wid, p["gid"], p["beid"], p["mid"], p["vid"])
    pad11 = lambda w: jnp.pad(w, ((0, 0), (0, 0), (1, 1), (1, 1)))
    w_eq = w3f + pad11(w1f) + pad11(widf)
    b_eq = b3f + b1f + bidf
    return w_eq, b_eq


# ----------------------------------------------------------------------------
# Pure-JAX reference of the un-folded PyTorch forward (for verification)
# ----------------------------------------------------------------------------
def repvgg_reference(x, p, eps=1e-5):
    def conv(x, w, pad):
        return lax.conv_general_dilated(
            x, w, window_strides=(1, 1), padding=[(pad, pad), (pad, pad)],
            dimension_numbers=("NCHW", "OIHW", "NCHW"))

    def bn(y, g, b, m, v):
        return (y - m[None, :, None, None]) / jnp.sqrt(v + eps)[None, :, None, None] \
               * g[None, :, None, None] + b[None, :, None, None]

    dense = bn(conv(x, p["w3"], 1), p["g3"], p["be3"], p["m3"], p["v3"])
    one = bn(conv(x, p["w1"], 0), p["g1"], p["be1"], p["m1"], p["v1"])
    ident = bn(x, p["gid"], p["beid"], p["mid"], p["vid"])
    return jnp.maximum(dense + one + ident, 0.0)


def _run_case(kx, kp, N, C, H, W, compute_dtype, row_tile=None, cout_tile=None):
    x_nhwc = jax.random.normal(kx, (N, H, W, C), jnp.float32)
    params = make_repvgg_params(kp, C, C)
    w_eq, b_eq = fold_to_equivalent_3x3(params, C, C)
    out = repvgg_block_pallas_nhwc(x_nhwc, w_eq, b_eq,
                                   compute_dtype=compute_dtype,
                                   row_tile=row_tile, cout_tile=cout_tile)
    out = jax.block_until_ready(out).astype(jnp.float32)
    x_nchw = jnp.transpose(x_nhwc, (0, 3, 1, 2))
    ref = jnp.transpose(repvgg_reference(x_nchw, params), (0, 2, 3, 1))
    ref = jax.block_until_ready(ref)
    assert out.shape == ref.shape
    return out, ref


if __name__ == "__main__":
    key = jax.random.PRNGKey(0)
    k1, k2, k3, k4 = jax.random.split(key, 4)

    # Small shapes consistent with the module (inp == oup, k=3, s=1, p=1).
    # f32 compute path: exact-path check against the un-folded reference.
    out, ref = _run_case(k1, k2, 2, 4, 16, 16, jnp.float32)
    assert jnp.allclose(out, ref, atol=3e-4, rtol=3e-4), "f32 path mismatch"

    # Same shapes on the optimized bf16-MXU path (bf16 output; looser tolerance).
    out, ref = _run_case(k1, k2, 2, 4, 16, 16, jnp.bfloat16)
    scale = float(jnp.max(jnp.abs(ref))) + 1e-6
    err = float(jnp.max(jnp.abs(out - ref)))
    assert err <= 5e-2 + 2e-2 * scale, f"bf16 path mismatch (err={err})"

    # Exercise the multi-tile machinery (row tiling + halo blocks, H/W
    # round-up padding, channel padding, multiple Cout tiles) at a still-small
    # shape: H=21 W=20 C=160, row_tile=8, cout_tile=128 -> grid (2, 1, 3).
    out, ref = _run_case(k3, k4, 1, 160, 21, 20, jnp.bfloat16,
                         row_tile=8, cout_tile=128)
    scale = float(jnp.max(jnp.abs(ref))) + 1e-6
    err = float(jnp.max(jnp.abs(out - ref)))
    assert err <= 1e-1 + 2e-2 * scale, f"tiled bf16 path mismatch (err={err})"

    print("KERNEL_OK")
</pallas_src>

<mosaic_0001>
module attributes {stable_mosaic.version = 11 : i64} {
  func.func @_repvgg_conv3x3_kernel(%arg0: i32, %arg1: i32, %arg2: i32, %arg3: memref<1x16x18x128xf32, #tpu.memory_space<vmem>>, %arg4: memref<1x2x18x128xf32, #tpu.memory_space<vmem>>, %arg5: memref<3x384x128xf32, #tpu.memory_space<vmem>>, %arg6: memref<1x128xf32, #tpu.memory_space<vmem>>, %arg7: memref<1x16x16x128xf32, #tpu.memory_space<vmem>>, %arg8: memref<18x16x384xf32, #tpu.memory_space<vmem>>) attributes {dimension_semantics = [#tpu.dimension_semantics<parallel>, #tpu.dimension_semantics<parallel>, #tpu.dimension_semantics<parallel>], iteration_bounds = array<i64: 1, 2, 1>, scalar_prefetch = 0 : i64, scratch_operands = 1 : i64, tpu.core_type = #tpu.core_type<tc>, window_params = [{transform_indices = @transform_0, window_bounds = array<i64: 1, 16, 18, 128>}, {transform_indices = @transform_1, window_bounds = array<i64: 1, 2, 18, 128>}, {transform_indices = @transform_2, window_bounds = array<i64: 3, 384, 128>}, {transform_indices = @transform_3, window_bounds = array<i64: 1, 128>}, {transform_indices = @transform_4, window_bounds = array<i64: 1, 16, 16, 128>}]} {
    %c0 = arith.constant 0 : index
    %c0_0 = arith.constant 0 : index
    %c0_1 = arith.constant 0 : index
    %c0_2 = arith.constant 0 : index
    %0 = vector.load %arg3[%c0, %c0_0, %c0_1, %c0_2] : memref<1x16x18x128xf32, #tpu.memory_space<vmem>>, vector<1x16x16x128xf32>
    %1 = vector.shape_cast %0 : vector<1x16x16x128xf32> to vector<16x16x128xf32>
    %c0_3 = arith.constant 0 : index
    %c0_4 = arith.constant 0 : index
    %c0_5 = arith.constant 0 : index
    %2 = vector.load %arg8[%c0_3, %c0_4, %c0_5] : memref<18x16x384xf32, #tpu.memory_space<vmem>>, vector<16x16x128xf32>
    tpu.vector_store %arg8[%c0_3, %c0_4, %c0_5], %1 {strides = array<i32>} : memref<18x16x384xf32, #tpu.memory_space<vmem>>, vector<16x16x128xf32>,
    %c0_6 = arith.constant 0 : index
    %c0_7 = arith.constant 0 : index
    %c0_8 = arith.constant 0 : index
    %c0_9 = arith.constant 0 : index
    %3 = vector.load %arg4[%c0_6, %c0_7, %c0_8, %c0_9] : memref<1x2x18x128xf32, #tpu.memory_space<vmem>>, vector<1x2x16x128xf32>
    %4 = vector.shape_cast %3 : vector<1x2x16x128xf32> to vector<2x16x128xf32>
    %c16 = arith.constant 16 : index
    %c0_10 = arith.constant 0 : index
    %c0_11 = arith.constant 0 : index
    %5 = vector.load %arg8[%c16, %c0_10, %c0_11] : memref<18x16x384xf32, #tpu.memory_space<vmem>>, vector<2x16x128xf32>
    tpu.vector_store %arg8[%c16, %c0_10, %c0_11], %4 {strides = array<i32>} : memref<18x16x384xf32, #tpu.memory_space<vmem>>, vector<2x16x128xf32>,
    %c0_12 = arith.constant 0 : index
    %c0_13 = arith.constant 0 : index
    %c1 = arith.constant 1 : index
    %c0_14 = arith.constant 0 : index
    %6 = vector.load %arg3[%c0_12, %c0_13, %c1, %c0_14] : memref<1x16x18x128xf32, #tpu.memory_space<vmem>>, vector<1x16x16x128xf32>
    %7 = vector.shape_cast %6 : vector<1x16x16x128xf32> to vector<16x16x128xf32>
    %c0_15 = arith.constant 0 : index
    %c0_16 = arith.constant 0 : index
    %c128 = arith.constant 128 : index
    %8 = vector.load %arg8[%c0_15, %c0_16, %c128] : memref<18x16x384xf32, #tpu.memory_space<vmem>>, vector<16x16x128xf32>
    tpu.vector_store %arg8[%c0_15, %c0_16, %c128], %7 {strides = array<i32>} : memref<18x16x384xf32, #tpu.memory_space<vmem>>, vector<16x16x128xf32>,
    %c0_17 = arith.constant 0 : index
    %c0_18 = arith.constant 0 : index
    %c1_19 = arith.constant 1 : index
    %c0_20 = arith.constant 0 : index
    %9 = vector.load %arg4[%c0_17, %c0_18, %c1_19, %c0_20] : memref<1x2x18x128xf32, #tpu.memory_space<vmem>>, vector<1x2x16x128xf32>
    %10 = vector.shape_cast %9 : vector<1x2x16x128xf32> to vector<2x16x128xf32>
    %c16_21 = arith.constant 16 : index
    %c0_22 = arith.constant 0 : index
    %c128_23 = arith.constant 128 : index
    %11 = vector.load %arg8[%c16_21, %c0_22, %c128_23] : memref<18x16x384xf32, #tpu.memory_space<vmem>>, vector<2x16x128xf32>
    tpu.vector_store %arg8[%c16_21, %c0_22, %c128_23], %10 {strides = array<i32>} : memref<18x16x384xf32, #tpu.memory_space<vmem>>, vector<2x16x128xf32>,
    %c0_24 = arith.constant 0 : index
    %c0_25 = arith.constant 0 : index
    %c2 = arith.constant 2 : index
    %c0_26 = arith.constant 0 : index
    %12 = vector.load %arg3[%c0_24, %c0_25, %c2, %c0_26] : memref<1x16x18x128xf32, #tpu.memory_space<vmem>>, vector<1x16x16x128xf32>
    %13 = vector.shape_cast %12 : vector<1x16x16x128xf32> to vector<16x16x128xf32>
    %c0_27 = arith.constant 0 : index
    %c0_28 = arith.constant 0 : index
    %c256 = arith.constant 256 : index
    %14 = vector.load %arg8[%c0_27, %c0_28, %c256] : memref<18x16x384xf32, #tpu.memory_space<vmem>>, vector<16x16x128xf32>
    tpu.vector_store %arg8[%c0_27, %c0_28, %c256], %13 {strides = array<i32>} : memref<18x16x384xf32, #tpu.memory_space<vmem>>, vector<16x16x128xf32>,
    %c0_29 = arith.constant 0 : index
    %c0_30 = arith.constant 0 : index
    %c2_31 = arith.constant 2 : index
    %c0_32 = arith.constant 0 : index
    %15 = vector.load %arg4[%c0_29, %c0_30, %c2_31, %c0_32] : memref<1x2x18x128xf32, #tpu.memory_space<vmem>>, vector<1x2x16x128xf32>
    %16 = vector.shape_cast %15 : vector<1x2x16x128xf32> to vector<2x16x128xf32>
    %c16_33 = arith.constant 16 : index
    %c0_34 = arith.constant 0 : index
    %c256_35 = arith.constant 256 : index
    %17 = vector.load %arg8[%c16_33, %c0_34, %c256_35] : memref<18x16x384xf32, #tpu.memory_space<vmem>>, vector<2x16x128xf32>
    tpu.vector_store %arg8[%c16_33, %c0_34, %c256_35], %16 {strides = array<i32>} : memref<18x16x384xf32, #tpu.memory_space<vmem>>, vector<2x16x128xf32>,
    %c0_36 = arith.constant 0 : index
    %c0_37 = arith.constant 0 : index
    %c0_38 = arith.constant 0 : index
    %18 = vector.load %arg8[%c0_36, %c0_37, %c0_38] : memref<18x16x384xf32, #tpu.memory_space<vmem>>, vector<16x16x384xf32>
    %19 = vector.shape_cast %18 : vector<16x16x384xf32> to vector<256x384xf32>
    %c0_39 = arith.constant 0 : index
    %c0_40 = arith.constant 0 : index
    %c0_41 = arith.constant 0 : index
    %20 = vector.load %arg5[%c0_39, %c0_40, %c0_41] : memref<3x384x128xf32, #tpu.memory_space<vmem>>, vector<1x384x128xf32>
    %21 = vector.shape_cast %20 : vector<1x384x128xf32> to vector<384x128xf32>
    %cst = arith.constant dense<0.000000e+00> : vector<256x128xf32>
    %22 = tpu.matmul %19, %21, %cst {dimension_numbers = #tpu.dot_dimension_numbers<[1], [0], [0], [1], [0, 0, 1, 1], [], []>} : vector<256x384xf32>, vector<384x128xf32>, vector<256x128xf32> -> vector<256x128xf32>
    %c1_42 = arith.constant 1 : index
    %c0_43 = arith.constant 0 : index
    %c0_44 = arith.constant 0 : index
    %23 = vector.load %arg8[%c1_42, %c0_43, %c0_44] : memref<18x16x384xf32, #tpu.memory_space<vmem>>, vector<16x16x384xf32>
    %24 = vector.shape_cast %23 : vector<16x16x384xf32> to vector<256x384xf32>
    %c1_45 = arith.constant 1 : index
    %c0_46 = arith.constant 0 : index
    %c0_47 = arith.constant 0 : index
    %25 = vector.load %arg5[%c1_45, %c0_46, %c0_47] : memref<3x384x128xf32, #tpu.memory_space<vmem>>, vector<1x384x128xf32>
    %26 = vector.shape_cast %25 : vector<1x384x128xf32> to vector<384x128xf32>
    %cst_48 = arith.constant dense<0.000000e+00> : vector<256x128xf32>
    %27 = tpu.matmul %24, %26, %cst_48 {dimension_numbers = #tpu.dot_dimension_numbers<[1], [0], [0], [1], [0, 0, 1, 1], [], []>} : vector<256x384xf32>, vector<384x128xf32>, vector<256x128xf32> -> vector<256x128xf32>
    %28 = arith.addf %22, %27 : vector<256x128xf32>
    %c2_49 = arith.constant 2 : index
    %c0_50 = arith.constant 0 : index
    %c0_51 = arith.constant 0 : index
    %29 = vector.load %arg8[%c2_49, %c0_50, %c0_51] : memref<18x16x384xf32, #tpu.memory_space<vmem>>, vector<16x16x384xf32>
    %30 = vector.shape_cast %29 : vector<16x16x384xf32> to vector<256x384xf32>
    %c2_52 = arith.constant 2 : index
    %c0_53 = arith.constant 0 : index
    %c0_54 = arith.constant 0 : index
    %31 = vector.load %arg5[%c2_52, %c0_53, %c0_54] : memref<3x384x128xf32, #tpu.memory_space<vmem>>, vector<1x384x128xf32>
    %32 = vector.shape_cast %31 : vector<1x384x128xf32> to vector<384x128xf32>
    %cst_55 = arith.constant dense<0.000000e+00> : vector<256x128xf32>
    %33 = tpu.matmul %30, %32, %cst_55 {dimension_numbers = #tpu.dot_dimension_numbers<[1], [0], [0], [1], [0, 0, 1, 1], [], []>} : vector<256x384xf32>, vector<384x128xf32>, vector<256x128xf32> -> vector<256x128xf32>
    %34 = arith.addf %28, %33 : vector<256x128xf32>
    %c0_56 = arith.constant 0 : index
    %c0_57 = arith.constant 0 : index
    %35 = vector.load %arg6[%c0_56, %c0_57] : memref<1x128xf32, #tpu.memory_space<vmem>>, vector<1x128xf32>
    %36 = vector.broadcast %35 : vector<1x128xf32> to vector<256x128xf32>
    %37 = arith.addf %34, %36 : vector<256x128xf32>
    %cst_58 = arith.constant 0.000000e+00 : f32
    %38 = vector.broadcast %cst_58 : f32 to vector<256x128xf32>
    %39 = arith.maximumf %37, %38 : vector<256x128xf32>
    %40 = vector.shape_cast %39 : vector<256x128xf32> to vector<1x16x16x128xf32>
    %c0_59 = arith.constant 0 : index
    %c0_60 = arith.constant 0 : index
    %c0_61 = arith.constant 0 : index
    %c0_62 = arith.constant 0 : index
    %41 = vector.load %arg7[%c0_59, %c0_60, %c0_61, %c0_62] : memref<1x16x16x128xf32, #tpu.memory_space<vmem>>, vector<1x16x16x128xf32>
    tpu.vector_store %arg7[%c0_59, %c0_60, %c0_61, %c0_62], %40 {strides = array<i32>} : memref<1x16x16x128xf32, #tpu.memory_space<vmem>>, vector<1x16x16x128xf32>,
    return
  }
  func.func @transform_0(%arg0: i32, %arg1: i32, %arg2: i32) -> (i32, i32, i32, i32) {
    %c0_i32 = arith.constant 0 : i32
    %c0_i32_0 = arith.constant 0 : i32
    %c0_i32_1 = arith.constant 0 : i32
    return %arg1, %arg2, %c0_i32, %c0_i32_0 : i32, i32, i32, i32
  }
  func.func @transform_1(%arg0: i32, %arg1: i32, %arg2: i32) -> (i32, i32, i32, i32) {
    %c1_i32 = arith.constant 1 : i32
    %0 = arith.addi %arg2, %c1_i32 : i32
    %c8_i32 = arith.constant 8 : i32
    %1 = arith.muli %0, %c8_i32 : i32
    %c0_i32 = arith.constant 0 : i32
    %c0_i32_0 = arith.constant 0 : i32
    %c0_i32_1 = arith.constant 0 : i32
    return %arg1, %1, %c0_i32, %c0_i32_0 : i32, i32, i32, i32
  }
  func.func @transform_2(%arg0: i32, %arg1: i32, %arg2: i32) -> (i32, i32, i32) {
    %c0_i32 = arith.constant 0 : i32
    %c0_i32_0 = arith.constant 0 : i32
    %c0_i32_1 = arith.constant 0 : i32
    return %c0_i32, %c0_i32_0, %arg0 : i32, i32, i32
  }
  func.func @transform_3(%arg0: i32, %arg1: i32, %arg2: i32) -> (i32, i32) {
    %c0_i32 = arith.constant 0 : i32
    %c0_i32_0 = arith.constant 0 : i32
    return %c0_i32, %arg0 : i32, i32
  }
  func.func @transform_4(%arg0: i32, %arg1: i32, %arg2: i32) -> (i32, i32, i32, i32) {
    %c0_i32 = arith.constant 0 : i32
    %c0_i32_0 = arith.constant 0 : i32
    return %arg1, %arg2, %c0_i32, %arg0 : i32, i32, i32, i32
  }
}

</mosaic_0001>

<llo_original>
// kernel: repvgg_block_pallas_nhwc.1
$region0: #{repvgg_block_pallas_nhwc.1}
  #allocation0 [shape = 'u32[]', space=smem, size = 0x4, offset = 0x4, fixed_abs, tag = 'smem constant byte address 0x4 - core index']
  #allocation1 [shape = 'u32[144,128]{1,0:T(1,128)}', space=vmem, size = 0x12000, scoped, tag = 'internal scratch']
  #allocation2 [shape = 'f32[18,16,384]{2,1,0:T(8,128)}', space=vmem, size = 0x6c000, scoped, tag = 'scratch operand']
  %s0 = inlined_call_operand.hbm [shape: f32[2,18,18,128], index: 0, kind: input, shape index: {}, may-alias: {0,1}]
  %s1 = inlined_call_operand.hbm [shape: f32[2,18,18,128], index: 1, kind: input, shape index: {}, may-alias: {0,1}]
  %s2 = inlined_call_operand.hbm [shape: f32[3,384,128], index: 2, kind: input, shape index: {}]
  %s3 = inlined_call_operand.hbm [shape: f32[1,128], index: 3, kind: input, shape index: {}]
  %s4 = inlined_call_operand.hbm [shape: f32[2,16,16,128], index: 4, kind: output, shape index: {}]
  %s5 = sld [smem:[#allocation0]]
  $region65: #{repvgg_block_pallas_nhwc.1} parent=0
    _
  %s7 = ssub.s32 1, %s5
  %s8 = scalar_select 0, %s7, %s5
  $region1: #{repvgg_block_pallas_nhwc.1} parent=0
    #allocation3 [shape = 'u8[393216]{0}', space=vmem, size = 0x60000, scoped, tag = 'input window, operand 0']
    #allocation4 [shape = 's32[2]{0}', space=sflag, size = 0x8, scoped, tag = 'scoped memory for repvgg_block_pallas_nhwc.1']
    #allocation5 [shape = 's32[2]{0}', space=sflag, size = 0x8, scoped, tag = 'scoped memory for repvgg_block_pallas_nhwc.1']
    #allocation6 [shape = 'u8[49152]{0}', space=vmem, size = 0xc000, scoped, tag = 'input window, operand 1']
    #allocation7 [shape = 's32[2]{0}', space=sflag, size = 0x8, scoped, tag = 'scoped memory for repvgg_block_pallas_nhwc.1']
    #allocation8 [shape = 'u8[589824]{0}', space=vmem, size = 0x90000, scoped, tag = 'input window, operand 2, single buffered']
    #allocation9 [shape = 'u8[512]{0}', space=vmem, size = 0x400, scoped, tag = 'input window, operand 3, single buffered']
    #allocation10 [shape = 's32[1]{0}', space=sflag, size = 0x4, scoped, tag = 'scoped memory for repvgg_block_pallas_nhwc.1']
    #allocation11 [shape = 'u8[262144]{0}', space=vmem, size = 0x40000, scoped, tag = 'output window, operand 0']
    %9 = vsyncpa [#allocation4], 0
    %s10 = scalar_lea.sflag [#allocation4], 1
    %11 = vsyncpa %s10, 0
    %12 = vsyncpa [#allocation7], 0
    %s13 = scalar_lea.sflag [#allocation7], 1
    %14 = vsyncpa %s13, 0
    %15 = vsyncpa [#allocation10], 0
    %16 = vsyncpa [#allocation5], 0
    %s17 = scalar_lea.sflag [#allocation5], 1
    %18 = vsyncpa %s17, 0
    loop: start=0, step=1, limit=4
    $region2: #{repvgg_block_pallas_nhwc.1} parent=1 // loop_pre_header
      _
    $region3: #{repvgg_block_pallas_nhwc.1} parent=1 // loop_header
      %s20 = sphi 0, %s24
      %p21 = scmp.ge.s32.totalorder %s20, 4
      %s27 = sphi 0, %s46
      %s28 = sphi 0, %s42
      %s29 = sphi 0, %s38
      %s30 = sphi 0, %s27
      %s31 = sphi 0, %s28
      %s32 = sphi 0, %s29
      %s33 = sphi 0, %s30
      %s34 = sphi 0, %s31
      %s35 = sphi 0, %s32
      %s51 = sphi 0, %s53
      %s54 = sphi 0, %s51
      %s55 = sphi 0, %s54
      %s71 = sphi 0, %s55
      %s83 = sphi 0, %s85
      %s86 = sphi 0, %s83
      %s87 = sphi 0, %s86
      %s103 = sphi 0, %s87
      %s109 = sphi 0, %s111
      %s112 = sphi 0, %s109
      %s113 = sphi 0, %s112
      %s129 = sphi 0, %s113
      %s135 = sphi 0, %s137
      %s138 = sphi 0, %s135
      %s139 = sphi 0, %s138
      %s155 = sphi 0, %s139
      %s165 = sphi 0, %s167
      %s168 = sphi 0, %s165
      %s169 = sphi 0, %s168
      %s185 = sphi 0, %s169
    $region4: #{repvgg_block_pallas_nhwc.1} parent=1 // loop_header_branch
      %23 = sbr.rel (%p21) target = $region8
    $region5: #{repvgg_block_pallas_nhwc.1} parent=1 // loop_body
      %s25 = ssub.s32 %s20, 1
      %s26 = ssub.s32 %s20, 2
      %s36 = sadd.s32 1, %s29
      %p37 = scmp.ge.s32.totalorder %s36, 1
      %s38 = scalar_select %p37, 0, %s36
      %s39 = sadd.s32 1, %s28
      %s40 = scalar_select %p37, %s39, %s28
      %p41 = scmp.ge.s32.totalorder %s40, 2
      %s42 = scalar_select %p41, 0, %s40
      %s43 = sadd.s32 1, %s27
      %s44 = scalar_select %p41, %s43, %s27
      %p45 = scmp.ge.s32.totalorder %s44, 1
      %s46 = scalar_select %p45, 0, %s44
      %s47 = ssub.s32 %s28, %s42
      %s48 = ssub.s32 %s29, %s38
      %s49 = sor.u32 %s47, %s48
      %p50 = scmp.eq.s32.totalorder %s49, 0
      %s52 = sadd.s32 %s51, 1
      %s53 = scalar_select %p50, %s51, %s52
      %p56 = pneg %p50
      %p57 = scmp.eq.s32.totalorder %s20, 1
      %p58 = por %p56, %p57
      %p59 = scmp.ne.s32.totalorder %s51, %s54
      %p60 = scmp.eq.s32.totalorder %s20, 0
      %p61 = por %p59, %p60
      %p62 = scmp.ne.s32.totalorder %s51, %s54
      %p63 = scmp.eq.s32.totalorder %s25, 1
      %p64 = por %p62, %p63
      %p65 = scmp.ne.s32.totalorder %s54, %s55
      %p66 = scmp.eq.s32.totalorder %s25, 0
      %p67 = por %p65, %p66
      %p68 = scmp.ne.s32.totalorder %s54, %s55
      %p69 = scmp.eq.s32.totalorder %s26, 1
      %p70 = por %p68, %p69
      %p72 = scmp.ne.s32.totalorder %s55, %s71
      %p73 = scmp.eq.s32.totalorder %s26, 0
      %p74 = por %p72, %p73
      %s75 = sadd.s32 %s29, 1
      %s76 = smul.u32 %s75, 8
      %s77 = sadd.s32 %s38, 1
      %s78 = smul.u32 %s77, 8
      %s79 = ssub.s32 %s28, %s42
      %s80 = ssub.s32 %s76, %s78
      %s81 = sor.u32 %s79, %s80
      %p82 = scmp.eq.s32.totalorder %s81, 0
      %s84 = sadd.s32 %s83, 1
      %s85 = scalar_select %p82, %s83, %s84
      %p88 = pneg %p82
      %p89 = scmp.eq.s32.totalorder %s20, 1
      %p90 = por %p88, %p89
      %p91 = scmp.ne.s32.totalorder %s83, %s86
      %p92 = scmp.eq.s32.totalorder %s20, 0
      %p93 = por %p91, %p92
      %p94 = scmp.ne.s32.totalorder %s83, %s86
      %p95 = scmp.eq.s32.totalorder %s25, 1
      %p96 = por %p94, %p95
      %p97 = scmp.ne.s32.totalorder %s86, %s87
      %p98 = scmp.eq.s32.totalorder %s25, 0
      %p99 = por %p97, %p98
      %p100 = scmp.ne.s32.totalorder %s86, %s87
      %p101 = scmp.eq.s32.totalorder %s26, 1
      %p102 = por %p100, %p101
      %p104 = scmp.ne.s32.totalorder %s87, %s103
      %p105 = scmp.eq.s32.totalorder %s26, 0
      %p106 = por %p104, %p105
      %s107 = ssub.s32 %s27, %s46
      %p108 = scmp.eq.s32.totalorder %s107, 0
      %s110 = sadd.s32 %s109, 1
      %s111 = scalar_select %p108, %s109, %s110
      %p114 = pneg %p108
      %p115 = scmp.eq.s32.totalorder %s20, 1
      %p116 = por %p114, %p115
      %p117 = scmp.ne.s32.totalorder %s109, %s112
      %p118 = scmp.eq.s32.totalorder %s20, 0
      %p119 = por %p117, %p118
      %p120 = scmp.ne.s32.totalorder %s109, %s112
      %p121 = scmp.eq.s32.totalorder %s25, 1
      %p122 = por %p120, %p121
      %p123 = scmp.ne.s32.totalorder %s112, %s113
      %p124 = scmp.eq.s32.totalorder %s25, 0
      %p125 = por %p123, %p124
      %p126 = scmp.ne.s32.totalorder %s112, %s113
      %p127 = scmp.eq.s32.totalorder %s26, 1
      %p128 = por %p126, %p127
      %p130 = scmp.ne.s32.totalorder %s113, %s129
      %p131 = scmp.eq.s32.totalorder %s26, 0
      %p132 = por %p130, %p131
      %s133 = ssub.s32 %s27, %s46
      %p134 = scmp.eq.s32.totalorder %s133, 0
      %s136 = sadd.s32 %s135, 1
      %s137 = scalar_select %p134, %s135, %s136
      %p140 = pneg %p134
      %p141 = scmp.eq.s32.totalorder %s20, 1
      %p142 = por %p140, %p141
      %p143 = scmp.ne.s32.totalorder %s135, %s138
      %p144 = scmp.eq.s32.totalorder %s20, 0
      %p145 = por %p143, %p144
      %p146 = scmp.ne.s32.totalorder %s135, %s138
      %p147 = scmp.eq.s32.totalorder %s25, 1
      %p148 = por %p146, %p147
      %p149 = scmp.ne.s32.totalorder %s138, %s139
      %p150 = scmp.eq.s32.totalorder %s25, 0
      %p151 = por %p149, %p150
      %p152 = scmp.ne.s32.totalorder %s138, %s139
      %p153 = scmp.eq.s32.totalorder %s26, 1
      %p154 = por %p152, %p153
      %p156 = scmp.ne.s32.totalorder %s139, %s155
      %p157 = scmp.eq.s32.totalorder %s26, 0
      %p158 = por %p156, %p157
      %s159 = ssub.s32 %s28, %s42
      %s160 = ssub.s32 %s29, %s38
      %s161 = sor.u32 %s159, %s160
      %s162 = ssub.s32 %s27, %s46
      %s163 = sor.u32 %s161, %s162
      %p164 = scmp.eq.s32.totalorder %s163, 0
      %s166 = sadd.s32 %s165, 1
      %s167 = scalar_select %p164, %s165, %s166
      %p170 = pneg %p164
      %p171 = scmp.eq.s32.totalorder %s20, 1
      %p172 = por %p170, %p171
      %p173 = scmp.ne.s32.totalorder %s165, %s168
      %p174 = scmp.eq.s32.totalorder %s20, 0
      %p175 = por %p173, %p174
      %p176 = scmp.ne.s32.totalorder %s165, %s168
      %p177 = scmp.eq.s32.totalorder %s25, 1
      %p178 = por %p176, %p177
      %p179 = scmp.ne.s32.totalorder %s168, %s169
      %p180 = scmp.eq.s32.totalorder %s25, 0
      %p181 = por %p179, %p180
      %p182 = scmp.ne.s32.totalorder %s168, %s169
      %p183 = scmp.eq.s32.totalorder %s26, 1
      %p184 = por %p182, %p183
      %p186 = scmp.ne.s32.totalorder %s169, %s185
      %p187 = scmp.eq.s32.totalorder %s26, 0
      %p188 = por %p186, %p187
      %p189 = scmp.le.s32.totalorder 1, %s20
      %p190 = scmp.lt.s32.totalorder %s20, 3
      %p191 = pnand %p189, %p190
      %p192 = pneg %p191
      // Predicated region
      $region9: #{repvgg_block_pallas_nhwc.1} parent=5 // pred_check
        _
      $region10: #{repvgg_block_pallas_nhwc.1} parent=5 // pred_check_branch
        %194 = sbr.rel (%p191) target = $region12
      $region11: #{repvgg_block_pallas_nhwc.1} parent=5 // pred_region
        %s195 = ssub.s32 %s20, 1
        // Predicated region
        $region13: #{repvgg_block_pallas_nhwc.1} parent=11 // pred_check
          %p196 = pneg %p125
        $region14: #{repvgg_block_pallas_nhwc.1} parent=11 // pred_check_branch
          %198 = sbr.rel (%p196) target = $region16
        $region15: #{repvgg_block_pallas_nhwc.1} parent=11 // pred_region
          %s200 = ssub.s32 18432, 18432
          %201 = vsyncadd [#allocation7], %s200
          %s202 = smul.addr %s30, 128
          %s203 = scalar_lea.hbm %s2, %s202
          %s204 = sshll.u32 [#allocation8], 4
          %s205 = int_to_ptr.vmem [resolvable:$true] %s204
          %210 = dma.hbm_to_vmem [thread:$0]  %s203, 18432, %s205, [#allocation7], 128, 128, 8
        $region16: #{repvgg_block_pallas_nhwc.1} parent=11 // pred_fallthru
          _
        // Predicated region
        $region17: #{repvgg_block_pallas_nhwc.1} parent=11 // pred_check
          %p211 = pneg %p151
        $region18: #{repvgg_block_pallas_nhwc.1} parent=11 // pred_check_branch
          %213 = sbr.rel (%p211) target = $region20
        $region19: #{repvgg_block_pallas_nhwc.1} parent=11 // pred_region
          %s215 = ssub.s32 16, 16
          %216 = vsyncadd [#allocation10], %s215
          %s217 = smul.addr %s30, 16
          %s218 = scalar_lea.hbm %s3, %s217
          %s220 = sshll.u32 [#allocation9], 4
          %s221 = int_to_ptr.vmem [resolvable:$true] %s220
          %223 = dma.hbm_to_vmem [thread:$0]  %s218, 16, %s221, [#allocation10]
        $region20: #{repvgg_block_pallas_nhwc.1} parent=11 // pred_fallthru
          _
      $region12: #{repvgg_block_pallas_nhwc.1} parent=5 // pred_fallthru
        _
      %p224 = scmp.lt.s32.totalorder %s20, 2
      // Predicated region
      $region21: #{repvgg_block_pallas_nhwc.1} parent=5 // pred_check
        %p225 = pneg %p224
      $region22: #{repvgg_block_pallas_nhwc.1} parent=5 // pred_check_branch
        %227 = sbr.rel (%p225) target = $region24
      $region23: #{repvgg_block_pallas_nhwc.1} parent=5 // pred_region
        // Predicated region
        $region25: #{repvgg_block_pallas_nhwc.1} parent=23 // pred_check
          %p228 = pneg %p61
        $region26: #{repvgg_block_pallas_nhwc.1} parent=23 // pred_check_branch
          %230 = sbr.rel (%p228) target = $region28
        $region27: #{repvgg_block_pallas_nhwc.1} parent=23 // pred_region
          %s231 = sand.u32 %s51, 1
          %s232 = scalar_lea.sflag [#allocation4], %s231
          %s233 = sand.u32 %s51, 1
          %s234 = smul.addr %s233, 384
          %s235 = scalar_lea.vmem [#allocation3], %s234
          %s236 = smul.u32 16, %s29
          %s237 = ssub.s32 18, %s236
          %p238 = scmp.lt.s32.totalorder %s237, 16
          %s239 = scalar_select %p238, %s237, 16
          %s240 = smul.u32 128, %s239
          %s241 = smul.u32 %s240, 3
          %s243 = ssub.s32 6144, %s241
          %244 = vsyncadd %s232, %s243
          %p245 = scmp.ne.s32.totalorder 0, %s241
          %s246 = smul.addr %s236, 3
          %s247 = smul.addr %s28, 54
          %s248 = sadd.s32 %s246, %s247
          %s249 = smul.addr %s248, 128
          %s250 = scalar_lea.hbm %s0, %s249
          %s251 = smul.u32 %s239, 3
          %s252 = smul.u32 8, %s251
          %s253 = sshll.u32 %s235, 4
          %s254 = int_to_ptr.vmem [resolvable:$true] %s253
          %s255 = sshll.u32 %s252, 4
          %259 = dma.hbm_to_vmem [thread:$0]  (%p245), %s250, %s255, %s254, %s232, 128, 128, 8
        $region28: #{repvgg_block_pallas_nhwc.1} parent=23 // pred_fallthru
          _
        // Predicated region
        $region29: #{repvgg_block_pallas_nhwc.1} parent=23 // pred_check
          %p260 = pneg %p93
        $region30: #{repvgg_block_pallas_nhwc.1} parent=23 // pred_check_branch
          %262 = sbr.rel (%p260) target = $region32
        $region31: #{repvgg_block_pallas_nhwc.1} parent=23 // pred_region
          %s263 = sand.u32 %s20, 1
          %s264 = scalar_lea.sflag [#allocation7], %s263
          %s265 = sand.u32 %s83, 1
          %s266 = smul.addr %s265, 48
          %s267 = scalar_lea.vmem [#allocation6], %s266
          %s268 = sadd.s32 %s29, 1
          %s269 = smul.u32 %s268, 8
          %s270 = smul.u32 2, %s269
          %s272 = ssub.s32 768, 768
          %273 = vsyncadd %s264, %s272
          %s274 = smul.addr %s270, 3
          %s275 = smul.addr %s28, 54
          %s276 = sadd.s32 %s274, %s275
          %s277 = smul.addr %s276, 128
          %s278 = scalar_lea.hbm %s1, %s277
          %s279 = sshll.u32 %s267, 4
          %s280 = int_to_ptr.vmem [resolvable:$true] %s279
          %285 = dma.hbm_to_vmem [thread:$0]  %s278, 768, %s280, %s264, 128, 128, 8
        $region32: #{repvgg_block_pallas_nhwc.1} parent=23 // pred_fallthru
          _
      $region24: #{repvgg_block_pallas_nhwc.1} parent=5 // pred_fallthru
        _
      %p286 = scmp.le.s32.totalorder 1, %s20
      %p287 = scmp.lt.s32.totalorder %s20, 3
      %p288 = pnand %p286, %p287
      %p289 = pneg %p288
      // Predicated region
      $region33: #{repvgg_block_pallas_nhwc.1} parent=5 // pred_check
        _
      $region34: #{repvgg_block_pallas_nhwc.1} parent=5 // pred_check_branch
        %291 = sbr.rel (%p288) target = $region36
      $region35: #{repvgg_block_pallas_nhwc.1} parent=5 // pred_region
        %s292 = ssub.s32 %s20, 1
        %s293 = sand.u32 %s54, 1
        %s294 = scalar_lea.sflag [#allocation4], %s293
        %s295 = sand.u32 %s54, 1
        %s296 = smul.addr %s295, 384
        %s297 = scalar_lea.vmem [#allocation3], %s296
        // Predicated region
        $region37: #{repvgg_block_pallas_nhwc.1} parent=35 // pred_check
          %p298 = pneg %p67
        $region38: #{repvgg_block_pallas_nhwc.1} parent=35 // pred_check_branch
          %300 = sbr.rel (%p298) target = $region40
        $region39: #{repvgg_block_pallas_nhwc.1} parent=35 // pred_region
          %301 = dma.done %s294, 6144
        $region40: #{repvgg_block_pallas_nhwc.1} parent=35 // pred_fallthru
          _
        %s302 = sand.u32 %s25, 1
        %s303 = scalar_lea.sflag [#allocation7], %s302
        %s304 = sand.u32 %s86, 1
        %s305 = smul.addr %s304, 48
        %s306 = scalar_lea.vmem [#allocation6], %s305
        // Predicated region
        $region41: #{repvgg_block_pallas_nhwc.1} parent=35 // pred_check
          %p307 = pneg %p99
        $region42: #{repvgg_block_pallas_nhwc.1} parent=35 // pred_check_branch
          %309 = sbr.rel (%p307) target = $region44
        $region43: #{repvgg_block_pallas_nhwc.1} parent=35 // pred_region
          %310 = dma.done %s303, 768
        $region44: #{repvgg_block_pallas_nhwc.1} parent=35 // pred_fallthru
          _
        // Predicated region
        $region45: #{repvgg_block_pallas_nhwc.1} parent=35 // pred_check
          %p311 = pneg %p125
        $region46: #{repvgg_block_pallas_nhwc.1} parent=35 // pred_check_branch
          %313 = sbr.rel (%p311) target = $region48
        $region47: #{repvgg_block_pallas_nhwc.1} parent=35 // pred_region
          %314 = dma.done [#allocation7], 18432
        $region48: #{repvgg_block_pallas_nhwc.1} parent=35 // pred_fallthru
          _
        // Predicated region
        $region49: #{repvgg_block_pallas_nhwc.1} parent=35 // pred_check
          %p315 = pneg %p151
        $region50: #{repvgg_block_pallas_nhwc.1} parent=35 // pred_check_branch
          %317 = sbr.rel (%p315) target = $region52
        $region51: #{repvgg_block_pallas_nhwc.1} parent=35 // pred_region
          %318 = dma.done [#allocation10], 16
        $region52: #{repvgg_block_pallas_nhwc.1} parent=35 // pred_fallthru
          _
        %s319 = sand.u32 %s54, 1
        %s320 = scalar_lea.sflag [#allocation4], %s319
        %s321 = sand.u32 %s54, 1
        %s322 = smul.addr %s321, 384
        %s323 = scalar_lea.vmem [#allocation3], %s322
        %p324 = pneg %p67
        %p325 = pneg %p64
        %s326 = sand.u32 %s25, 1
        %s327 = scalar_lea.sflag [#allocation7], %s326
        %s328 = sand.u32 %s86, 1
        %s329 = smul.addr %s328, 48
        %s330 = scalar_lea.vmem [#allocation6], %s329
        %p331 = pneg %p99
        %p332 = pneg %p96
        %p333 = pneg %p125
        %p334 = pneg %p122
        %p335 = pneg %p151
        %p336 = pneg %p148
        %p337 = pneg %p181
        %p338 = pneg %p178
        %s339 = sand.u32 %s168, 1
        %s340 = scalar_lea.sflag [#allocation5], %s339
        %s341 = sand.u32 %s168, 1
        %s342 = smul.addr %s341, 256
        %s343 = scalar_lea.vmem [#allocation11], %s342
        %s344 = smul.u32 16, %s32
        %s345 = ssub.s32 18, %s344
        %p346 = scmp.lt.s32.totalorder %s345, 16
        %s347 = scalar_select %p346, %s345, 16
        %s348 = smul.u32 128, %s347
        %s349 = smul.u32 %s348, 3
        %s350 = sadd.s32 %s32, 1
        %s351 = smul.u32 %s350, 8
        %s352 = smul.u32 2, %s351
        %s353 = smul.u32 16, %s32
        %v354 = vld [vmem:[%s297] sm:$0xff]
        %v355 = vld [vmem:[%s297 + $0x8] sm:$0xff]
        %v356 = vld [vmem:[%s297 + $0x18] sm:$0xff]
        %v357 = vld [vmem:[%s297 + $0x20] sm:$0xff]
        %v358 = vld [vmem:[%s297 + $0x30] sm:$0xff]
        %v359 = vld [vmem:[%s297 + $0x38] sm:$0xff]
        %v360 = vld [vmem:[%s297 + $0x48] sm:$0xff]
        %v361 = vld [vmem:[%s297 + $0x50] sm:$0xff]
        %v362 = vld [vmem:[%s297 + $0x60] sm:$0xff]
        %v363 = vld [vmem:[%s297 + $0x68] sm:$0xff]
        %v364 = vld [vmem:[%s297 + $0x78] sm:$0xff]
        %v365 = vld [vmem:[%s297 + $0x80] sm:$0xff]
        %v366 = vld [vmem:[%s297 + $0x90] sm:$0xff]
        %v367 = vld [vmem:[%s297 + $0x98] sm:$0xff]
        %v368 = vld [vmem:[%s297 + $0xa8] sm:$0xff]
        %v369 = vld [vmem:[%s297 + $0xb0] sm:$0xff]
        %v370 = vld [vmem:[%s297 + $0xc0] sm:$0xff]
        %v371 = vld [vmem:[%s297 + $0xc8] sm:$0xff]
        %v372 = vld [vmem:[%s297 + $0xd8] sm:$0xff]
        %v373 = vld [vmem:[%s297 + $0xe0] sm:$0xff]
        %v374 = vld [vmem:[%s297 + $0xf0] sm:$0xff]
        %v375 = vld [vmem:[%s297 + $0xf8] sm:$0xff]
        %v376 = vld [vmem:[%s297 + $0x108] sm:$0xff]
        %v377 = vld [vmem:[%s297 + $0x110] sm:$0xff]
        %v378 = vld [vmem:[%s297 + $0x120] sm:$0xff]
        %v379 = vld [vmem:[%s297 + $0x128] sm:$0xff]
        %v380 = vld [vmem:[%s297 + $0x138] sm:$0xff]
        %v381 = vld [vmem:[%s297 + $0x140] sm:$0xff]
        %v382 = vld [vmem:[%s297 + $0x150] sm:$0xff]
        %v383 = vld [vmem:[%s297 + $0x158] sm:$0xff]
        %v384 = vld [vmem:[%s297 + $0x168] sm:$0xff]
        %v385 = vld [vmem:[%s297 + $0x170] sm:$0xff]
        %386 = vst [vmem:[#allocation2] sm:$0xff] %v354
        %387 = vst [vmem:[#allocation2 + $0x18] sm:$0xff] %v355
        %388 = vst [vmem:[#allocation2 + $0x30] sm:$0xff] %v356
        %389 = vst [vmem:[#allocation2 + $0x48] sm:$0xff] %v357
        %390 = vst [vmem:[#allocation2 + $0x60] sm:$0xff] %v358
        %391 = vst [vmem:[#allocation2 + $0x78] sm:$0xff] %v359
        %392 = vst [vmem:[#allocation2 + $0x90] sm:$0xff] %v360
        %393 = vst [vmem:[#allocation2 + $0xa8] sm:$0xff] %v361
        %394 = vst [vmem:[#allocation2 + $0xc0] sm:$0xff] %v362
        %395 = vst [vmem:[#allocation2 + $0xd8] sm:$0xff] %v363
        %396 = vst [vmem:[#allocation2 + $0xf0] sm:$0xff] %v364
        %397 = vst [vmem:[#allocation2 + $0x108] sm:$0xff] %v365
        %398 = vst [vmem:[#allocation2 + $0x120] sm:$0xff] %v366
        %399 = vst [vmem:[#allocation2 + $0x138] sm:$0xff] %v367
        %400 = vst [vmem:[#allocation2 + $0x150] sm:$0xff] %v368
        %401 = vst [vmem:[#allocation2 + $0x168] sm:$0xff] %v369
        %402 = vst [vmem:[#allocation2 + $0x180] sm:$0xff] %v370
        %403 = vst [vmem:[#allocation2 + $0x198] sm:$0xff] %v371
        %404 = vst [vmem:[#allocation2 + $0x1b0] sm:$0xff] %v372
        %405 = vst [vmem:[#allocation2 + $0x1c8] sm:$0xff] %v373
        %406 = vst [vmem:[#allocation2 + $0x1e0] sm:$0xff] %v374
        %407 = vst [vmem:[#allocation2 + $0x1f8] sm:$0xff] %v375
        %408 = vst [vmem:[#allocation2 + $0x210] sm:$0xff] %v376
        %409 = vst [vmem:[#allocation2 + $0x228] sm:$0xff] %v377
        %410 = vst [vmem:[#allocation2 + $0x240] sm:$0xff] %v378
        %411 = vst [vmem:[#allocation2 + $0x258] sm:$0xff] %v379
        %412 = vst [vmem:[#allocation2 + $0x270] sm:$0xff] %v380
        %413 = vst [vmem:[#allocation2 + $0x288] sm:$0xff] %v381
        %414 = vst [vmem:[#allocation2 + $0x2a0] sm:$0xff] %v382
        %415 = vst [vmem:[#allocation2 + $0x2b8] sm:$0xff] %v383
        %416 = vst [vmem:[#allocation2 + $0x2d0] sm:$0xff] %v384
        %417 = vst [vmem:[#allocation2 + $0x2e8] sm:$0xff] %v385
        %v418 = vld [vmem:[%s306] sm:$0xff]
        %v419 = vld [vmem:[%s306 + $0x8] sm:$0xff]
        %v420 = vld [vmem:[%s306 + $0x18] sm:$0xff]
        %v421 = vld [vmem:[%s306 + $0x20] sm:$0xff]
        %s422 = scalar_lea.vmem [#allocation2], 768
        %423 = vst [vmem:[%s422] sm:$0xff] %v418
        %424 = vst [vmem:[%s422 + $0x18] sm:$0xff] %v419
        %425 = vst [vmem:[%s422 + $0x30] sm:$0xff] %v420
        %426 = vst [vmem:[%s422 + $0x48] sm:$0xff] %v421
        %v427 = vld [vmem:[%s297 + $0x1] sm:$0xff]
        %v428 = vld [vmem:[%s297 + $0x9] sm:$0xff]
        %v429 = vld [vmem:[%s297 + $0x19] sm:$0xff]
        %v430 = vld [vmem:[%s297 + $0x21] sm:$0xff]
        %v431 = vld [vmem:[%s297 + $0x31] sm:$0xff]
        %v432 = vld [vmem:[%s297 + $0x39] sm:$0xff]
        %v433 = vld [vmem:[%s297 + $0x49] sm:$0xff]
        %v434 = vld [vmem:[%s297 + $0x51] sm:$0xff]
        %v435 = vld [vmem:[%s297 + $0x61] sm:$0xff]
        %v436 = vld [vmem:[%s297 + $0x69] sm:$0xff]
        %v437 = vld [vmem:[%s297 + $0x79] sm:$0xff]
        %v438 = vld [vmem:[%s297 + $0x81] sm:$0xff]
        %v439 = vld [vmem:[%s297 + $0x91] sm:$0xff]
        %v440 = vld [vmem:[%s297 + $0x99] sm:$0xff]
        %v441 = vld [vmem:[%s297 + $0xa9] sm:$0xff]
        %v442 = vld [vmem:[%s297 + $0xb1] sm:$0xff]
        %v443 = vld [vmem:[%s297 + $0xc1] sm:$0xff]
        %v444 = vld [vmem:[%s297 + $0xc9] sm:$0xff]
        %v445 = vld [vmem:[%s297 + $0xd9] sm:$0xff]
        %v446 = vld [vmem:[%s297 + $0xe1] sm:$0xff]
        %v447 = vld [vmem:[%s297 + $0xf1] sm:$0xff]
        %v448 = vld [vmem:[%s297 + $0xf9] sm:$0xff]
        %v449 = vld [vmem:[%s297 + $0x109] sm:$0xff]
        %v450 = vld [vmem:[%s297 + $0x111] sm:$0xff]
        %v451 = vld [vmem:[%s297 + $0x121] sm:$0xff]
        %v452 = vld [vmem:[%s297 + $0x129] sm:$0xff]
        %v453 = vld [vmem:[%s297 + $0x139] sm:$0xff]
        %v454 = vld [vmem:[%s297 + $0x141] sm:$0xff]
        %v455 = vld [vmem:[%s297 + $0x151] sm:$0xff]
        %v456 = vld [vmem:[%s297 + $0x159] sm:$0xff]
        %v457 = vld [vmem:[%s297 + $0x169] sm:$0xff]
        %v458 = vld [vmem:[%s297 + $0x171] sm:$0xff]
        %459 = vst [vmem:[#allocation2 + $0x8] sm:$0xff] %v427
        %460 = vst [vmem:[#allocation2 + $0x20] sm:$0xff] %v428
        %461 = vst [vmem:[#allocation2 + $0x38] sm:$0xff] %v429
        %462 = vst [vmem:[#allocation2 + $0x50] sm:$0xff] %v430
        %463 = vst [vmem:[#allocation2 + $0x68] sm:$0xff] %v431
        %464 = vst [vmem:[#allocation2 + $0x80] sm:$0xff] %v432
        %465 = vst [vmem:[#allocation2 + $0x98] sm:$0xff] %v433
        %466 = vst [vmem:[#allocation2 + $0xb0] sm:$0xff] %v434
        %467 = vst [vmem:[#allocation2 + $0xc8] sm:$0xff] %v435
        %468 = vst [vmem:[#allocation2 + $0xe0] sm:$0xff] %v436
        %469 = vst [vmem:[#allocation2 + $0xf8] sm:$0xff] %v437
        %470 = vst [vmem:[#allocation2 + $0x110] sm:$0xff] %v438
        %471 = vst [vmem:[#allocation2 + $0x128] sm:$0xff] %v439
        %472 = vst [vmem:[#allocation2 + $0x140] sm:$0xff] %v440
        %473 = vst [vmem:[#allocation2 + $0x158] sm:$0xff] %v441
        %474 = vst [vmem:[#allocation2 + $0x170] sm:$0xff] %v442
        %475 = vst [vmem:[#allocation2 + $0x188] sm:$0xff] %v443
        %476 = vst [vmem:[#allocation2 + $0x1a0] sm:$0xff] %v444
        %477 = vst [vmem:[#allocation2 + $0x1b8] sm:$0xff] %v445
        %478 = vst [vmem:[#allocation2 + $0x1d0] sm:$0xff] %v446
        %479 = vst [vmem:[#allocation2 + $0x1e8] sm:$0xff] %v447
        %480 = vst [vmem:[#allocation2 + $0x200] sm:$0xff] %v448
        %481 = vst [vmem:[#allocation2 + $0x218] sm:$0xff] %v449
        %482 = vst [vmem:[#allocation2 + $0x230] sm:$0xff] %v450
        %483 = vst [vmem:[#allocation2 + $0x248] sm:$0xff] %v451
        %484 = vst [vmem:[#allocation2 + $0x260] sm:$0xff] %v452
        %485 = vst [vmem:[#allocation2 + $0x278] sm:$0xff] %v453
        %486 = vst [vmem:[#allocation2 + $0x290] sm:$0xff] %v454
        %487 = vst [vmem:[#allocation2 + $0x2a8] sm:$0xff] %v455
        %488 = vst [vmem:[#allocation2 + $0x2c0] sm:$0xff] %v456
        %489 = vst [vmem:[#allocation2 + $0x2d8] sm:$0xff] %v457
        %490 = vst [vmem:[#allocation2 + $0x2f0] sm:$0xff] %v458
        %v491 = vld [vmem:[%s306 + $0x1] sm:$0xff]
        %v492 = vld [vmem:[%s306 + $0x9] sm:$0xff]
        %v493 = vld [vmem:[%s306 + $0x19] sm:$0xff]
        %v494 = vld [vmem:[%s306 + $0x21] sm:$0xff]
        %495 = vst [vmem:[%s422 + $0x8] sm:$0xff] %v491
        %496 = vst [vmem:[%s422 + $0x20] sm:$0xff] %v492
        %497 = vst [vmem:[%s422 + $0x38] sm:$0xff] %v493
        %498 = vst [vmem:[%s422 + $0x50] sm:$0xff] %v494
        %v499 = vld [vmem:[%s297 + $0x2] sm:$0xff]
        %v500 = vld [vmem:[%s297 + $0xa] sm:$0xff]
        %v501 = vld [vmem:[%s297 + $0x1a] sm:$0xff]
        %v502 = vld [vmem:[%s297 + $0x22] sm:$0xff]
        %v503 = vld [vmem:[%s297 + $0x32] sm:$0xff]
        %v504 = vld [vmem:[%s297 + $0x3a] sm:$0xff]
        %v505 = vld [vmem:[%s297 + $0x4a] sm:$0xff]
        %v506 = vld [vmem:[%s297 + $0x52] sm:$0xff]
        %v507 = vld [vmem:[%s297 + $0x62] sm:$0xff]
        %v508 = vld [vmem:[%s297 + $0x6a] sm:$0xff]
        %v509 = vld [vmem:[%s297 + $0x7a] sm:$0xff]
        %v510 = vld [vmem:[%s297 + $0x82] sm:$0xff]
        %v511 = vld [vmem:[%s297 + $0x92] sm:$0xff]
        %v512 = vld [vmem:[%s297 + $0x9a] sm:$0xff]
        %v513 = vld [vmem:[%s297 + $0xaa] sm:$0xff]
        %v514 = vld [vmem:[%s297 + $0xb2] sm:$0xff]
        %v515 = vld [vmem:[%s297 + $0xc2] sm:$0xff]
        %v516 = vld [vmem:[%s297 + $0xca] sm:$0xff]
        %v517 = vld [vmem:[%s297 + $0xda] sm:$0xff]
        %v518 = vld [vmem:[%s297 + $0xe2] sm:$0xff]
        %v519 = vld [vmem:[%s297 + $0xf2] sm:$0xff]
        %v520 = vld [vmem:[%s297 + $0xfa] sm:$0xff]
        %v521 = vld [vmem:[%s297 + $0x10a] sm:$0xff]
        %v522 = vld [vmem:[%s297 + $0x112] sm:$0xff]
        %v523 = vld [vmem:[%s297 + $0x122] sm:$0xff]
        %v524 = vld [vmem:[%s297 + $0x12a] sm:$0xff]
        %v525 = vld [vmem:[%s297 + $0x13a] sm:$0xff]
        %v526 = vld [vmem:[%s297 + $0x142] sm:$0xff]
        %v527 = vld [vmem:[%s297 + $0x152] sm:$0xff]
        %v528 = vld [vmem:[%s297 + $0x15a] sm:$0xff]
        %v529 = vld [vmem:[%s297 + $0x16a] sm:$0xff]
        %v530 = vld [vmem:[%s297 + $0x172] sm:$0xff]
        %531 = vst [vmem:[#allocation2 + $0x10] sm:$0xff] %v499
        %532 = vst [vmem:[#allocation2 + $0x28] sm:$0xff] %v500
        %533 = vst [vmem:[#allocation2 + $0x40] sm:$0xff] %v501
        %534 = vst [vmem:[#allocation2 + $0x58] sm:$0xff] %v502
        %535 = vst [vmem:[#allocation2 + $0x70] sm:$0xff] %v503
        %536 = vst [vmem:[#allocation2 + $0x88] sm:$0xff] %v504
        %537 = vst [vmem:[#allocation2 + $0xa0] sm:$0xff] %v505
        %538 = vst [vmem:[#allocation2 + $0xb8] sm:$0xff] %v506
        %539 = vst [vmem:[#allocation2 + $0xd0] sm:$0xff] %v507
        %540 = vst [vmem:[#allocation2 + $0xe8] sm:$0xff] %v508
        %541 = vst [vmem:[#allocation2 + $0x100] sm:$0xff] %v509
        %542 = vst [vmem:[#allocation2 + $0x118] sm:$0xff] %v510
        %543 = vst [vmem:[#allocation2 + $0x130] sm:$0xff] %v511
        %544 = vst [vmem:[#allocation2 + $0x148] sm:$0xff] %v512
        %545 = vst [vmem:[#allocation2 + $0x160] sm:$0xff] %v513
        %546 = vst [vmem:[#allocation2 + $0x178] sm:$0xff] %v514
        %547 = vst [vmem:[#allocation2 + $0x190] sm:$0xff] %v515
        %548 = vst [vmem:[#allocation2 + $0x1a8] sm:$0xff] %v516
        %549 = vst [vmem:[#allocation2 + $0x1c0] sm:$0xff] %v517
        %550 = vst [vmem:[#allocation2 + $0x1d8] sm:$0xff] %v518
        %551 = vst [vmem:[#allocation2 + $0x1f0] sm:$0xff] %v519
        %552 = vst [vmem:[#allocation2 + $0x208] sm:$0xff] %v520
        %553 = vst [vmem:[#allocation2 + $0x220] sm:$0xff] %v521
        %554 = vst [vmem:[#allocation2 + $0x238] sm:$0xff] %v522
        %555 = vst [vmem:[#allocation2 + $0x250] sm:$0xff] %v523
        %556 = vst [vmem:[#allocation2 + $0x268] sm:$0xff] %v524
        %557 = vst [vmem:[#allocation2 + $0x280] sm:$0xff] %v525
        %558 = vst [vmem:[#allocation2 + $0x298] sm:$0xff] %v526
        %559 = vst [vmem:[#allocation2 + $0x2b0] sm:$0xff] %v527
        %560 = vst [vmem:[#allocation2 + $0x2c8] sm:$0xff] %v528
        %561 = vst [vmem:[#allocation2 + $0x2e0] sm:$0xff] %v529
        %562 = vst [vmem:[#allocation2 + $0x2f8] sm:$0xff] %v530
        %v563 = vld [vmem:[%s306 + $0x2] sm:$0xff]
        %v564 = vld [vmem:[%s306 + $0xa] sm:$0xff]
        %v565 = vld [vmem:[%s306 + $0x1a] sm:$0xff]
        %v566 = vld [vmem:[%s306 + $0x22] sm:$0xff]
        %567 = vst [vmem:[%s422 + $0x10] sm:$0xff] %v563
        %568 = vst [vmem:[%s422 + $0x28] sm:$0xff] %v564
        %569 = vst [vmem:[%s422 + $0x40] sm:$0xff] %v565
        %570 = vst [vmem:[%s422 + $0x58] sm:$0xff] %v566
        %v571 = vld [vmem:[#allocation2] sm:$0xff]
        %v572 = vld [vmem:[#allocation2 + $0x8] sm:$0xff]
        %v573 = vld [vmem:[#allocation2 + $0x10] sm:$0xff]
        %v574 = vld [vmem:[#allocation2 + $0x18] sm:$0xff]
        %v575 = vld [vmem:[#allocation2 + $0x20] sm:$0xff]
        %v576 = vld [vmem:[#allocation2 + $0x28] sm:$0xff]
        %v577 = vld [vmem:[#allocation2 + $0x30] sm:$0xff]
        %v578 = vld [vmem:[#allocation2 + $0x38] sm:$0xff]
        %v579 = vld [vmem:[#allocation2 + $0x40] sm:$0xff]
        %v580 = vld [vmem:[#allocation2 + $0x48] sm:$0xff]
        %v581 = vld [vmem:[#allocation2 + $0x50] sm:$0xff]
        %v582 = vld [vmem:[#allocation2 + $0x58] sm:$0xff]
        %v583 = vld [vmem:[#allocation2 + $0x60] sm:$0xff]
        %v584 = vld [vmem:[#allocation2 + $0x68] sm:$0xff]
        %v585 = vld [vmem:[#allocation2 + $0x70] sm:$0xff]
        %v586 = vld [vmem:[#allocation2 + $0x78] sm:$0xff]
        %v587 = vld [vmem:[#allocation2 + $0x80] sm:$0xff]
        %v588 = vld [vmem:[#allocation2 + $0x88] sm:$0xff]
        %v589 = vld [vmem:[#allocation2 + $0x90] sm:$0xff]
        %v590 = vld [vmem:[#allocation2 + $0x98] sm:$0xff]
        %v591 = vld [vmem:[#allocation2 + $0xa0] sm:$0xff]
        %v592 = vld [vmem:[#allocation2 + $0xa8] sm:$0xff]
        %v593 = vld [vmem:[#allocation2 + $0xb0] sm:$0xff]
        %v594 = vld [vmem:[#allocation2 + $0xb8] sm:$0xff]
        %v595 = vld [vmem:[#allocation2 + $0xc0] sm:$0xff]
        %v596 = vld [vmem:[#allocation2 + $0xc8] sm:$0xff]
        %v597 = vld [vmem:[#allocation2 + $0xd0] sm:$0xff]
        %v598 = vld [vmem:[#allocation2 + $0xd8] sm:$0xff]
        %v599 = vld [vmem:[#allocation2 + $0xe0] sm:$0xff]
        %v600 = vld [vmem:[#allocation2 + $0xe8] sm:$0xff]
        %v601 = vld [vmem:[#allocation2 + $0xf0] sm:$0xff]
        %v602 = vld [vmem:[#allocation2 + $0xf8] sm:$0xff]
        %v603 = vld [vmem:[#allocation2 + $0x100] sm:$0xff]
        %v604 = vld [vmem:[#allocation2 + $0x108] sm:$0xff]
        %v605 = vld [vmem:[#allocation2 + $0x110] sm:$0xff]
        %v606 = vld [vmem:[#allocation2 + $0x118] sm:$0xff]
        %v607 = vld [vmem:[#allocation2 + $0x120] sm:$0xff]
        %v608 = vld [vmem:[#allocation2 + $0x128] sm:$0xff]
        %v609 = vld [vmem:[#allocation2 + $0x130] sm:$0xff]
        %v610 = vld [vmem:[#allocation2 + $0x138] sm:$0xff]
        %v611 = vld [vmem:[#allocation2 + $0x140] sm:$0xff]
        %v612 = vld [vmem:[#allocation2 + $0x148] sm:$0xff]
        %v613 = vld [vmem:[#allocation2 + $0x150] sm:$0xff]
        %v614 = vld [vmem:[#allocation2 + $0x158] sm:$0xff]
        %v615 = vld [vmem:[#allocation2 + $0x160] sm:$0xff]
        %v616 = vld [vmem:[#allocation2 + $0x168] sm:$0xff]
        %v617 = vld [vmem:[#allocation2 + $0x170] sm:$0xff]
        %v618 = vld [vmem:[#allocation2 + $0x178] sm:$0xff]
        %v619 = vld [vmem:[#allocation2 + $0x180] sm:$0xff]
        %v620 = vld [vmem:[#allocation2 + $0x188] sm:$0xff]
        %v621 = vld [vmem:[#allocation2 + $0x190] sm:$0xff]
        %v622 = vld [vmem:[#allocation2 + $0x198] sm:$0xff]
        %v623 = vld [vmem:[#allocation2 + $0x1a0] sm:$0xff]
        %v624 = vld [vmem:[#allocation2 + $0x1a8] sm:$0xff]
        %v625 = vld [vmem:[#allocation2 + $0x1b0] sm:$0xff]
        %v626 = vld [vmem:[#allocation2 + $0x1b8] sm:$0xff]
        %v627 = vld [vmem:[#allocation2 + $0x1c0] sm:$0xff]
        %v628 = vld [vmem:[#allocation2 + $0x1c8] sm:$0xff]
        %v629 = vld [vmem:[#allocation2 + $0x1d0] sm:$0xff]
        %v630 = vld [vmem:[#allocation2 + $0x1d8] sm:$0xff]
        %v631 = vld [vmem:[#allocation2 + $0x1e0] sm:$0xff]
        %v632 = vld [vmem:[#allocation2 + $0x1e8] sm:$0xff]
        %v633 = vld [vmem:[#allocation2 + $0x1f0] sm:$0xff]
        %v634 = vld [vmem:[#allocation2 + $0x1f8] sm:$0xff]
        %v635 = vld [vmem:[#allocation2 + $0x200] sm:$0xff]
        %v636 = vld [vmem:[#allocation2 + $0x208] sm:$0xff]
        %v637 = vld [vmem:[#allocation2 + $0x210] sm:$0xff]
        %v638 = vld [vmem:[#allocation2 + $0x218] sm:$0xff]
        %v639 = vld [vmem:[#allocation2 + $0x220] sm:$0xff]
        %v640 = vld [vmem:[#allocation2 + $0x228] sm:$0xff]
        %v641 = vld [vmem:[#allocation2 + $0x230] sm:$0xff]
        %v642 = vld [vmem:[#allocation2 + $0x238] sm:$0xff]
        %v643 = vld [vmem:[#allocation2 + $0x240] sm:$0xff]
        %v644 = vld [vmem:[#allocation2 + $0x248] sm:$0xff]
        %v645 = vld [vmem:[#allocation2 + $0x250] sm:$0xff]
        %v646 = vld [vmem:[#allocation2 + $0x258] sm:$0xff]
        %v647 = vld [vmem:[#allocation2 + $0x260] sm:$0xff]
        %v648 = vld [vmem:[#allocation2 + $0x268] sm:$0xff]
        %v649 = vld [vmem:[#allocation2 + $0x270] sm:$0xff]
        %v650 = vld [vmem:[#allocation2 + $0x278] sm:$0xff]
        %v651 = vld [vmem:[#allocation2 + $0x280] sm:$0xff]
        %v652 = vld [vmem:[#allocation2 + $0x288] sm:$0xff]
        %v653 = vld [vmem:[#allocation2 + $0x290] sm:$0xff]
        %v654 = vld [vmem:[#allocation2 + $0x298] sm:$0xff]
        %v655 = vld [vmem:[#allocation2 + $0x2a0] sm:$0xff]
        %v656 = vld [vmem:[#allocation2 + $0x2a8] sm:$0xff]
        %v657 = vld [vmem:[#allocation2 + $0x2b0] sm:$0xff]
        %v658 = vld [vmem:[#allocation2 + $0x2b8] sm:$0xff]
        %v659 = vld [vmem:[#allocation2 + $0x2c0] sm:$0xff]
        %v660 = vld [vmem:[#allocation2 + $0x2c8] sm:$0xff]
        %v661 = vld [vmem:[#allocation2 + $0x2d0] sm:$0xff]
        %v662 = vld [vmem:[#allocation2 + $0x2d8] sm:$0xff]
        %v663 = vld [vmem:[#allocation2 + $0x2e0] sm:$0xff]
        %v664 = vld [vmem:[#allocation2 + $0x2e8] sm:$0xff]
        %v665 = vld [vmem:[#allocation2 + $0x2f0] sm:$0xff]
        %v666 = vld [vmem:[#allocation2 + $0x2f8] sm:$0xff]
        %v667 = vld [vmem:[#allocation8] sm:$0xff]
        %v668 = vld [vmem:[#allocation8 + $0x8] sm:$0xff]
        %v669 = vld [vmem:[#allocation8 + $0x10] sm:$0xff]
        %v670 = vld [vmem:[#allocation8 + $0x18] sm:$0xff]
        %v671 = vld [vmem:[#allocation8 + $0x20] sm:$0xff]
        %v672 = vld [vmem:[#allocation8 + $0x28] sm:$0xff]
        %v673 = vld [vmem:[#allocation8 + $0x30] sm:$0xff]
        %v674 = vld [vmem:[#allocation8 + $0x38] sm:$0xff]
        %v675 = vld [vmem:[#allocation8 + $0x40] sm:$0xff]
        %v676 = vld [vmem:[#allocation8 + $0x48] sm:$0xff]
        %v677 = vld [vmem:[#allocation8 + $0x50] sm:$0xff]
        %v678 = vld [vmem:[#allocation8 + $0x58] sm:$0xff]
        %v679 = vld [vmem:[#allocation8 + $0x60] sm:$0xff]
        %v680 = vld [vmem:[#allocation8 + $0x68] sm:$0xff]
        %v681 = vld [vmem:[#allocation8 + $0x70] sm:$0xff]
        %v682 = vld [vmem:[#allocation8 + $0x78] sm:$0xff]
        %v683 = vld [vmem:[#allocation8 + $0x80] sm:$0xff]
        %v684 = vld [vmem:[#allocation8 + $0x88] sm:$0xff]
        %v685 = vld [vmem:[#allocation8 + $0x90] sm:$0xff]
        %v686 = vld [vmem:[#allocation8 + $0x98] sm:$0xff]
        %v687 = vld [vmem:[#allocation8 + $0xa0] sm:$0xff]
        %v688 = vld [vmem:[#allocation8 + $0xa8] sm:$0xff]
        %v689 = vld [vmem:[#allocation8 + $0xb0] sm:$0xff]
        %v690 = vld [vmem:[#allocation8 + $0xb8] sm:$0xff]
        %v691 = vld [vmem:[#allocation8 + $0xc0] sm:$0xff]
        %v692 = vld [vmem:[#allocation8 + $0xc8] sm:$0xff]
        %v693 = vld [vmem:[#allocation8 + $0xd0] sm:$0xff]
        %v694 = vld [vmem:[#allocation8 + $0xd8] sm:$0xff]
        %v695 = vld [vmem:[#allocation8 + $0xe0] sm:$0xff]
        %v696 = vld [vmem:[#allocation8 + $0xe8] sm:$0xff]
        %v697 = vld [vmem:[#allocation8 + $0xf0] sm:$0xff]
        %v698 = vld [vmem:[#allocation8 + $0xf8] sm:$0xff]
        %v699 = vld [vmem:[#allocation8 + $0x100] sm:$0xff]
        %v700 = vld [vmem:[#allocation8 + $0x108] sm:$0xff]
        %v701 = vld [vmem:[#allocation8 + $0x110] sm:$0xff]
        %v702 = vld [vmem:[#allocation8 + $0x118] sm:$0xff]
        %v703 = vld [vmem:[#allocation8 + $0x120] sm:$0xff]
        %v704 = vld [vmem:[#allocation8 + $0x128] sm:$0xff]
        %v705 = vld [vmem:[#allocation8 + $0x130] sm:$0xff]
        %v706 = vld [vmem:[#allocation8 + $0x138] sm:$0xff]
        %v707 = vld [vmem:[#allocation8 + $0x140] sm:$0xff]
        %v708 = vld [vmem:[#allocation8 + $0x148] sm:$0xff]
        %v709 = vld [vmem:[#allocation8 + $0x150] sm:$0xff]
        %v710 = vld [vmem:[#allocation8 + $0x158] sm:$0xff]
        %v711 = vld [vmem:[#allocation8 + $0x160] sm:$0xff]
        %v712 = vld [vmem:[#allocation8 + $0x168] sm:$0xff]
        %v713 = vld [vmem:[#allocation8 + $0x170] sm:$0xff]
        %v714 = vld [vmem:[#allocation8 + $0x178] sm:$0xff]
        %s715 = scalar_lea.vmem [#allocation2], 48
        %v716 = vld [vmem:[%s715] sm:$0xff]
        %v717 = vld [vmem:[%s715 + $0x8] sm:$0xff]
        %v718 = vld [vmem:[%s715 + $0x10] sm:$0xff]
        %v719 = vld [vmem:[%s715 + $0x18] sm:$0xff]
        %v720 = vld [vmem:[%s715 + $0x20] sm:$0xff]
        %v721 = vld [vmem:[%s715 + $0x28] sm:$0xff]
        %v722 = vld [vmem:[%s715 + $0x30] sm:$0xff]
        %v723 = vld [vmem:[%s715 + $0x38] sm:$0xff]
        %v724 = vld [vmem:[%s715 + $0x40] sm:$0xff]
        %v725 = vld [vmem:[%s715 + $0x48] sm:$0xff]
        %v726 = vld [vmem:[%s715 + $0x50] sm:$0xff]
        %v727 = vld [vmem:[%s715 + $0x58] sm:$0xff]
        %v728 = vld [vmem:[%s715 + $0x60] sm:$0xff]
        %v729 = vld [vmem:[%s715 + $0x68] sm:$0xff]
        %v730 = vld [vmem:[%s715 + $0x70] sm:$0xff]
        %v731 = vld [vmem:[%s715 + $0x78] sm:$0xff]
        %v732 = vld [vmem:[%s715 + $0x80] sm:$0xff]
        %v733 = vld [vmem:[%s715 + $0x88] sm:$0xff]
        %v734 = vld [vmem:[%s715 + $0x90] sm:$0xff]
        %v735 = vld [vmem:[%s715 + $0x98] sm:$0xff]
        %v736 = vld [vmem:[%s715 + $0xa0] sm:$0xff]
        %v737 = vld [vmem:[%s715 + $0xa8] sm:$0xff]
        %v738 = vld [vmem:[%s715 + $0xb0] sm:$0xff]
        %v739 = vld [vmem:[%s715 + $0xb8] sm:$0xff]
        %v740 = vld [vmem:[%s715 + $0xc0] sm:$0xff]
        %v741 = vld [vmem:[%s715 + $0xc8] sm:$0xff]
        %v742 = vld [vmem:[%s715 + $0xd0] sm:$0xff]
        %v743 = vld [vmem:[%s715 + $0xd8] sm:$0xff]
        %v744 = vld [vmem:[%s715 + $0xe0] sm:$0xff]
        %v745 = vld [vmem:[%s715 + $0xe8] sm:$0xff]
        %v746 = vld [vmem:[%s715 + $0xf0] sm:$0xff]
        %v747 = vld [vmem:[%s715 + $0xf8] sm:$0xff]
        %v748 = vld [vmem:[%s715 + $0x100] sm:$0xff]
        %v749 = vld [vmem:[%s715 + $0x108] sm:$0xff]
        %v750 = vld [vmem:[%s715 + $0x110] sm:$0xff]
        %v751 = vld [vmem:[%s715 + $0x118] sm:$0xff]
        %v752 = vld [vmem:[%s715 + $0x120] sm:$0xff]
        %v753 = vld [vmem:[%s715 + $0x128] sm:$0xff]
        %v754 = vld [vmem:[%s715 + $0x130] sm:$0xff]
        %v755 = vld [vmem:[%s715 + $0x138] sm:$0xff]
        %v756 = vld [vmem:[%s715 + $0x140] sm:$0xff]
        %v757 = vld [vmem:[%s715 + $0x148] sm:$0xff]
        %v758 = vld [vmem:[%s715 + $0x150] sm:$0xff]
        %v759 = vld [vmem:[%s715 + $0x158] sm:$0xff]
        %v760 = vld [vmem:[%s715 + $0x160] sm:$0xff]
        %v761 = vld [vmem:[%s715 + $0x168] sm:$0xff]
        %v762 = vld [vmem:[%s715 + $0x170] sm:$0xff]
        %v763 = vld [vmem:[%s715 + $0x178] sm:$0xff]
        %v764 = vld [vmem:[%s715 + $0x180] sm:$0xff]
        %v765 = vld [vmem:[%s715 + $0x188] sm:$0xff]
        %v766 = vld [vmem:[%s715 + $0x190] sm:$0xff]
        %v767 = vld [vmem:[%s715 + $0x198] sm:$0xff]
        %v768 = vld [vmem:[%s715 + $0x1a0] sm:$0xff]
        %v769 = vld [vmem:[%s715 + $0x1a8] sm:$0xff]
        %v770 = vld [vmem:[%s715 + $0x1b0] sm:$0xff]
        %v771 = vld [vmem:[%s715 + $0x1b8] sm:$0xff]
        %v772 = vld [vmem:[%s715 + $0x1c0] sm:$0xff]
        %v773 = vld [vmem:[%s715 + $0x1c8] sm:$0xff]
        %v774 = vld [vmem:[%s715 + $0x1d0] sm:$0xff]
        %v775 = vld [vmem:[%s715 + $0x1d8] sm:$0xff]
        %v776 = vld [vmem:[%s715 + $0x1e0] sm:$0xff]
        %v777 = vld [vmem:[%s715 + $0x1e8] sm:$0xff]
        %v778 = vld [vmem:[%s715 + $0x1f0] sm:$0xff]
        %v779 = vld [vmem:[%s715 + $0x1f8] sm:$0xff]
        %v780 = vld [vmem:[%s715 + $0x200] sm:$0xff]
        %v781 = vld [vmem:[%s715 + $0x208] sm:$0xff]
        %v782 = vld [vmem:[%s715 + $0x210] sm:$0xff]
        %v783 = vld [vmem:[%s715 + $0x218] sm:$0xff]
        %v784 = vld [vmem:[%s715 + $0x220] sm:$0xff]
        %v785 = vld [vmem:[%s715 + $0x228] sm:$0xff]
        %v786 = vld [vmem:[%s715 + $0x230] sm:$0xff]
        %v787 = vld [vmem:[%s715 + $0x238] sm:$0xff]
        %v788 = vld [vmem:[%s715 + $0x240] sm:$0xff]
        %v789 = vld [vmem:[%s715 + $0x248] sm:$0xff]
        %v790 = vld [vmem:[%s715 + $0x250] sm:$0xff]
        %v791 = vld [vmem:[%s715 + $0x258] sm:$0xff]
        %v792 = vld [vmem:[%s715 + $0x260] sm:$0xff]
        %v793 = vld [vmem:[%s715 + $0x268] sm:$0xff]
        %v794 = vld [vmem:[%s715 + $0x270] sm:$0xff]
        %v795 = vld [vmem:[%s715 + $0x278] sm:$0xff]
        %v796 = vld [vmem:[%s715 + $0x280] sm:$0xff]
        %v797 = vld [vmem:[%s715 + $0x288] sm:$0xff]
        %v798 = vld [vmem:[%s715 + $0x290] sm:$0xff]
        %v799 = vld [vmem:[%s715 + $0x298] sm:$0xff]
        %v800 = vld [vmem:[%s715 + $0x2a0] sm:$0xff]
        %v801 = vld [vmem:[%s715 + $0x2a8] sm:$0xff]
        %v802 = vld [vmem:[%s715 + $0x2b0] sm:$0xff]
        %v803 = vld [vmem:[%s715 + $0x2b8] sm:$0xff]
        %v804 = vld [vmem:[%s715 + $0x2c0] sm:$0xff]
        %v805 = vld [vmem:[%s715 + $0x2c8] sm:$0xff]
        %v806 = vld [vmem:[%s715 + $0x2d0] sm:$0xff]
        %v807 = vld [vmem:[%s715 + $0x2d8] sm:$0xff]
        %v808 = vld [vmem:[%s715 + $0x2e0] sm:$0xff]
        %v809 = vld [vmem:[%s715 + $0x2e8] sm:$0xff]
        %v810 = vld [vmem:[%s715 + $0x2f0] sm:$0xff]
        %v811 = vld [vmem:[%s715 + $0x2f8] sm:$0xff]
        %s812 = scalar_lea.vmem [#allocation8], 384
        %v813 = vld [vmem:[%s812] sm:$0xff]
        %v814 = vld [vmem:[%s812 + $0x8] sm:$0xff]
        %v815 = vld [vmem:[%s812 + $0x10] sm:$0xff]
        %v816 = vld [vmem:[%s812 + $0x18] sm:$0xff]
        %v817 = vld [vmem:[%s812 + $0x20] sm:$0xff]
        %v818 = vld [vmem:[%s812 + $0x28] sm:$0xff]
        %v819 = vld [vmem:[%s812 + $0x30] sm:$0xff]
        %v820 = vld [vmem:[%s812 + $0x38] sm:$0xff]
        %v821 = vld [vmem:[%s812 + $0x40] sm:$0xff]
        %v822 = vld [vmem:[%s812 + $0x48] sm:$0xff]
        %v823 = vld [vmem:[%s812 + $0x50] sm:$0xff]
        %v824 = vld [vmem:[%s812 + $0x58] sm:$0xff]
        %v825 = vld [vmem:[%s812 + $0x60] sm:$0xff]
        %v826 = vld [vmem:[%s812 + $0x68] sm:$0xff]
        %v827 = vld [vmem:[%s812 + $0x70] sm:$0xff]
        %v828 = vld [vmem:[%s812 + $0x78] sm:$0xff]
        %v829 = vld [vmem:[%s812 + $0x80] sm:$0xff]
        %v830 = vld [vmem:[%s812 + $0x88] sm:$0xff]
        %v831 = vld [vmem:[%s812 + $0x90] sm:$0xff]
        %v832 = vld [vmem:[%s812 + $0x98] sm:$0xff]
        %v833 = vld [vmem:[%s812 + $0xa0] sm:$0xff]
        %v834 = vld [vmem:[%s812 + $0xa8] sm:$0xff]
        %v835 = vld [vmem:[%s812 + $0xb0] sm:$0xff]
        %v836 = vld [vmem:[%s812 + $0xb8] sm:$0xff]
        %v837 = vld [vmem:[%s812 + $0xc0] sm:$0xff]
        %v838 = vld [vmem:[%s812 + $0xc8] sm:$0xff]
        %v839 = vld [vmem:[%s812 + $0xd0] sm:$0xff]
        %v840 = vld [vmem:[%s812 + $0xd8] sm:$0xff]
        %v841 = vld [vmem:[%s812 + $0xe0] sm:$0xff]
        %v842 = vld [vmem:[%s812 + $0xe8] sm:$0xff]
        %v843 = vld [vmem:[%s812 + $0xf0] sm:$0xff]
        %v844 = vld [vmem:[%s812 + $0xf8] sm:$0xff]
        %v845 = vld [vmem:[%s812 + $0x100] sm:$0xff]
        %v846 = vld [vmem:[%s812 + $0x108] sm:$0xff]
        %v847 = vld [vmem:[%s812 + $0x110] sm:$0xff]
        %v848 = vld [vmem:[%s812 + $0x118] sm:$0xff]
        %v849 = vld [vmem:[%s812 + $0x120] sm:$0xff]
        %v850 = vld [vmem:[%s812 + $0x128] sm:$0xff]
        %v851 = vld [vmem:[%s812 + $0x130] sm:$0xff]
        %v852 = vld [vmem:[%s812 + $0x138] sm:$0xff]
        %v853 = vld [vmem:[%s812 + $0x140] sm:$0xff]
        %v854 = vld [vmem:[%s812 + $0x148] sm:$0xff]
        %v855 = vld [vmem:[%s812 + $0x150] sm:$0xff]
        %v856 = vld [vmem:[%s812 + $0x158] sm:$0xff]
        %v857 = vld [vmem:[%s812 + $0x160] sm:$0xff]
        %v858 = vld [vmem:[%s812 + $0x168] sm:$0xff]
        %v859 = vld [vmem:[%s812 + $0x170] sm:$0xff]
        %v860 = vld [vmem:[%s812 + $0x178] sm:$0xff]
        %861 = vmatprep.subr.mxu0 0.0
        %862 = vmatpush1.msra.mxu0 %v813
        %863 = vmatprep.subr.mxu0 0.0
        %864 = vmatpush1.msra.mxu0 %v814
        %865 = vmatprep.subr.mxu0 0.0
        %866 = vmatpush1.msra.mxu0 %v815
        %867 = vmatprep.subr.mxu0 0.0
        %868 = vmatpush1.msra.mxu0 %v816
        %869 = vmatprep.subr.mxu0 0.0
        %870 = vmatpush1.msra.mxu0 %v817
        %871 = vmatprep.subr.mxu0 0.0
        %872 = vmatpush1.msra.mxu0 %v818
        %873 = vmatprep.subr.mxu0 0.0
        %874 = vmatpush1.msra.mxu0 %v819
        %875 = vmatprep.subr.mxu0 0.0
        %876 = vmatpush1.msra.mxu0 %v820
        %877 = vmatprep.subr.mxu0 0.0
        %878 = vmatpush1.msra.mxu0 %v821
        %879 = vmatprep.subr.mxu0 0.0
        %880 = vmatpush1.msra.mxu0 %v822
        %881 = vmatprep.subr.mxu0 0.0
        %882 = vmatpush1.msra.mxu0 %v823
        %883 = vmatprep.subr.mxu0 0.0
        %884 = vmatpush1.msra.mxu0 %v824
        %885 = vmatprep.subr.mxu0 0.0
        %886 = vmatpush1.msra.mxu0 %v825
        %887 = vmatprep.subr.mxu0 0.0
        %888 = vmatpush1.msra.mxu0 %v826
        %889 = vmatprep.subr.mxu0 0.0
        %890 = vmatpush1.msra.mxu0 %v827
        %891 = vmatprep.subr.mxu0 0.0
        %892 = vmatpush1.msra.mxu0 %v828
        %893 = vmatprep.subr.mxu0 0.0
        %894 = vmatpush1.msra.mxu0 %v829
        %895 = vmatprep.subr.mxu0 0.0
        %896 = vmatpush1.msra.mxu0 %v830
        %897 = vmatprep.subr.mxu0 0.0
        %898 = vmatpush1.msra.mxu0 %v831
        %899 = vmatprep.subr.mxu0 0.0
        %900 = vmatpush1.msra.mxu0 %v832
        %901 = vmatprep.subr.mxu0 0.0
        %902 = vmatpush1.msra.mxu0 %v833
        %903 = vmatprep.subr.mxu0 0.0
        %904 = vmatpush1.msra.mxu0 %v834
        %905 = vmatprep.subr.mxu0 0.0
        %906 = vmatpush1.msra.mxu0 %v835
        %907 = vmatprep.subr.mxu0 0.0
        %908 = vmatpush1.msra.mxu0 %v836
        %909 = vmatprep.subr.mxu0 0.0
        %910 = vmatpush1.msra.mxu0 %v837
        %911 = vmatprep.subr.mxu0 0.0
        %912 = vmatpush1.msra.mxu0 %v838
        %913 = vmatprep.subr.mxu0 0.0
        %914 = vmatpush1.msra.mxu0 %v839
        %915 = vmatprep.subr.mxu0 0.0
        %916 = vmatpush1.msra.mxu0 %v840
        %917 = vmatprep.subr.mxu0 0.0
        %918 = vmatpush1.msra.mxu0 %v841
        %919 = vmatprep.subr.mxu0 0.0
        %920 = vmatpush1.msra.mxu0 %v842
        %921 = vmatprep.subr.mxu0 0.0
        %922 = vmatpush1.msra.mxu0 %v843
        %923 = vmatprep.subr.mxu0 0.0
        %924 = vmatpush1.msra.mxu0 %v844
        %925 = vmatprep.mubr.f32.mxu0 %v717
        %926 = vmatmul.mubr.f32.gmra.mrb[0].mxu0 %v716
        %v927 = vpop.f32.mrb[0].mxu0
        %v928 = vadd.f32 0.0, %v927
        %v929 = vpop.f32.mrb[0].mxu0
        %930 = vmatprep.mubr.f32.mxu0 %v720
        %931 = vmatmul.mubr.f32.gmra.mrb[0].mxu0 %v719
        %v932 = vpop.f32.mrb[0].mxu0
        %v933 = vadd.f32 0.0, %v932
        %v934 = vpop.f32.mrb[0].mxu0
        %935 = vmatprep.mubr.f32.mxu0 %v723
        %936 = vmatmul.mubr.f32.gmra.mrb[0].mxu0 %v722
        %v937 = vpop.f32.mrb[0].mxu0
        %v938 = vadd.f32 0.0, %v937
        %v939 = vpop.f32.mrb[0].mxu0
        %940 = vmatprep.mubr.f32.mxu0 %v726
        %941 = vmatmul.mubr.f32.gmra.mrb[0].mxu0 %v725
        %v942 = vpop.f32.mrb[0].mxu0
        %v943 = vadd.f32 0.0, %v942
        %v944 = vpop.f32.mrb[0].mxu0
        %945 = vmatprep.mubr.f32.mxu0 %v729
        %946 = vmatmul.mubr.f32.gmra.mrb[0].mxu0 %v728
        %v947 = vpop.f32.mrb[0].mxu0
        %v948 = vadd.f32 0.0, %v947
        %v949 = vpop.f32.mrb[0].mxu0
        %950 = vmatprep.mubr.f32.mxu0 %v732
        %951 = vmatmul.mubr.f32.gmra.mrb[0].mxu0 %v731
        %v952 = vpop.f32.mrb[0].mxu0
        %v953 = vadd.f32 0.0, %v952
        %v954 = vpop.f32.mrb[0].mxu0
        %955 = vmatprep.mubr.f32.mxu0 %v735
        %956 = vmatmul.mubr.f32.gmra.mrb[0].mxu0 %v734
        %v957 = vpop.f32.mrb[0].mxu0
        %v958 = vadd.f32 0.0, %v957
        %v959 = vpop.f32.mrb[0].mxu0
        %960 = vmatprep.mubr.f32.mxu0 %v738
        %961 = vmatmul.mubr.f32.gmra.mrb[0].mxu0 %v737
        %v962 = vpop.f32.mrb[0].mxu0
        %v963 = vadd.f32 0.0, %v962
        %v964 = vpop.f32.mrb[0].mxu0
        %965 = vmatprep.mubr.f32.mxu0 %v741
        %966 = vmatmul.mubr.f32.gmra.mrb[0].mxu0 %v740
        %v967 = vpop.f32.mrb[0].mxu0
        %v968 = vadd.f32 0.0, %v967
        %v969 = vpop.f32.mrb[0].mxu0
        %970 = vmatprep.mubr.f32.mxu0 %v744
        %971 = vmatmul.mubr.f32.gmra.mrb[0].mxu0 %v743
        %v972 = vpop.f32.mrb[0].mxu0
        %v973 = vadd.f32 0.0, %v972
        %v974 = vpop.f32.mrb[0].mxu0
        %975 = vmatprep.mubr.f32.mxu0 %v747
        %976 = vmatmul.mubr.f32.gmra.mrb[0].mxu0 %v746
        %v977 = vpop.f32.mrb[0].mxu0
        %v978 = vadd.f32 0.0, %v977
        %v979 = vpop.f32.mrb[0].mxu0
        %980 = vmatprep.mubr.f32.mxu0 %v750
        %981 = vmatmul.mubr.f32.gmra.mrb[0].mxu0 %v749
        %v982 = vpop.f32.mrb[0].mxu0
        %v983 = vadd.f32 0.0, %v982
        %v984 = vpop.f32.mrb[0].mxu0
        %985 = vmatprep.mubr.f32.mxu0 %v753
        %986 = vmatmul.mubr.f32.gmra.mrb[0].mxu0 %v752
        %v987 = vpop.f32.mrb[0].mxu0
        %v988 = vadd.f32 0.0, %v987
        %v989 = vpop.f32.mrb[0].mxu0
        %990 = vmatprep.mubr.f32.mxu0 %v756
        %991 = vmatmul.mubr.f32.gmra.mrb[0].mxu0 %v755
        %v992 = vpop.f32.mrb[0].mxu0
        %v993 = vadd.f32 0.0, %v992
        %v994 = vpop.f32.mrb[0].mxu0
        %995 = vmatprep.mubr.f32.mxu0 %v759
        %996 = vmatmul.mubr.f32.gmra.mrb[0].mxu0 %v758
        %v997 = vpop.f32.mrb[0].mxu0
        %v998 = vadd.f32 0.0, %v997
        %v999 = vpop.f32.mrb[0].mxu0
        %1000 = vmatprep.mubr.f32.mxu0 %v762
        %1001 = vmatmul.mubr.f32.gmra.mrb[0].mxu0 %v761
        %v1002 = vpop.f32.mrb[0].mxu0
        %v1003 = vadd.f32 0.0, %v1002
        %v1004 = vpop.f32.mrb[0].mxu0
        %1005 = vmatprep.mubr.f32.mxu0 %v765
        %1006 = vmatmul.mubr.f32.gmra.mrb[0].mxu0 %v764
        %v1007 = vpop.f32.mrb[0].mxu0
        %v1008 = vadd.f32 0.0, %v1007
        %v1009 = vpop.f32.mrb[0].mxu0
        %1010 = vmatprep.mubr.f32.mxu0 %v768
        %1011 = vmatmul.mubr.f32.gmra.mrb[0].mxu0 %v767
        %v1012 = vpop.f32.mrb[0].mxu0
        %v1013 = vadd.f32 0.0, %v1012
        %v1014 = vpop.f32.mrb[0].mxu0
        %1015 = vmatprep.mubr.f32.mxu0 %v771
        %1016 = vmatmul.mubr.f32.gmra.mrb[0].mxu0 %v770
        %v1017 = vpop.f32.mrb[0].mxu0
        %v1018 = vadd.f32 0.0, %v1017
        %v1019 = vpop.f32.mrb[0].mxu0
        %1020 = vmatprep.mubr.f32.mxu0 %v774
        %1021 = vmatmul.mubr.f32.gmra.mrb[0].mxu0 %v773
        %v1022 = vpop.f32.mrb[0].mxu0
        %v1023 = vadd.f32 0.0, %v1022
        %v1024 = vpop.f32.mrb[0].mxu0
        %1025 = vmatprep.mubr.f32.mxu0 %v777
        %1026 = vmatmul.mubr.f32.gmra.mrb[0].mxu0 %v776
        %v1027 = vpop.f32.mrb[0].mxu0
        %v1028 = vadd.f32 0.0, %v1027
        %v1029 = vpop.f32.mrb[0].mxu0
        %1030 = vmatprep.mubr.f32.mxu0 %v780
        %1031 = vmatmul.mubr.f32.gmra.mrb[0].mxu0 %v779
        %v1032 = vpop.f32.mrb[0].mxu0
        %v1033 = vadd.f32 0.0, %v1032
        %v1034 = vpop.f32.mrb[0].mxu0
        %1035 = vmatprep.mubr.f32.mxu0 %v783
        %1036 = vmatmul.mubr.f32.gmra.mrb[0].mxu0 %v782
        %v1037 = vpop.f32.mrb[0].mxu0
        %v1038 = vadd.f32 0.0, %v1037
        %v1039 = vpop.f32.mrb[0].mxu0
        %1040 = vmatprep.mubr.f32.mxu0 %v786
        %1041 = vmatmul.mubr.f32.gmra.mrb[0].mxu0 %v785
        %v1042 = vpop.f32.mrb[0].mxu0
        %v1043 = vadd.f32 0.0, %v1042
        %v1044 = vpop.f32.mrb[0].mxu0
        %1045 = vmatprep.mubr.f32.mxu0 %v789
        %1046 = vmatmul.mubr.f32.gmra.mrb[0].mxu0 %v788
        %v1047 = vpop.f32.mrb[0].mxu0
        %v1048 = vadd.f32 0.0, %v1047
        %v1049 = vpop.f32.mrb[0].mxu0
        %1050 = vmatprep.mubr.f32.mxu0 %v792
        %1051 = vmatmul.mubr.f32.gmra.mrb[0].mxu0 %v791
        %v1052 = vpop.f32.mrb[0].mxu0
        %v1053 = vadd.f32 0.0, %v1052
        %v1054 = vpop.f32.mrb[0].mxu0
        %1055 = vmatprep.mubr.f32.mxu0 %v795
        %1056 = vmatmul.mubr.f32.gmra.mrb[0].mxu0 %v794
        %v1057 = vpop.f32.mrb[0].mxu0
        %v1058 = vadd.f32 0.0, %v1057
        %v1059 = vpop.f32.mrb[0].mxu0
        %1060 = vmatprep.mubr.f32.mxu0 %v798
        %1061 = vmatmul.mubr.f32.gmra.mrb[0].mxu0 %v797
        %v1062 = vpop.f32.mrb[0].mxu0
        %v1063 = vadd.f32 0.0, %v1062
        %v1064 = vpop.f32.mrb[0].mxu0
        %1065 = vmatprep.mubr.f32.mxu0 %v801
        %1066 = vmatmul.mubr.f32.gmra.mrb[0].mxu0 %v800
        %v1067 = vpop.f32.mrb[0].mxu0
        %v1068 = vadd.f32 0.0, %v1067
        %v1069 = vpop.f32.mrb[0].mxu0
        %1070 = vmatprep.mubr.f32.mxu0 %v804
        %1071 = vmatmul.mubr.f32.gmra.mrb[0].mxu0 %v803
        %v1072 = vpop.f32.mrb[0].mxu0
        %v1073 = vadd.f32 0.0, %v1072
        %v1074 = vpop.f32.mrb[0].mxu0
        %1075 = vmatprep.mubr.f32.mxu0 %v807
        %1076 = vmatmul.mubr.f32.gmra.mrb[0].mxu0 %v806
        %v1077 = vpop.f32.mrb[0].mxu0
        %v1078 = vadd.f32 0.0, %v1077
        %v1079 = vpop.f32.mrb[0].mxu0
        %1080 = vmatprep.mubr.f32.mxu0 %v810
        %1081 = vmatmul.mubr.f32.gmra.mrb[0].mxu0 %v809
        %v1082 = vpop.f32.mrb[0].mxu0
        %v1083 = vadd.f32 0.0, %v1082
        %v1084 = vpop.f32.mrb[0].mxu0
        %1085 = vdwg.mxu0
        %1086 = vmatprep.subr.mxu0 0.0
        %1087 = vmatpush1.msra.mxu0 %v845
        %1088 = vmatprep.subr.mxu0 0.0
        %1089 = vmatpush1.msra.mxu0 %v846
        %1090 = vmatprep.subr.mxu0 0.0
        %1091 = vmatpush1.msra.mxu0 %v847
        %1092 = vmatprep.subr.mxu0 0.0
        %1093 = vmatpush1.msra.mxu0 %v848
        %1094 = vmatprep.subr.mxu0 0.0
        %1095 = vmatpush1.msra.mxu0 %v849
        %1096 = vmatprep.subr.mxu0 0.0
        %1097 = vmatpush1.msra.mxu0 %v850
        %1098 = vmatprep.subr.mxu0 0.0
        %1099 = vmatpush1.msra.mxu0 %v851
        %1100 = vmatprep.subr.mxu0 0.0
        %1101 = vmatpush1.msra.mxu0 %v852
        %1102 = vmatprep.subr.mxu0 0.0
        %1103 = vmatpush1.msra.mxu0 %v853
        %1104 = vmatprep.subr.mxu0 0.0
        %1105 = vmatpush1.msra.mxu0 %v854
        %1106 = vmatprep.subr.mxu0 0.0
        %1107 = vmatpush1.msra.mxu0 %v855
        %1108 = vmatprep.subr.mxu0 0.0
        %1109 = vmatpush1.msra.mxu0 %v856
        %1110 = vmatprep.subr.mxu0 0.0
        %1111 = vmatpush1.msra.mxu0 %v857
        %1112 = vmatprep.subr.mxu0 0.0
        %1113 = vmatpush1.msra.mxu0 %v858
        %1114 = vmatprep.subr.mxu0 0.0
        %1115 = vmatpush1.msra.mxu0 %v859
        %1116 = vmatprep.subr.mxu0 0.0
        %1117 = vmatpush1.msra.mxu0 %v860
        %1118 = vmatprep.subr.mxu0 0.0
        %1119 = vmatpush1.msra.mxu0 0.0
        %1120 = vmatprep.subr.mxu0 0.0
        %1121 = vmatpush1.msra.mxu0 0.0
        %1122 = vmatprep.subr.mxu0 0.0
        %1123 = vmatpush1.msra.mxu0 0.0
        %1124 = vmatprep.subr.mxu0 0.0
        %1125 = vmatpush1.msra.mxu0 0.0
        %1126 = vmatprep.subr.mxu0 0.0
        %1127 = vmatpush1.msra.mxu0 0.0
        %1128 = vmatprep.subr.mxu0 0.0
        %1129 = vmatpush1.msra.mxu0 0.0
        %1130 = vmatprep.subr.mxu0 0.0
        %1131 = vmatpush1.msra.mxu0 0.0
        %1132 = vmatprep.subr.mxu0 0.0
        %1133 = vmatpush1.msra.mxu0 0.0
        %1134 = vmatprep.subr.mxu0 0.0
        %1135 = vmatpush1.msra.mxu0 0.0
        %1136 = vmatprep.subr.mxu0 0.0
        %1137 = vmatpush1.msra.mxu0 0.0
        %1138 = vmatprep.subr.mxu0 0.0
        %1139 = vmatpush1.msra.mxu0 0.0
        %1140 = vmatprep.subr.mxu0 0.0
        %1141 = vmatpush1.msra.mxu0 0.0
        %1142 = vmatprep.subr.mxu0 0.0
        %1143 = vmatpush1.msra.mxu0 0.0
        %1144 = vmatprep.subr.mxu0 0.0
        %1145 = vmatpush1.msra.mxu0 0.0
        %1146 = vmatprep.subr.mxu0 0.0
        %1147 = vmatpush1.msra.mxu0 0.0
        %1148 = vmatprep.subr.mxu0 0.0
        %1149 = vmatpush1.msra.mxu0 0.0
        %1150 = vmatprep.mubr.f32.mxu0 0.0
        %1151 = vmatmul.mubr.f32.gmra.mrb[0].mxu0 %v718
        %v1152 = vpop.f32.mrb[0].mxu0
        %v1153 = vadd.f32 %v928, %v1152
        %v1154 = vpop.f32.mrb[0].mxu0
        %1155 = vmatprep.mubr.f32.mxu0 0.0
        %1156 = vmatmul.mubr.f32.gmra.mrb[0].mxu0 %v721
        %v1157 = vpop.f32.mrb[0].mxu0
        %v1158 = vadd.f32 %v933, %v1157
        %v1159 = vpop.f32.mrb[0].mxu0
        %1160 = vmatprep.mubr.f32.mxu0 0.0
        %1161 = vmatmul.mubr.f32.gmra.mrb[0].mxu0 %v724
        %v1162 = vpop.f32.mrb[0].mxu0
        %v1163 = vadd.f32 %v938, %v1162
        %v1164 = vpop.f32.mrb[0].mxu0
        %1165 = vmatprep.mubr.f32.mxu0 0.0
        %1166 = vmatmul.mubr.f32.gmra.mrb[0].mxu0 %v727
        %v1167 = vpop.f32.mrb[0].mxu0
        %v1168 = vadd.f32 %v943, %v1167
        %v1169 = vpop.f32.mrb[0].mxu0
        %1170 = vmatprep.mubr.f32.mxu0 0.0
        %1171 = vmatmul.mubr.f32.gmra.mrb[0].mxu0 %v730
        %v1172 = vpop.f32.mrb[0].mxu0
        %v1173 = vadd.f32 %v948, %v1172
        %v1174 = vpop.f32.mrb[0].mxu0
        %1175 = vmatprep.mubr.f32.mxu0 0.0
        %1176 = vmatmul.mubr.f32.gmra.mrb[0].mxu0 %v733
        %v1177 = vpop.f32.mrb[0].mxu0
        %v1178 = vadd.f32 %v953, %v1177
        %v1179 = vpop.f32.mrb[0].mxu0
        %1180 = vmatprep.mubr.f32.mxu0 0.0
        %1181 = vmatmul.mubr.f32.gmra.mrb[0].mxu0 %v736
        %v1182 = vpop.f32.mrb[0].mxu0
        %v1183 = vadd.f32 %v958, %v1182
        %v1184 = vpop.f32.mrb[0].mxu0
        %1185 = vmatprep.mubr.f32.mxu0 0.0
        %1186 = vmatmul.mubr.f32.gmra.mrb[0].mxu0 %v739
        %v1187 = vpop.f32.mrb[0].mxu0
        %v1188 = vadd.f32 %v963, %v1187
        %v1189 = vpop.f32.mrb[0].mxu0
        %1190 = vmatprep.mubr.f32.mxu0 0.0
        %1191 = vmatmul.mubr.f32.gmra.mrb[0].mxu0 %v742
        %v1192 = vpop.f32.mrb[0].mxu0
        %v1193 = vadd.f32 %v968, %v1192
        %v1194 = vpop.f32.mrb[0].mxu0
        %1195 = vmatprep.mubr.f32.mxu0 0.0
        %1196 = vmatmul.mubr.f32.gmra.mrb[0].mxu0 %v745
        %v1197 = vpop.f32.mrb[0].mxu0
        %v1198 = vadd.f32 %v973, %v1197
        %v1199 = vpop.f32.mrb[0].mxu0
        %1200 = vmatprep.mubr.f32.mxu0 0.0
        %1201 = vmatmul.mubr.f32.gmra.mrb[0].mxu0 %v748
        %v1202 = vpop.f32.mrb[0].mxu0
        %v1203 = vadd.f32 %v978, %v1202
        %v1204 = vpop.f32.mrb[0].mxu0
        %1205 = vmatprep.mubr.f32.mxu0 0.0
        %1206 = vmatmul.mubr.f32.gmra.mrb[0].mxu0 %v751
        %v1207 = vpop.f32.mrb[0].mxu0
        %v1208 = vadd.f32 %v983, %v1207
        %v1209 = vpop.f32.mrb[0].mxu0
        %1210 = vmatprep.mubr.f32.mxu0 0.0
        %1211 = vmatmul.mubr.f32.gmra.mrb[0].mxu0 %v754
        %v1212 = vpop.f32.mrb[0].mxu0
        %v1213 = vadd.f32 %v988, %v1212
        %v1214 = vpop.f32.mrb[0].mxu0
        %1215 = vmatprep.mubr.f32.mxu0 0.0
        %1216 = vmatmul.mubr.f32.gmra.mrb[0].mxu0 %v757
        %v1217 = vpop.f32.mrb[0].mxu0
        %v1218 = vadd.f32 %v993, %v1217
        %v1219 = vpop.f32.mrb[0].mxu0
        %1220 = vmatprep.mubr.f32.mxu0 0.0
        %1221 = vmatmul.mubr.f32.gmra.mrb[0].mxu0 %v760
        %v1222 = vpop.f32.mrb[0].mxu0
        %v1223 = vadd.f32 %v998, %v1222
        %v1224 = vpop.f32.mrb[0].mxu0
        %1225 = vmatprep.mubr.f32.mxu0 0.0
        %1226 = vmatmul.mubr.f32.gmra.mrb[0].mxu0 %v763
        %v1227 = vpop.f32.mrb[0].mxu0
        %v1228 = vadd.f32 %v1003, %v1227
        %v1229 = vpop.f32.mrb[0].mxu0
        %1230 = vmatprep.mubr.f32.mxu0 0.0
        %1231 = vmatmul.mubr.f32.gmra.mrb[0].mxu0 %v766
        %v1232 = vpop.f32.mrb[0].mxu0
        %v1233 = vadd.f32 %v1008, %v1232
        %v1234 = vpop.f32.mrb[0].mxu0
        %1235 = vmatprep.mubr.f32.mxu0 0.0
        %1236 = vmatmul.mubr.f32.gmra.mrb[0].mxu0 %v769
        %v1237 = vpop.f32.mrb[0].mxu0
        %v1238 = vadd.f32 %v1013, %v1237
        %v1239 = vpop.f32.mrb[0].mxu0
        %1240 = vmatprep.mubr.f32.mxu0 0.0
        %1241 = vmatmul.mubr.f32.gmra.mrb[0].mxu0 %v772
        %v1242 = vpop.f32.mrb[0].mxu0
        %v1243 = vadd.f32 %v1018, %v1242
        %v1244 = vpop.f32.mrb[0].mxu0
        %1245 = vmatprep.mubr.f32.mxu0 0.0
        %1246 = vmatmul.mubr.f32.gmra.mrb[0].mxu0 %v775
        %v1247 = vpop.f32.mrb[0].mxu0
        %v1248 = vadd.f32 %v1023, %v1247
        %v1249 = vpop.f32.mrb[0].mxu0
        %1250 = vmatprep.mubr.f32.mxu0 0.0
        %1251 = vmatmul.mubr.f32.gmra.mrb[0].mxu0 %v778
        %v1252 = vpop.f32.mrb[0].mxu0
        %v1253 = vadd.f32 %v1028, %v1252
        %v1254 = vpop.f32.mrb[0].mxu0
        %1255 = vmatprep.mubr.f32.mxu0 0.0
        %1256 = vmatmul.mubr.f32.gmra.mrb[0].mxu0 %v781
        %v1257 = vpop.f32.mrb[0].mxu0
        %v1258 = vadd.f32 %v1033, %v1257
        %v1259 = vpop.f32.mrb[0].mxu0
        %1260 = vmatprep.mubr.f32.mxu0 0.0
        %1261 = vmatmul.mubr.f32.gmra.mrb[0].mxu0 %v784
        %v1262 = vpop.f32.mrb[0].mxu0
        %v1263 = vadd.f32 %v1038, %v1262
        %v1264 = vpop.f32.mrb[0].mxu0
        %1265 = vmatprep.mubr.f32.mxu0 0.0
        %1266 = vmatmul.mubr.f32.gmra.mrb[0].mxu0 %v787
        %v1267 = vpop.f32.mrb[0].mxu0
        %v1268 = vadd.f32 %v1043, %v1267
        %v1269 = vpop.f32.mrb[0].mxu0
        %1270 = vmatprep.mubr.f32.mxu0 0.0
        %1271 = vmatmul.mubr.f32.gmra.mrb[0].mxu0 %v790
        %v1272 = vpop.f32.mrb[0].mxu0
        %v1273 = vadd.f32 %v1048, %v1272
        %v1274 = vpop.f32.mrb[0].mxu0
        %1275 = vmatprep.mubr.f32.mxu0 0.0
        %1276 = vmatmul.mubr.f32.gmra.mrb[0].mxu0 %v793
        %v1277 = vpop.f32.mrb[0].mxu0
        %v1278 = vadd.f32 %v1053, %v1277
        %v1279 = vpop.f32.mrb[0].mxu0
        %1280 = vmatprep.mubr.f32.mxu0 0.0
        %1281 = vmatmul.mubr.f32.gmra.mrb[0].mxu0 %v796
        %v1282 = vpop.f32.mrb[0].mxu0
        %v1283 = vadd.f32 %v1058, %v1282
        %v1284 = vpop.f32.mrb[0].mxu0
        %1285 = vmatprep.mubr.f32.mxu0 0.0
        %1286 = vmatmul.mubr.f32.gmra.mrb[0].mxu0 %v799
        %v1287 = vpop.f32.mrb[0].mxu0
        %v1288 = vadd.f32 %v1063, %v1287
        %v1289 = vpop.f32.mrb[0].mxu0
        %1290 = vmatprep.mubr.f32.mxu0 0.0
        %1291 = vmatmul.mubr.f32.gmra.mrb[0].mxu0 %v802
        %v1292 = vpop.f32.mrb[0].mxu0
        %v1293 = vadd.f32 %v1068, %v1292
        %v1294 = vpop.f32.mrb[0].mxu0
        %1295 = vmatprep.mubr.f32.mxu0 0.0
        %1296 = vmatmul.mubr.f32.gmra.mrb[0].mxu0 %v805
        %v1297 = vpop.f32.mrb[0].mxu0
        %v1298 = vadd.f32 %v1073, %v1297
        %v1299 = vpop.f32.mrb[0].mxu0
        %1300 = vmatprep.mubr.f32.mxu0 0.0
        %1301 = vmatmul.mubr.f32.gmra.mrb[0].mxu0 %v808
        %v1302 = vpop.f32.mrb[0].mxu0
        %v1303 = vadd.f32 %v1078, %v1302
        %v1304 = vpop.f32.mrb[0].mxu0
        %1305 = vmatprep.mubr.f32.mxu0 0.0
        %1306 = vmatmul.mubr.f32.gmra.mrb[0].mxu0 %v811
        %v1307 = vpop.f32.mrb[0].mxu0
        %v1308 = vadd.f32 %v1083, %v1307
        %v1309 = vpop.f32.mrb[0].mxu0
        %1310 = vdwg.mxu0
        %1311 = vmatprep.subr.mxu0 0.0
        %1312 = vmatpush1.msra.mxu0 %v667
        %1313 = vmatprep.subr.mxu0 0.0
        %1314 = vmatpush1.msra.mxu0 %v668
        %1315 = vmatprep.subr.mxu0 0.0
        %1316 = vmatpush1.msra.mxu0 %v669
        %1317 = vmatprep.subr.mxu0 0.0
        %1318 = vmatpush1.msra.mxu0 %v670
        %1319 = vmatprep.subr.mxu0 0.0
        %1320 = vmatpush1.msra.mxu0 %v671
        %1321 = vmatprep.subr.mxu0 0.0
        %1322 = vmatpush1.msra.mxu0 %v672
        %1323 = vmatprep.subr.mxu0 0.0
        %1324 = vmatpush1.msra.mxu0 %v673
        %1325 = vmatprep.subr.mxu0 0.0
        %1326 = vmatpush1.msra.mxu0 %v674
        %1327 = vmatprep.subr.mxu0 0.0
        %1328 = vmatpush1.msra.mxu0 %v675
        %1329 = vmatprep.subr.mxu0 0.0
        %1330 = vmatpush1.msra.mxu0 %v676
        %1331 = vmatprep.subr.mxu0 0.0
        %1332 = vmatpush1.msra.mxu0 %v677
        %1333 = vmatprep.subr.mxu0 0.0
        %1334 = vmatpush1.msra.mxu0 %v678
        %1335 = vmatprep.subr.mxu0 0.0
        %1336 = vmatpush1.msra.mxu0 %v679
        %1337 = vmatprep.subr.mxu0 0.0
        %1338 = vmatpush1.msra.mxu0 %v680
        %1339 = vmatprep.subr.mxu0 0.0
        %1340 = vmatpush1.msra.mxu0 %v681
        %1341 = vmatprep.subr.mxu0 0.0
        %1342 = vmatpush1.msra.mxu0 %v682
        %1343 = vmatprep.subr.mxu0 0.0
        %1344 = vmatpush1.msra.mxu0 %v683
        %1345 = vmatprep.subr.mxu0 0.0
        %1346 = vmatpush1.msra.mxu0 %v684
        %1347 = vmatprep.subr.mxu0 0.0
        %1348 = vmatpush1.msra.mxu0 %v685
        %1349 = vmatprep.subr.mxu0 0.0
        %1350 = vmatpush1.msra.mxu0 %v686
        %1351 = vmatprep.subr.mxu0 0.0
        %1352 = vmatpush1.msra.mxu0 %v687
        %1353 = vmatprep.subr.mxu0 0.0
        %1354 = vmatpush1.msra.mxu0 %v688
        %1355 = vmatprep.subr.mxu0 0.0
        %1356 = vmatpush1.msra.mxu0 %v689
        %1357 = vmatprep.subr.mxu0 0.0
        %1358 = vmatpush1.msra.mxu0 %v690
        %1359 = vmatprep.subr.mxu0 0.0
        %1360 = vmatpush1.msra.mxu0 %v691
        %1361 = vmatprep.subr.mxu0 0.0
        %1362 = vmatpush1.msra.mxu0 %v692
        %1363 = vmatprep.subr.mxu0 0.0
        %1364 = vmatpush1.msra.mxu0 %v693
        %1365 = vmatprep.subr.mxu0 0.0
        %1366 = vmatpush1.msra.mxu0 %v694
        %1367 = vmatprep.subr.mxu0 0.0
        %1368 = vmatpush1.msra.mxu0 %v695
        %1369 = vmatprep.subr.mxu0 0.0
        %1370 = vmatpush1.msra.mxu0 %v696
        %1371 = vmatprep.subr.mxu0 0.0
        %1372 = vmatpush1.msra.mxu0 %v697
        %1373 = vmatprep.subr.mxu0 0.0
        %1374 = vmatpush1.msra.mxu0 %v698
        %1375 = vmatprep.mubr.f32.mxu0 %v572
        %1376 = vmatmul.mubr.f32.gmra.mrb[0].mxu0 %v571
        %v1377 = vpop.f32.mrb[0].mxu0
        %v1378 = vadd.f32 %v1153, %v1377
        %v1379 = vpop.f32.mrb[0].mxu0
        %1380 = vmatprep.mubr.f32.mxu0 %v575
        %1381 = vmatmul.mubr.f32.gmra.mrb[0].mxu0 %v574
        %v1382 = vpop.f32.mrb[0].mxu0
        %v1383 = vadd.f32 %v1158, %v1382
        %v1384 = vpop.f32.mrb[0].mxu0
        %1385 = vmatprep.mubr.f32.mxu0 %v578
        %1386 = vmatmul.mubr.f32.gmra.mrb[0].mxu0 %v577
        %v1387 = vpop.f32.mrb[0].mxu0
        %v1388 = vadd.f32 %v1163, %v1387
        %v1389 = vpop.f32.mrb[0].mxu0
        %1390 = vmatprep.mubr.f32.mxu0 %v581
        %1391 = vmatmul.mubr.f32.gmra.mrb[0].mxu0 %v580
        %v1392 = vpop.f32.mrb[0].mxu0
        %v1393 = vadd.f32 %v1168, %v1392
        %v1394 = vpop.f32.mrb[0].mxu0
        %1395 = vmatprep.mubr.f32.mxu0 %v584
        %1396 = vmatmul.mubr.f32.gmra.mrb[0].mxu0 %v583
        %v1397 = vpop.f32.mrb[0].mxu0
        %v1398 = vadd.f32 %v1173, %v1397
        %v1399 = vpop.f32.mrb[0].mxu0
        %1400 = vmatprep.mubr.f32.mxu0 %v587
        %1401 = vmatmul.mubr.f32.gmra.mrb[0].mxu0 %v586
        %v1402 = vpop.f32.mrb[0].mxu0
        %v1403 = vadd.f32 %v1178, %v1402
        %v1404 = vpop.f32.mrb[0].mxu0
        %1405 = vmatprep.mubr.f32.mxu0 %v590
        %1406 = vmatmul.mubr.f32.gmra.mrb[0].mxu0 %v589
        %v1407 = vpop.f32.mrb[0].mxu0
        %v1408 = vadd.f32 %v1183, %v1407
        %v1409 = vpop.f32.mrb[0].mxu0
        %1410 = vmatprep.mubr.f32.mxu0 %v593
        %1411 = vmatmul.mubr.f32.gmra.mrb[0].mxu0 %v592
        %v1412 = vpop.f32.mrb[0].mxu0
        %v1413 = vadd.f32 %v1188, %v1412
        %v1414 = vpop.f32.mrb[0].mxu0
        %1415 = vmatprep.mubr.f32.mxu0 %v596
        %1416 = vmatmul.mubr.f32.gmra.mrb[0].mxu0 %v595
        %v1417 = vpop.f32.mrb[0].mxu0
        %v1418 = vadd.f32 %v1193, %v1417
        %v1419 = vpop.f32.mrb[0].mxu0
        %1420 = vmatprep.mubr.f32.mxu0 %v599
        %1421 = vmatmul.mubr.f32.gmra.mrb[0].mxu0 %v598
        %v1422 = vpop.f32.mrb[0].mxu0
        %v1423 = vadd.f32 %v1198, %v1422
        %v1424 = vpop.f32.mrb[0].mxu0
        %1425 = vmatprep.mubr.f32.mxu0 %v602
        %1426 = vmatmul.mubr.f32.gmra.mrb[0].mxu0 %v601
        %v1427 = vpop.f32.mrb[0].mxu0
        %v1428 = vadd.f32 %v1203, %v1427
        %v1429 = vpop.f32.mrb[0].mxu0
        %1430 = vmatprep.mubr.f32.mxu0 %v605
        %1431 = vmatmul.mubr.f32.gmra.mrb[0].mxu0 %v604
        %v1432 = vpop.f32.mrb[0].mxu0
        %v1433 = vadd.f32 %v1208, %v1432
        %v1434 = vpop.f32.mrb[0].mxu0
        %1435 = vmatprep.mubr.f32.mxu0 %v608
        %1436 = vmatmul.mubr.f32.gmra.mrb[0].mxu0 %v607
        %v1437 = vpop.f32.mrb[0].mxu0
        %v1438 = vadd.f32 %v1213, %v1437
        %v1439 = vpop.f32.mrb[0].mxu0
        %1440 = vmatprep.mubr.f32.mxu0 %v611
        %1441 = vmatmul.mubr.f32.gmra.mrb[0].mxu0 %v610
        %v1442 = vpop.f32.mrb[0].mxu0
        %v1443 = vadd.f32 %v1218, %v1442
        %v1444 = vpop.f32.mrb[0].mxu0
        %1445 = vmatprep.mubr.f32.mxu0 %v614
        %1446 = vmatmul.mubr.f32.gmra.mrb[0].mxu0 %v613
        %v1447 = vpop.f32.mrb[0].mxu0
        %v1448 = vadd.f32 %v1223, %v1447
        %v1449 = vpop.f32.mrb[0].mxu0
        %1450 = vmatprep.mubr.f32.mxu0 %v617
        %1451 = vmatmul.mubr.f32.gmra.mrb[0].mxu0 %v616
        %v1452 = vpop.f32.mrb[0].mxu0
        %v1453 = vadd.f32 %v1228, %v1452
        %v1454 = vpop.f32.mrb[0].mxu0
        %1455 = vmatprep.mubr.f32.mxu0 %v620
        %1456 = vmatmul.mubr.f32.gmra.mrb[0].mxu0 %v619
        %v1457 = vpop.f32.mrb[0].mxu0
        %v1458 = vadd.f32 %v1233, %v1457
        %v1459 = vpop.f32.mrb[0].mxu0
        %1460 = vmatprep.mubr.f32.mxu0 %v623
        %1461 = vmatmul.mubr.f32.gmra.mrb[0].mxu0 %v622
        %v1462 = vpop.f32.mrb[0].mxu0
        %v1463 = vadd.f32 %v1238, %v1462
        %v1464 = vpop.f32.mrb[0].mxu0
        %1465 = vmatprep.mubr.f32.mxu0 %v626
        %1466 = vmatmul.mubr.f32.gmra.mrb[0].mxu0 %v625
        %v1467 = vpop.f32.mrb[0].mxu0
        %v1468 = vadd.f32 %v1243, %v1467
        %v1469 = vpop.f32.mrb[0].mxu0
        %1470 = vmatprep.mubr.f32.mxu0 %v629
        %1471 = vmatmul.mubr.f32.gmra.mrb[0].mxu0 %v628
        %v1472 = vpop.f32.mrb[0].mxu0
        %v1473 = vadd.f32 %v1248, %v1472
        %v1474 = vpop.f32.mrb[0].mxu0
        %1475 = vmatprep.mubr.f32.mxu0 %v632
        %1476 = vmatmul.mubr.f32.gmra.mrb[0].mxu0 %v631
        %v1477 = vpop.f32.mrb[0].mxu0
        %v1478 = vadd.f32 %v1253, %v1477
        %v1479 = vpop.f32.mrb[0].mxu0
        %1480 = vmatprep.mubr.f32.mxu0 %v635
        %1481 = vmatmul.mubr.f32.gmra.mrb[0].mxu0 %v634
        %v1482 = vpop.f32.mrb[0].mxu0
        %v1483 = vadd.f32 %v1258, %v1482
        %v1484 = vpop.f32.mrb[0].mxu0
        %1485 = vmatprep.mubr.f32.mxu0 %v638
        %1486 = vmatmul.mubr.f32.gmra.mrb[0].mxu0 %v637
        %v1487 = vpop.f32.mrb[0].mxu0
        %v1488 = vadd.f32 %v1263, %v1487
        %v1489 = vpop.f32.mrb[0].mxu0
        %1490 = vmatprep.mubr.f32.mxu0 %v641
        %1491 = vmatmul.mubr.f32.gmra.mrb[0].mxu0 %v640
        %v1492 = vpop.f32.mrb[0].mxu0
        %v1493 = vadd.f32 %v1268, %v1492
        %v1494 = vpop.f32.mrb[0].mxu0
        %1495 = vmatprep.mubr.f32.mxu0 %v644
        %1496 = vmatmul.mubr.f32.gmra.mrb[0].mxu0 %v643
        %v1497 = vpop.f32.mrb[0].mxu0
        %v1498 = vadd.f32 %v1273, %v1497
        %v1499 = vpop.f32.mrb[0].mxu0
        %1500 = vmatprep.mubr.f32.mxu0 %v647
        %1501 = vmatmul.mubr.f32.gmra.mrb[0].mxu0 %v646
        %v1502 = vpop.f32.mrb[0].mxu0
        %v1503 = vadd.f32 %v1278, %v1502
        %v1504 = vpop.f32.mrb[0].mxu0
        %1505 = vmatprep.mubr.f32.mxu0 %v650
        %1506 = vmatmul.mubr.f32.gmra.mrb[0].mxu0 %v649
        %v1507 = vpop.f32.mrb[0].mxu0
        %v1508 = vadd.f32 %v1283, %v1507
        %v1509 = vpop.f32.mrb[0].mxu0
        %1510 = vmatprep.mubr.f32.mxu0 %v653
        %1511 = vmatmul.mubr.f32.gmra.mrb[0].mxu0 %v652
        %v1512 = vpop.f32.mrb[0].mxu0
        %v1513 = vadd.f32 %v1288, %v1512
        %v1514 = vpop.f32.mrb[0].mxu0
        %1515 = vmatprep.mubr.f32.mxu0 %v656
        %1516 = vmatmul.mubr.f32.gmra.mrb[0].mxu0 %v655
        %v1517 = vpop.f32.mrb[0].mxu0
        %v1518 = vadd.f32 %v1293, %v1517
        %v1519 = vpop.f32.mrb[0].mxu0
        %1520 = vmatprep.mubr.f32.mxu0 %v659
        %1521 = vmatmul.mubr.f32.gmra.mrb[0].mxu0 %v658
        %v1522 = vpop.f32.mrb[0].mxu0
        %v1523 = vadd.f32 %v1298, %v1522
        %v1524 = vpop.f32.mrb[0].mxu0
        %1525 = vmatprep.mubr.f32.mxu0 %v662
        %1526 = vmatmul.mubr.f32.gmra.mrb[0].mxu0 %v661
        %v1527 = vpop.f32.mrb[0].mxu0
        %v1528 = vadd.f32 %v1303, %v1527
        %v1529 = vpop.f32.mrb[0].mxu0
        %1530 = vmatprep.mubr.f32.mxu0 %v665
        %1531 = vmatmul.mubr.f32.gmra.mrb[0].mxu0 %v664
        %v1532 = vpop.f32.mrb[0].mxu0
        %v1533 = vadd.f32 %v1308, %v1532
        %v1534 = vpop.f32.mrb[0].mxu0
        %1535 = vdwg.mxu0
        %1536 = vmatprep.subr.mxu0 0.0
        %1537 = vmatpush1.msra.mxu0 %v699
        %1538 = vmatprep.subr.mxu0 0.0
        %1539 = vmatpush1.msra.mxu0 %v700
        %1540 = vmatprep.subr.mxu0 0.0
        %1541 = vmatpush1.msra.mxu0 %v701
        %1542 = vmatprep.subr.mxu0 0.0
        %1543 = vmatpush1.msra.mxu0 %v702
        %1544 = vmatprep.subr.mxu0 0.0
        %1545 = vmatpush1.msra.mxu0 %v703
        %1546 = vmatprep.subr.mxu0 0.0
        %1547 = vmatpush1.msra.mxu0 %v704
        %1548 = vmatprep.subr.mxu0 0.0
        %1549 = vmatpush1.msra.mxu0 %v705
        %1550 = vmatprep.subr.mxu0 0.0
        %1551 = vmatpush1.msra.mxu0 %v706
        %1552 = vmatprep.subr.mxu0 0.0
        %1553 = vmatpush1.msra.mxu0 %v707
        %1554 = vmatprep.subr.mxu0 0.0
        %1555 = vmatpush1.msra.mxu0 %v708
        %1556 = vmatprep.subr.mxu0 0.0
        %1557 = vmatpush1.msra.mxu0 %v709
        %1558 = vmatprep.subr.mxu0 0.0
        %1559 = vmatpush1.msra.mxu0 %v710
        %1560 = vmatprep.subr.mxu0 0.0
        %1561 = vmatpush1.msra.mxu0 %v711
        %1562 = vmatprep.subr.mxu0 0.0
        %1563 = vmatpush1.msra.mxu0 %v712
        %1564 = vmatprep.subr.mxu0 0.0
        %1565 = vmatpush1.msra.mxu0 %v713
        %1566 = vmatprep.subr.mxu0 0.0
        %1567 = vmatpush1.msra.mxu0 %v714
        %1568 = vmatprep.subr.mxu0 0.0
        %1569 = vmatpush1.msra.mxu0 0.0
        %1570 = vmatprep.subr.mxu0 0.0
        %1571 = vmatpush1.msra.mxu0 0.0
        %1572 = vmatprep.subr.mxu0 0.0
        %1573 = vmatpush1.msra.mxu0 0.0
        %1574 = vmatprep.subr.mxu0 0.0
        %1575 = vmatpush1.msra.mxu0 0.0
        %1576 = vmatprep.subr.mxu0 0.0
        %1577 = vmatpush1.msra.mxu0 0.0
        %1578 = vmatprep.subr.mxu0 0.0
        %1579 = vmatpush1.msra.mxu0 0.0
        %1580 = vmatprep.subr.mxu0 0.0
        %1581 = vmatpush1.msra.mxu0 0.0
        %1582 = vmatprep.subr.mxu0 0.0
        %1583 = vmatpush1.msra.mxu0 0.0
        %1584 = vmatprep.subr.mxu0 0.0
        %1585 = vmatpush1.msra.mxu0 0.0
        %1586 = vmatprep.subr.mxu0 0.0
        %1587 = vmatpush1.msra.mxu0 0.0
        %1588 = vmatprep.subr.mxu0 0.0
        %1589 = vmatpush1.msra.mxu0 0.0
        %1590 = vmatprep.subr.mxu0 0.0
        %1591 = vmatpush1.msra.mxu0 0.0
        %1592 = vmatprep.subr.mxu0 0.0
        %1593 = vmatpush1.msra.mxu0 0.0
        %1594 = vmatprep.subr.mxu0 0.0
        %1595 = vmatpush1.msra.mxu0 0.0
        %1596 = vmatprep.subr.mxu0 0.0
        %1597 = vmatpush1.msra.mxu0 0.0
        %1598 = vmatprep.subr.mxu0 0.0
        %1599 = vmatpush1.msra.mxu0 0.0
        %1600 = vmatprep.mubr.f32.mxu0 0.0
        %1601 = vmatmul.mubr.f32.gmra.mrb[0].mxu0 %v573
        %v1602 = vpop.f32.mrb[0].mxu0
        %v1603 = vadd.f32 %v1378, %v1602
        %v1604 = vpop.f32.mrb[0].mxu0
        %1605 = vmatprep.mubr.f32.mxu0 0.0
        %1606 = vmatmul.mubr.f32.gmra.mrb[0].mxu0 %v576
        %v1607 = vpop.f32.mrb[0].mxu0
        %v1608 = vadd.f32 %v1383, %v1607
        %v1609 = vpop.f32.mrb[0].mxu0
        %1610 = vmatprep.mubr.f32.mxu0 0.0
        %1611 = vmatmul.mubr.f32.gmra.mrb[0].mxu0 %v579
        %v1612 = vpop.f32.mrb[0].mxu0
        %v1613 = vadd.f32 %v1388, %v1612
        %v1614 = vpop.f32.mrb[0].mxu0
        %1615 = vmatprep.mubr.f32.mxu0 0.0
        %1616 = vmatmul.mubr.f32.gmra.mrb[0].mxu0 %v582
        %v1617 = vpop.f32.mrb[0].mxu0
        %v1618 = vadd.f32 %v1393, %v1617
        %v1619 = vpop.f32.mrb[0].mxu0
        %1620 = vmatprep.mubr.f32.mxu0 0.0
        %1621 = vmatmul.mubr.f32.gmra.mrb[0].mxu0 %v585
        %v1622 = vpop.f32.mrb[0].mxu0
        %v1623 = vadd.f32 %v1398, %v1622
        %v1624 = vpop.f32.mrb[0].mxu0
        %1625 = vmatprep.mubr.f32.mxu0 0.0
        %1626 = vmatmul.mubr.f32.gmra.mrb[0].mxu0 %v588
        %v1627 = vpop.f32.mrb[0].mxu0
        %v1628 = vadd.f32 %v1403, %v1627
        %v1629 = vpop.f32.mrb[0].mxu0
        %1630 = vmatprep.mubr.f32.mxu0 0.0
        %1631 = vmatmul.mubr.f32.gmra.mrb[0].mxu0 %v591
        %v1632 = vpop.f32.mrb[0].mxu0
        %v1633 = vadd.f32 %v1408, %v1632
        %v1634 = vpop.f32.mrb[0].mxu0
        %1635 = vmatprep.mubr.f32.mxu0 0.0
        %1636 = vmatmul.mubr.f32.gmra.mrb[0].mxu0 %v594
        %v1637 = vpop.f32.mrb[0].mxu0
        %v1638 = vadd.f32 %v1413, %v1637
        %v1639 = vpop.f32.mrb[0].mxu0
        %1640 = vmatprep.mubr.f32.mxu0 0.0
        %1641 = vmatmul.mubr.f32.gmra.mrb[0].mxu0 %v597
        %v1642 = vpop.f32.mrb[0].mxu0
        %v1643 = vadd.f32 %v1418, %v1642
        %v1644 = vpop.f32.mrb[0].mxu0
        %1645 = vmatprep.mubr.f32.mxu0 0.0
        %1646 = vmatmul.mubr.f32.gmra.mrb[0].mxu0 %v600
        %v1647 = vpop.f32.mrb[0].mxu0
        %v1648 = vadd.f32 %v1423, %v1647
        %v1649 = vpop.f32.mrb[0].mxu0
        %1650 = vmatprep.mubr.f32.mxu0 0.0
        %1651 = vmatmul.mubr.f32.gmra.mrb[0].mxu0 %v603
        %v1652 = vpop.f32.mrb[0].mxu0
        %v1653 = vadd.f32 %v1428, %v1652
        %v1654 = vpop.f32.mrb[0].mxu0
        %1655 = vmatprep.mubr.f32.mxu0 0.0
        %1656 = vmatmul.mubr.f32.gmra.mrb[0].mxu0 %v606
        %v1657 = vpop.f32.mrb[0].mxu0
        %v1658 = vadd.f32 %v1433, %v1657
        %v1659 = vpop.f32.mrb[0].mxu0
        %1660 = vmatprep.mubr.f32.mxu0 0.0
        %1661 = vmatmul.mubr.f32.gmra.mrb[0].mxu0 %v609
        %v1662 = vpop.f32.mrb[0].mxu0
        %v1663 = vadd.f32 %v1438, %v1662
        %v1664 = vpop.f32.mrb[0].mxu0
        %1665 = vmatprep.mubr.f32.mxu0 0.0
        %1666 = vmatmul.mubr.f32.gmra.mrb[0].mxu0 %v612
        %v1667 = vpop.f32.mrb[0].mxu0
        %v1668 = vadd.f32 %v1443, %v1667
        %v1669 = vpop.f32.mrb[0].mxu0
        %1670 = vmatprep.mubr.f32.mxu0 0.0
        %1671 = vmatmul.mubr.f32.gmra.mrb[0].mxu0 %v615
        %v1672 = vpop.f32.mrb[0].mxu0
        %v1673 = vadd.f32 %v1448, %v1672
        %v1674 = vpop.f32.mrb[0].mxu0
        %1675 = vmatprep.mubr.f32.mxu0 0.0
        %1676 = vmatmul.mubr.f32.gmra.mrb[0].mxu0 %v618
        %v1677 = vpop.f32.mrb[0].mxu0
        %v1678 = vadd.f32 %v1453, %v1677
        %v1679 = vpop.f32.mrb[0].mxu0
        %1680 = vmatprep.mubr.f32.mxu0 0.0
        %1681 = vmatmul.mubr.f32.gmra.mrb[0].mxu0 %v621
        %v1682 = vpop.f32.mrb[0].mxu0
        %v1683 = vadd.f32 %v1458, %v1682
        %v1684 = vpop.f32.mrb[0].mxu0
        %1685 = vmatprep.mubr.f32.mxu0 0.0
        %1686 = vmatmul.mubr.f32.gmra.mrb[0].mxu0 %v624
        %v1687 = vpop.f32.mrb[0].mxu0
        %v1688 = vadd.f32 %v1463, %v1687
        %v1689 = vpop.f32.mrb[0].mxu0
        %1690 = vmatprep.mubr.f32.mxu0 0.0
        %1691 = vmatmul.mubr.f32.gmra.mrb[0].mxu0 %v627
        %v1692 = vpop.f32.mrb[0].mxu0
        %v1693 = vadd.f32 %v1468, %v1692
        %v1694 = vpop.f32.mrb[0].mxu0
        %1695 = vmatprep.mubr.f32.mxu0 0.0
        %1696 = vmatmul.mubr.f32.gmra.mrb[0].mxu0 %v630
        %v1697 = vpop.f32.mrb[0].mxu0
        %v1698 = vadd.f32 %v1473, %v1697
        %v1699 = vpop.f32.mrb[0].mxu0
        %1700 = vmatprep.mubr.f32.mxu0 0.0
        %1701 = vmatmul.mubr.f32.gmra.mrb[0].mxu0 %v633
        %v1702 = vpop.f32.mrb[0].mxu0
        %v1703 = vadd.f32 %v1478, %v1702
        %v1704 = vpop.f32.mrb[0].mxu0
        %1705 = vmatprep.mubr.f32.mxu0 0.0
        %1706 = vmatmul.mubr.f32.gmra.mrb[0].mxu0 %v636
        %v1707 = vpop.f32.mrb[0].mxu0
        %v1708 = vadd.f32 %v1483, %v1707
        %v1709 = vpop.f32.mrb[0].mxu0
        %1710 = vmatprep.mubr.f32.mxu0 0.0
        %1711 = vmatmul.mubr.f32.gmra.mrb[0].mxu0 %v639
        %v1712 = vpop.f32.mrb[0].mxu0
        %v1713 = vadd.f32 %v1488, %v1712
        %v1714 = vpop.f32.mrb[0].mxu0
        %1715 = vmatprep.mubr.f32.mxu0 0.0
        %1716 = vmatmul.mubr.f32.gmra.mrb[0].mxu0 %v642
        %v1717 = vpop.f32.mrb[0].mxu0
        %v1718 = vadd.f32 %v1493, %v1717
        %v1719 = vpop.f32.mrb[0].mxu0
        %1720 = vmatprep.mubr.f32.mxu0 0.0
        %1721 = vmatmul.mubr.f32.gmra.mrb[0].mxu0 %v645
        %v1722 = vpop.f32.mrb[0].mxu0
        %v1723 = vadd.f32 %v1498, %v1722
        %v1724 = vpop.f32.mrb[0].mxu0
        %1725 = vmatprep.mubr.f32.mxu0 0.0
        %1726 = vmatmul.mubr.f32.gmra.mrb[0].mxu0 %v648
        %v1727 = vpop.f32.mrb[0].mxu0
        %v1728 = vadd.f32 %v1503, %v1727
        %v1729 = vpop.f32.mrb[0].mxu0
        %1730 = vmatprep.mubr.f32.mxu0 0.0
        %1731 = vmatmul.mubr.f32.gmra.mrb[0].mxu0 %v651
        %v1732 = vpop.f32.mrb[0].mxu0
        %v1733 = vadd.f32 %v1508, %v1732
        %v1734 = vpop.f32.mrb[0].mxu0
        %1735 = vmatprep.mubr.f32.mxu0 0.0
        %1736 = vmatmul.mubr.f32.gmra.mrb[0].mxu0 %v654
        %v1737 = vpop.f32.mrb[0].mxu0
        %v1738 = vadd.f32 %v1513, %v1737
        %v1739 = vpop.f32.mrb[0].mxu0
        %1740 = vmatprep.mubr.f32.mxu0 0.0
        %1741 = vmatmul.mubr.f32.gmra.mrb[0].mxu0 %v657
        %v1742 = vpop.f32.mrb[0].mxu0
        %v1743 = vadd.f32 %v1518, %v1742
        %v1744 = vpop.f32.mrb[0].mxu0
        %1745 = vmatprep.mubr.f32.mxu0 0.0
        %1746 = vmatmul.mubr.f32.gmra.mrb[0].mxu0 %v660
        %v1747 = vpop.f32.mrb[0].mxu0
        %v1748 = vadd.f32 %v1523, %v1747
        %v1749 = vpop.f32.mrb[0].mxu0
        %1750 = vmatprep.mubr.f32.mxu0 0.0
        %1751 = vmatmul.mubr.f32.gmra.mrb[0].mxu0 %v663
        %v1752 = vpop.f32.mrb[0].mxu0
        %v1753 = vadd.f32 %v1528, %v1752
        %v1754 = vpop.f32.mrb[0].mxu0
        %1755 = vmatprep.mubr.f32.mxu0 0.0
        %1756 = vmatmul.mubr.f32.gmra.mrb[0].mxu0 %v666
        %v1757 = vpop.f32.mrb[0].mxu0
        %v1758 = vadd.f32 %v1533, %v1757
        %v1759 = vpop.f32.mrb[0].mxu0
        %1760 = vdwg.mxu0
        %s1761 = scalar_lea.vmem [#allocation2], 96
        %v1762 = vld [vmem:[%s1761] sm:$0xff]
        %v1763 = vld [vmem:[%s1761 + $0x8] sm:$0xff]
        %v1764 = vld [vmem:[%s1761 + $0x10] sm:$0xff]
        %v1765 = vld [vmem:[%s1761 + $0x18] sm:$0xff]
        %v1766 = vld [vmem:[%s1761 + $0x20] sm:$0xff]
        %v1767 = vld [vmem:[%s1761 + $0x28] sm:$0xff]
        %v1768 = vld [vmem:[%s1761 + $0x30] sm:$0xff]
        %v1769 = vld [vmem:[%s1761 + $0x38] sm:$0xff]
        %v1770 = vld [vmem:[%s1761 + $0x40] sm:$0xff]
        %v1771 = vld [vmem:[%s1761 + $0x48] sm:$0xff]
        %v1772 = vld [vmem:[%s1761 + $0x50] sm:$0xff]
        %v1773 = vld [vmem:[%s1761 + $0x58] sm:$0xff]
        %v1774 = vld [vmem:[%s1761 + $0x60] sm:$0xff]
        %v1775 = vld [vmem:[%s1761 + $0x68] sm:$0xff]
        %v1776 = vld [vmem:[%s1761 + $0x70] sm:$0xff]
        %v1777 = vld [vmem:[%s1761 + $0x78] sm:$0xff]
        %v1778 = vld [vmem:[%s1761 + $0x80] sm:$0xff]
        %v1779 = vld [vmem:[%s1761 + $0x88] sm:$0xff]
        %v1780 = vld [vmem:[%s1761 + $0x90] sm:$0xff]
        %v1781 = vld [vmem:[%s1761 + $0x98] sm:$0xff]
        %v1782 = vld [vmem:[%s1761 + $0xa0] sm:$0xff]
        %v1783 = vld [vmem:[%s1761 + $0xa8] sm:$0xff]
        %v1784 = vld [vmem:[%s1761 + $0xb0] sm:$0xff]
        %v1785 = vld [vmem:[%s1761 + $0xb8] sm:$0xff]
        %v1786 = vld [vmem:[%s1761 + $0xc0] sm:$0xff]
        %v1787 = vld [vmem:[%s1761 + $0xc8] sm:$0xff]
        %v1788 = vld [vmem:[%s1761 + $0xd0] sm:$0xff]
        %v1789 = vld [vmem:[%s1761 + $0xd8] sm:$0xff]
        %v1790 = vld [vmem:[%s1761 + $0xe0] sm:$0xff]
        %v1791 = vld [vmem:[%s1761 + $0xe8] sm:$0xff]
        %v1792 = vld [vmem:[%s1761 + $0xf0] sm:$0xff]
        %v1793 = vld [vmem:[%s1761 + $0xf8] sm:$0xff]
        %v1794 = vld [vmem:[%s1761 + $0x100] sm:$0xff]
        %v1795 = vld [vmem:[%s1761 + $0x108] sm:$0xff]
        %v1796 = vld [vmem:[%s1761 + $0x110] sm:$0xff]
        %v1797 = vld [vmem:[%s1761 + $0x118] sm:$0xff]
        %v1798 = vld [vmem:[%s1761 + $0x120] sm:$0xff]
        %v1799 = vld [vmem:[%s1761 + $0x128] sm:$0xff]
        %v1800 = vld [vmem:[%s1761 + $0x130] sm:$0xff]
        %v1801 = vld [vmem:[%s1761 + $0x138] sm:$0xff]
        %v1802 = vld [vmem:[%s1761 + $0x140] sm:$0xff]
        %v1803 = vld [vmem:[%s1761 + $0x148] sm:$0xff]
        %v1804 = vld [vmem:[%s1761 + $0x150] sm:$0xff]
        %v1805 = vld [vmem:[%s1761 + $0x158] sm:$0xff]
        %v1806 = vld [vmem:[%s1761 + $0x160] sm:$0xff]
        %v1807 = vld [vmem:[%s1761 + $0x168] sm:$0xff]
        %v1808 = vld [vmem:[%s1761 + $0x170] sm:$0xff]
        %v1809 = vld [vmem:[%s1761 + $0x178] sm:$0xff]
        %v1810 = vld [vmem:[%s1761 + $0x180] sm:$0xff]
        %v1811 = vld [vmem:[%s1761 + $0x188] sm:$0xff]
        %v1812 = vld [vmem:[%s1761 + $0x190] sm:$0xff]
        %v1813 = vld [vmem:[%s1761 + $0x198] sm:$0xff]
        %v1814 = vld [vmem:[%s1761 + $0x1a0] sm:$0xff]
        %v1815 = vld [vmem:[%s1761 + $0x1a8] sm:$0xff]
        %v1816 = vld [vmem:[%s1761 + $0x1b0] sm:$0xff]
        %v1817 = vld [vmem:[%s1761 + $0x1b8] sm:$0xff]
        %v1818 = vld [vmem:[%s1761 + $0x1c0] sm:$0xff]
        %v1819 = vld [vmem:[%s1761 + $0x1c8] sm:$0xff]
        %v1820 = vld [vmem:[%s1761 + $0x1d0] sm:$0xff]
        %v1821 = vld [vmem:[%s1761 + $0x1d8] sm:$0xff]
        %v1822 = vld [vmem:[%s1761 + $0x1e0] sm:$0xff]
        %v1823 = vld [vmem:[%s1761 + $0x1e8] sm:$0xff]
        %v1824 = vld [vmem:[%s1761 + $0x1f0] sm:$0xff]
        %v1825 = vld [vmem:[%s1761 + $0x1f8] sm:$0xff]
        %v1826 = vld [vmem:[%s1761 + $0x200] sm:$0xff]
        %v1827 = vld [vmem:[%s1761 + $0x208] sm:$0xff]
        %v1828 = vld [vmem:[%s1761 + $0x210] sm:$0xff]
        %v1829 = vld [vmem:[%s1761 + $0x218] sm:$0xff]
        %v1830 = vld [vmem:[%s1761 + $0x220] sm:$0xff]
        %v1831 = vld [vmem:[%s1761 + $0x228] sm:$0xff]
        %v1832 = vld [vmem:[%s1761 + $0x230] sm:$0xff]
        %v1833 = vld [vmem:[%s1761 + $0x238] sm:$0xff]
        %v1834 = vld [vmem:[%s1761 + $0x240] sm:$0xff]
        %v1835 = vld [vmem:[%s1761 + $0x248] sm:$0xff]
        %v1836 = vld [vmem:[%s1761 + $0x250] sm:$0xff]
        %v1837 = vld [vmem:[%s1761 + $0x258] sm:$0xff]
        %v1838 = vld [vmem:[%s1761 + $0x260] sm:$0xff]
        %v1839 = vld [vmem:[%s1761 + $0x268] sm:$0xff]
        %v1840 = vld [vmem:[%s1761 + $0x270] sm:$0xff]
        %v1841 = vld [vmem:[%s1761 + $0x278] sm:$0xff]
        %v1842 = vld [vmem:[%s1761 + $0x280] sm:$0xff]
        %v1843 = vld [vmem:[%s1761 + $0x288] sm:$0xff]
        %v1844 = vld [vmem:[%s1761 + $0x290] sm:$0xff]
        %v1845 = vld [vmem:[%s1761 + $0x298] sm:$0xff]
        %v1846 = vld [vmem:[%s1761 + $0x2a0] sm:$0xff]
        %v1847 = vld [vmem:[%s1761 + $0x2a8] sm:$0xff]
        %v1848 = vld [vmem:[%s1761 + $0x2b0] sm:$0xff]
        %v1849 = vld [vmem:[%s1761 + $0x2b8] sm:$0xff]
        %v1850 = vld [vmem:[%s1761 + $0x2c0] sm:$0xff]
        %v1851 = vld [vmem:[%s1761 + $0x2c8] sm:$0xff]
        %v1852 = vld [vmem:[%s1761 + $0x2d0] sm:$0xff]
        %v1853 = vld [vmem:[%s1761 + $0x2d8] sm:$0xff]
        %v1854 = vld [vmem:[%s1761 + $0x2e0] sm:$0xff]
        %v1855 = vld [vmem:[%s1761 + $0x2e8] sm:$0xff]
        %v1856 = vld [vmem:[%s1761 + $0x2f0] sm:$0xff]
        %v1857 = vld [vmem:[%s1761 + $0x2f8] sm:$0xff]
        %s1858 = scalar_lea.vmem [#allocation8], 768
        %v1859 = vld [vmem:[%s1858] sm:$0xff]
        %v1860 = vld [vmem:[%s1858 + $0x8] sm:$0xff]
        %v1861 = vld [vmem:[%s1858 + $0x10] sm:$0xff]
        %v1862 = vld [vmem:[%s1858 + $0x18] sm:$0xff]
        %v1863 = vld [vmem:[%s1858 + $0x20] sm:$0xff]
        %v1864 = vld [vmem:[%s1858 + $0x28] sm:$0xff]
        %v1865 = vld [vmem:[%s1858 + $0x30] sm:$0xff]
        %v1866 = vld [vmem:[%s1858 + $0x38] sm:$0xff]
        %v1867 = vld [vmem:[%s1858 + $0x40] sm:$0xff]
        %v1868 = vld [vmem:[%s1858 + $0x48] sm:$0xff]
        %v1869 = vld [vmem:[%s1858 + $0x50] sm:$0xff]
        %v1870 = vld [vmem:[%s1858 + $0x58] sm:$0xff]
        %v1871 = vld [vmem:[%s1858 + $0x60] sm:$0xff]
        %v1872 = vld [vmem:[%s1858 + $0x68] sm:$0xff]
        %v1873 = vld [vmem:[%s1858 + $0x70] sm:$0xff]
        %v1874 = vld [vmem:[%s1858 + $0x78] sm:$0xff]
        %v1875 = vld [vmem:[%s1858 + $0x80] sm:$0xff]
        %v1876 = vld [vmem:[%s1858 + $0x88] sm:$0xff]
        %v1877 = vld [vmem:[%s1858 + $0x90] sm:$0xff]
        %v1878 = vld [vmem:[%s1858 + $0x98] sm:$0xff]
        %v1879 = vld [vmem:[%s1858 + $0xa0] sm:$0xff]
        %v1880 = vld [vmem:[%s1858 + $0xa8] sm:$0xff]
        %v1881 = vld [vmem:[%s1858 + $0xb0] sm:$0xff]
        %v1882 = vld [vmem:[%s1858 + $0xb8] sm:$0xff]
        %v1883 = vld [vmem:[%s1858 + $0xc0] sm:$0xff]
        %v1884 = vld [vmem:[%s1858 + $0xc8] sm:$0xff]
        %v1885 = vld [vmem:[%s1858 + $0xd0] sm:$0xff]
        %v1886 = vld [vmem:[%s1858 + $0xd8] sm:$0xff]
        %v1887 = vld [vmem:[%s1858 + $0xe0] sm:$0xff]
        %v1888 = vld [vmem:[%s1858 + $0xe8] sm:$0xff]
        %v1889 = vld [vmem:[%s1858 + $0xf0] sm:$0xff]
        %v1890 = vld [vmem:[%s1858 + $0xf8] sm:$0xff]
        %v1891 = vld [vmem:[%s1858 + $0x100] sm:$0xff]
        %v1892 = vld [vmem:[%s1858 + $0x108] sm:$0xff]
        %v1893 = vld [vmem:[%s1858 + $0x110] sm:$0xff]
        %v1894 = vld [vmem:[%s1858 + $0x118] sm:$0xff]
        %v1895 = vld [vmem:[%s1858 + $0x120] sm:$0xff]
        %v1896 = vld [vmem:[%s1858 + $0x128] sm:$0xff]
        %v1897 = vld [vmem:[%s1858 + $0x130] sm:$0xff]
        %v1898 = vld [vmem:[%s1858 + $0x138] sm:$0xff]
        %v1899 = vld [vmem:[%s1858 + $0x140] sm:$0xff]
        %v1900 = vld [vmem:[%s1858 + $0x148] sm:$0xff]
        %v1901 = vld [vmem:[%s1858 + $0x150] sm:$0xff]
        %v1902 = vld [vmem:[%s1858 + $0x158] sm:$0xff]
        %v1903 = vld [vmem:[%s1858 + $0x160] sm:$0xff]
        %v1904 = vld [vmem:[%s1858 + $0x168] sm:$0xff]
        %v1905 = vld [vmem:[%s1858 + $0x170] sm:$0xff]
        %v1906 = vld [vmem:[%s1858 + $0x178] sm:$0xff]
        %1907 = vmatprep.subr.mxu0 0.0
        %1908 = vmatpush1.msra.mxu0 %v1859
        %1909 = vmatprep.subr.mxu0 0.0
        %1910 = vmatpush1.msra.mxu0 %v1860
        %1911 = vmatprep.subr.mxu0 0.0
        %1912 = vmatpush1.msra.mxu0 %v1861
        %1913 = vmatprep.subr.mxu0 0.0
        %1914 = vmatpush1.msra.mxu0 %v1862
        %1915 = vmatprep.subr.mxu0 0.0
        %1916 = vmatpush1.msra.mxu0 %v1863
        %1917 = vmatprep.subr.mxu0 0.0
        %1918 = vmatpush1.msra.mxu0 %v1864
        %1919 = vmatprep.subr.mxu0 0.0
        %1920 = vmatpush1.msra.mxu0 %v1865
        %1921 = vmatprep.subr.mxu0 0.0
        %1922 = vmatpush1.msra.mxu0 %v1866
        %1923 = vmatprep.subr.mxu0 0.0
        %1924 = vmatpush1.msra.mxu0 %v1867
        %1925 = vmatprep.subr.mxu0 0.0
        %1926 = vmatpush1.msra.mxu0 %v1868
        %1927 = vmatprep.subr.mxu0 0.0
        %1928 = vmatpush1.msra.mxu0 %v1869
        %1929 = vmatprep.subr.mxu0 0.0
        %1930 = vmatpush1.msra.mxu0 %v1870
        %1931 = vmatprep.subr.mxu0 0.0
        %1932 = vmatpush1.msra.mxu0 %v1871
        %1933 = vmatprep.subr.mxu0 0.0
        %1934 = vmatpush1.msra.mxu0 %v1872
        %1935 = vmatprep.subr.mxu0 0.0
        %1936 = vmatpush1.msra.mxu0 %v1873
        %1937 = vmatprep.subr.mxu0 0.0
        %1938 = vmatpush1.msra.mxu0 %v1874
        %1939 = vmatprep.subr.mxu0 0.0
        %1940 = vmatpush1.msra.mxu0 %v1875
        %1941 = vmatprep.subr.mxu0 0.0
        %1942 = vmatpush1.msra.mxu0 %v1876
        %1943 = vmatprep.subr.mxu0 0.0
        %1944 = vmatpush1.msra.mxu0 %v1877
        %1945 = vmatprep.subr.mxu0 0.0
        %1946 = vmatpush1.msra.mxu0 %v1878
        %1947 = vmatprep.subr.mxu0 0.0
        %1948 = vmatpush1.msra.mxu0 %v1879
        %1949 = vmatprep.subr.mxu0 0.0
        %1950 = vmatpush1.msra.mxu0 %v1880
        %1951 = vmatprep.subr.mxu0 0.0
        %1952 = vmatpush1.msra.mxu0 %v1881
        %1953 = vmatprep.subr.mxu0 0.0
        %1954 = vmatpush1.msra.mxu0 %v1882
        %1955 = vmatprep.subr.mxu0 0.0
        %1956 = vmatpush1.msra.mxu0 %v1883
        %1957 = vmatprep.subr.mxu0 0.0
        %1958 = vmatpush1.msra.mxu0 %v1884
        %1959 = vmatprep.subr.mxu0 0.0
        %1960 = vmatpush1.msra.mxu0 %v1885
        %1961 = vmatprep.subr.mxu0 0.0
        %1962 = vmatpush1.msra.mxu0 %v1886
        %1963 = vmatprep.subr.mxu0 0.0
        %1964 = vmatpush1.msra.mxu0 %v1887
        %1965 = vmatprep.subr.mxu0 0.0
        %1966 = vmatpush1.msra.mxu0 %v1888
        %1967 = vmatprep.subr.mxu0 0.0
        %1968 = vmatpush1.msra.mxu0 %v1889
        %1969 = vmatprep.subr.mxu0 0.0
        %1970 = vmatpush1.msra.mxu0 %v1890
        %1971 = vmatprep.mubr.f32.mxu0 %v1763
        %1972 = vmatmul.mubr.f32.gmra.mrb[0].mxu0 %v1762
        %v1973 = vpop.f32.mrb[0].mxu0
        %v1974 = vadd.f32 0.0, %v1973
        %v1975 = vpop.f32.mrb[0].mxu0
        %1976 = vmatprep.mubr.f32.mxu0 %v1766
        %1977 = vmatmul.mubr.f32.gmra.mrb[0].mxu0 %v1765
        %v1978 = vpop.f32.mrb[0].mxu0
        %v1979 = vadd.f32 0.0, %v1978
        %v1980 = vpop.f32.mrb[0].mxu0
        %1981 = vmatprep.mubr.f32.mxu0 %v1769
        %1982 = vmatmul.mubr.f32.gmra.mrb[0].mxu0 %v1768
        %v1983 = vpop.f32.mrb[0].mxu0
        %v1984 = vadd.f32 0.0, %v1983
        %v1985 = vpop.f32.mrb[0].mxu0
        %1986 = vmatprep.mubr.f32.mxu0 %v1772
        %1987 = vmatmul.mubr.f32.gmra.mrb[0].mxu0 %v1771
        %v1988 = vpop.f32.mrb[0].mxu0
        %v1989 = vadd.f32 0.0, %v1988
        %v1990 = vpop.f32.mrb[0].mxu0
        %1991 = vmatprep.mubr.f32.mxu0 %v1775
        %1992 = vmatmul.mubr.f32.gmra.mrb[0].mxu0 %v1774
        %v1993 = vpop.f32.mrb[0].mxu0
        %v1994 = vadd.f32 0.0, %v1993
        %v1995 = vpop.f32.mrb[0].mxu0
        %1996 = vmatprep.mubr.f32.mxu0 %v1778
        %1997 = vmatmul.mubr.f32.gmra.mrb[0].mxu0 %v1777
        %v1998 = vpop.f32.mrb[0].mxu0
        %v1999 = vadd.f32 0.0, %v1998
        %v2000 = vpop.f32.mrb[0].mxu0
        %2001 = vmatprep.mubr.f32.mxu0 %v1781
        %2002 = vmatmul.mubr.f32.gmra.mrb[0].mxu0 %v1780
        %v2003 = vpop.f32.mrb[0].mxu0
        %v2004 = vadd.f32 0.0, %v2003
        %v2005 = vpop.f32.mrb[0].mxu0
        %2006 = vmatprep.mubr.f32.mxu0 %v1784
        %2007 = vmatmul.mubr.f32.gmra.mrb[0].mxu0 %v1783
        %v2008 = vpop.f32.mrb[0].mxu0
        %v2009 = vadd.f32 0.0, %v2008
        %v2010 = vpop.f32.mrb[0].mxu0
        %2011 = vmatprep.mubr.f32.mxu0 %v1787
        %2012 = vmatmul.mubr.f32.gmra.mrb[0].mxu0 %v1786
        %v2013 = vpop.f32.mrb[0].mxu0
        %v2014 = vadd.f32 0.0, %v2013
        %v2015 = vpop.f32.mrb[0].mxu0
        %2016 = vmatprep.mubr.f32.mxu0 %v1790
        %2017 = vmatmul.mubr.f32.gmra.mrb[0].mxu0 %v1789
        %v2018 = vpop.f32.mrb[0].mxu0
        %v2019 = vadd.f32 0.0, %v2018
        %v2020 = vpop.f32.mrb[0].mxu0
        %2021 = vmatprep.mubr.f32.mxu0 %v1793
        %2022 = vmatmul.mubr.f32.gmra.mrb[0].mxu0 %v1792
        %v2023 = vpop.f32.mrb[0].mxu0
        %v2024 = vadd.f32 0.0, %v2023
        %v2025 = vpop.f32.mrb[0].mxu0
        %2026 = vmatprep.mubr.f32.mxu0 %v1796
        %2027 = vmatmul.mubr.f32.gmra.mrb[0].mxu0 %v1795
        %v2028 = vpop.f32.mrb[0].mxu0
        %v2029 = vadd.f32 0.0, %v2028
        %v2030 = vpop.f32.mrb[0].mxu0
        %2031 = vmatprep.mubr.f32.mxu0 %v1799
        %2032 = vmatmul.mubr.f32.gmra.mrb[0].mxu0 %v1798
        %v2033 = vpop.f32.mrb[0].mxu0
        %v2034 = vadd.f32 0.0, %v2033
        %v2035 = vpop.f32.mrb[0].mxu0
        %2036 = vmatprep.mubr.f32.mxu0 %v1802
        %2037 = vmatmul.mubr.f32.gmra.mrb[0].mxu0 %v1801
        %v2038 = vpop.f32.mrb[0].mxu0
        %v2039 = vadd.f32 0.0, %v2038
        %v2040 = vpop.f32.mrb[0].mxu0
        %2041 = vmatprep.mubr.f32.mxu0 %v1805
        %2042 = vmatmul.mubr.f32.gmra.mrb[0].mxu0 %v1804
        %v2043 = vpop.f32.mrb[0].mxu0
        %v2044 = vadd.f32 0.0, %v2043
        %v2045 = vpop.f32.mrb[0].mxu0
        %2046 = vmatprep.mubr.f32.mxu0 %v1808
        %2047 = vmatmul.mubr.f32.gmra.mrb[0].mxu0 %v1807
        %v2048 = vpop.f32.mrb[0].mxu0
        %v2049 = vadd.f32 0.0, %v2048
        %v2050 = vpop.f32.mrb[0].mxu0
        %2051 = vmatprep.mubr.f32.mxu0 %v1811
        %2052 = vmatmul.mubr.f32.gmra.mrb[0].mxu0 %v1810
        %v2053 = vpop.f32.mrb[0].mxu0
        %v2054 = vadd.f32 0.0, %v2053
        %v2055 = vpop.f32.mrb[0].mxu0
        %2056 = vmatprep.mubr.f32.mxu0 %v1814
        %2057 = vmatmul.mubr.f32.gmra.mrb[0].mxu0 %v1813
        %v2058 = vpop.f32.mrb[0].mxu0
        %v2059 = vadd.f32 0.0, %v2058
        %v2060 = vpop.f32.mrb[0].mxu0
        %2061 = vmatprep.mubr.f32.mxu0 %v1817
        %2062 = vmatmul.mubr.f32.gmra.mrb[0].mxu0 %v1816
        %v2063 = vpop.f32.mrb[0].mxu0
        %v2064 = vadd.f32 0.0, %v2063
        %v2065 = vpop.f32.mrb[0].mxu0
        %2066 = vmatprep.mubr.f32.mxu0 %v1820
        %2067 = vmatmul.mubr.f32.gmra.mrb[0].mxu0 %v1819
        %v2068 = vpop.f32.mrb[0].mxu0
        %v2069 = vadd.f32 0.0, %v2068
        %v2070 = vpop.f32.mrb[0].mxu0
        %2071 = vmatprep.mubr.f32.mxu0 %v1823
        %2072 = vmatmul.mubr.f32.gmra.mrb[0].mxu0 %v1822
        %v2073 = vpop.f32.mrb[0].mxu0
        %v2074 = vadd.f32 0.0, %v2073
        %v2075 = vpop.f32.mrb[0].mxu0
        %2076 = vmatprep.mubr.f32.mxu0 %v1826
        %2077 = vmatmul.mubr.f32.gmra.mrb[0].mxu0 %v1825
        %v2078 = vpop.f32.mrb[0].mxu0
        %v2079 = vadd.f32 0.0, %v2078
        %v2080 = vpop.f32.mrb[0].mxu0
        %2081 = vmatprep.mubr.f32.mxu0 %v1829
        %2082 = vmatmul.mubr.f32.gmra.mrb[0].mxu0 %v1828
        %v2083 = vpop.f32.mrb[0].mxu0
        %v2084 = vadd.f32 0.0, %v2083
        %v2085 = vpop.f32.mrb[0].mxu0
        %2086 = vmatprep.mubr.f32.mxu0 %v1832
        %2087 = vmatmul.mubr.f32.gmra.mrb[0].mxu0 %v1831
        %v2088 = vpop.f32.mrb[0].mxu0
        %v2089 = vadd.f32 0.0, %v2088
        %v2090 = vpop.f32.mrb[0].mxu0
        %2091 = vmatprep.mubr.f32.mxu0 %v1835
        %2092 = vmatmul.mubr.f32.gmra.mrb[0].mxu0 %v1834
        %v2093 = vpop.f32.mrb[0].mxu0
        %v2094 = vadd.f32 0.0, %v2093
        %v2095 = vpop.f32.mrb[0].mxu0
        %2096 = vmatprep.mubr.f32.mxu0 %v1838
        %2097 = vmatmul.mubr.f32.gmra.mrb[0].mxu0 %v1837
        %v2098 = vpop.f32.mrb[0].mxu0
        %v2099 = vadd.f32 0.0, %v2098
        %v2100 = vpop.f32.mrb[0].mxu0
        %2101 = vmatprep.mubr.f32.mxu0 %v1841
        %2102 = vmatmul.mubr.f32.gmra.mrb[0].mxu0 %v1840
        %v2103 = vpop.f32.mrb[0].mxu0
        %v2104 = vadd.f32 0.0, %v2103
        %v2105 = vpop.f32.mrb[0].mxu0
        %2106 = vmatprep.mubr.f32.mxu0 %v1844
        %2107 = vmatmul.mubr.f32.gmra.mrb[0].mxu0 %v1843
        %v2108 = vpop.f32.mrb[0].mxu0
        %v2109 = vadd.f32 0.0, %v2108
        %v2110 = vpop.f32.mrb[0].mxu0
        %2111 = vmatprep.mubr.f32.mxu0 %v1847
        %2112 = vmatmul.mubr.f32.gmra.mrb[0].mxu0 %v1846
        %v2113 = vpop.f32.mrb[0].mxu0
        %v2114 = vadd.f32 0.0, %v2113
        %v2115 = vpop.f32.mrb[0].mxu0
        %2116 = vmatprep.mubr.f32.mxu0 %v1850
        %2117 = vmatmul.mubr.f32.gmra.mrb[0].mxu0 %v1849
        %v2118 = vpop.f32.mrb[0].mxu0
        %v2119 = vadd.f32 0.0, %v2118
        %v2120 = vpop.f32.mrb[0].mxu0
        %2121 = vmatprep.mubr.f32.mxu0 %v1853
        %2122 = vmatmul.mubr.f32.gmra.mrb[0].mxu0 %v1852
        %v2123 = vpop.f32.mrb[0].mxu0
        %v2124 = vadd.f32 0.0, %v2123
        %v2125 = vpop.f32.mrb[0].mxu0
        %2126 = vmatprep.mubr.f32.mxu0 %v1856
        %2127 = vmatmul.mubr.f32.gmra.mrb[0].mxu0 %v1855
        %v2128 = vpop.f32.mrb[0].mxu0
        %v2129 = vadd.f32 0.0, %v2128
        %v2130 = vpop.f32.mrb[0].mxu0
        %2131 = vdwg.mxu0
        %2132 = vmatprep.subr.mxu0 0.0
        %2133 = vmatpush1.msra.mxu0 %v1891
        %2134 = vmatprep.subr.mxu0 0.0
        %2135 = vmatpush1.msra.mxu0 %v1892
        %2136 = vmatprep.subr.mxu0 0.0
        %2137 = vmatpush1.msra.mxu0 %v1893
        %2138 = vmatprep.subr.mxu0 0.0
        %2139 = vmatpush1.msra.mxu0 %v1894
        %2140 = vmatprep.subr.mxu0 0.0
        %2141 = vmatpush1.msra.mxu0 %v1895
        %2142 = vmatprep.subr.mxu0 0.0
        %2143 = vmatpush1.msra.mxu0 %v1896
        %2144 = vmatprep.subr.mxu0 0.0
        %2145 = vmatpush1.msra.mxu0 %v1897
        %2146 = vmatprep.subr.mxu0 0.0
        %2147 = vmatpush1.msra.mxu0 %v1898
        %2148 = vmatprep.subr.mxu0 0.0
        %2149 = vmatpush1.msra.mxu0 %v1899
        %2150 = vmatprep.subr.mxu0 0.0
        %2151 = vmatpush1.msra.mxu0 %v1900
        %2152 = vmatprep.subr.mxu0 0.0
        %2153 = vmatpush1.msra.mxu0 %v1901
        %2154 = vmatprep.subr.mxu0 0.0
        %2155 = vmatpush1.msra.mxu0 %v1902
        %2156 = vmatprep.subr.mxu0 0.0
        %2157 = vmatpush1.msra.mxu0 %v1903
        %2158 = vmatprep.subr.mxu0 0.0
        %2159 = vmatpush1.msra.mxu0 %v1904
        %2160 = vmatprep.subr.mxu0 0.0
        %2161 = vmatpush1.msra.mxu0 %v1905
        %2162 = vmatprep.subr.mxu0 0.0
        %2163 = vmatpush1.msra.mxu0 %v1906
        %2164 = vmatprep.subr.mxu0 0.0
        %2165 = vmatpush1.msra.mxu0 0.0
        %2166 = vmatprep.subr.mxu0 0.0
        %2167 = vmatpush1.msra.mxu0 0.0
        %2168 = vmatprep.subr.mxu0 0.0
        %2169 = vmatpush1.msra.mxu0 0.0
        %2170 = vmatprep.subr.mxu0 0.0
        %2171 = vmatpush1.msra.mxu0 0.0
        %2172 = vmatprep.subr.mxu0 0.0
        %2173 = vmatpush1.msra.mxu0 0.0
        %2174 = vmatprep.subr.mxu0 0.0
        %2175 = vmatpush1.msra.mxu0 0.0
        %2176 = vmatprep.subr.mxu0 0.0
        %2177 = vmatpush1.msra.mxu0 0.0
        %2178 = vmatprep.subr.mxu0 0.0
        %2179 = vmatpush1.msra.mxu0 0.0
        %2180 = vmatprep.subr.mxu0 0.0
        %2181 = vmatpush1.msra.mxu0 0.0
        %2182 = vmatprep.subr.mxu0 0.0
        %2183 = vmatpush1.msra.mxu0 0.0
        %2184 = vmatprep.subr.mxu0 0.0
        %2185 = vmatpush1.msra.mxu0 0.0
        %2186 = vmatprep.subr.mxu0 0.0
        %2187 = vmatpush1.msra.mxu0 0.0
        %2188 = vmatprep.subr.mxu0 0.0
        %2189 = vmatpush1.msra.mxu0 0.0
        %2190 = vmatprep.subr.mxu0 0.0
        %2191 = vmatpush1.msra.mxu0 0.0
        %2192 = vmatprep.subr.mxu0 0.0
        %2193 = vmatpush1.msra.mxu0 0.0
        %2194 = vmatprep.subr.mxu0 0.0
        %2195 = vmatpush1.msra.mxu0 0.0
        %2196 = vmatprep.mubr.f32.mxu0 0.0
        %2197 = vmatmul.mubr.f32.gmra.mrb[0].mxu0 %v1764
        %v2198 = vpop.f32.mrb[0].mxu0
        %v2199 = vadd.f32 %v1974, %v2198
        %v2200 = vpop.f32.mrb[0].mxu0
        %2201 = vmatprep.mubr.f32.mxu0 0.0
        %2202 = vmatmul.mubr.f32.gmra.mrb[0].mxu0 %v1767
        %v2203 = vpop.f32.mrb[0].mxu0
        %v2204 = vadd.f32 %v1979, %v2203
        %v2205 = vpop.f32.mrb[0].mxu0
        %2206 = vmatprep.mubr.f32.mxu0 0.0
        %2207 = vmatmul.mubr.f32.gmra.mrb[0].mxu0 %v1770
        %v2208 = vpop.f32.mrb[0].mxu0
        %v2209 = vadd.f32 %v1984, %v2208
        %v2210 = vpop.f32.mrb[0].mxu0
        %2211 = vmatprep.mubr.f32.mxu0 0.0
        %2212 = vmatmul.mubr.f32.gmra.mrb[0].mxu0 %v1773
        %v2213 = vpop.f32.mrb[0].mxu0
        %v2214 = vadd.f32 %v1989, %v2213
        %v2215 = vpop.f32.mrb[0].mxu0
        %2216 = vmatprep.mubr.f32.mxu0 0.0
        %2217 = vmatmul.mubr.f32.gmra.mrb[0].mxu0 %v1776
        %v2218 = vpop.f32.mrb[0].mxu0
        %v2219 = vadd.f32 %v1994, %v2218
        %v2220 = vpop.f32.mrb[0].mxu0
        %2221 = vmatprep.mubr.f32.mxu0 0.0
        %2222 = vmatmul.mubr.f32.gmra.mrb[0].mxu0 %v1779
        %v2223 = vpop.f32.mrb[0].mxu0
        %v2224 = vadd.f32 %v1999, %v2223
        %v2225 = vpop.f32.mrb[0].mxu0
        %2226 = vmatprep.mubr.f32.mxu0 0.0
        %2227 = vmatmul.mubr.f32.gmra.mrb[0].mxu0 %v1782
        %v2228 = vpop.f32.mrb[0].mxu0
        %v2229 = vadd.f32 %v2004, %v2228
        %v2230 = vpop.f32.mrb[0].mxu0
        %2231 = vmatprep.mubr.f32.mxu0 0.0
        %2232 = vmatmul.mubr.f32.gmra.mrb[0].mxu0 %v1785
        %v2233 = vpop.f32.mrb[0].mxu0
        %v2234 = vadd.f32 %v2009, %v2233
        %v2235 = vpop.f32.mrb[0].mxu0
        %2236 = vmatprep.mubr.f32.mxu0 0.0
        %2237 = vmatmul.mubr.f32.gmra.mrb[0].mxu0 %v1788
        %v2238 = vpop.f32.mrb[0].mxu0
        %v2239 = vadd.f32 %v2014, %v2238
        %v2240 = vpop.f32.mrb[0].mxu0
        %2241 = vmatprep.mubr.f32.mxu0 0.0
        %2242 = vmatmul.mubr.f32.gmra.mrb[0].mxu0 %v1791
        %v2243 = vpop.f32.mrb[0].mxu0
        %v2244 = vadd.f32 %v2019, %v2243
        %v2245 = vpop.f32.mrb[0].mxu0
        %2246 = vmatprep.mubr.f32.mxu0 0.0
        %2247 = vmatmul.mubr.f32.gmra.mrb[0].mxu0 %v1794
        %v2248 = vpop.f32.mrb[0].mxu0
        %v2249 = vadd.f32 %v2024, %v2248
        %v2250 = vpop.f32.mrb[0].mxu0
        %2251 = vmatprep.mubr.f32.mxu0 0.0
        %2252 = vmatmul.mubr.f32.gmra.mrb[0].mxu0 %v1797
        %v2253 = vpop.f32.mrb[0].mxu0
        %v2254 = vadd.f32 %v2029, %v2253
        %v2255 = vpop.f32.mrb[0].mxu0
        %2256 = vmatprep.mubr.f32.mxu0 0.0
        %2257 = vmatmul.mubr.f32.gmra.mrb[0].mxu0 %v1800
        %v2258 = vpop.f32.mrb[0].mxu0
        %v2259 = vadd.f32 %v2034, %v2258
        %v2260 = vpop.f32.mrb[0].mxu0
        %2261 = vmatprep.mubr.f32.mxu0 0.0
        %2262 = vmatmul.mubr.f32.gmra.mrb[0].mxu0 %v1803
        %v2263 = vpop.f32.mrb[0].mxu0
        %v2264 = vadd.f32 %v2039, %v2263
        %v2265 = vpop.f32.mrb[0].mxu0
        %2266 = vmatprep.mubr.f32.mxu0 0.0
        %2267 = vmatmul.mubr.f32.gmra.mrb[0].mxu0 %v1806
        %v2268 = vpop.f32.mrb[0].mxu0
        %v2269 = vadd.f32 %v2044, %v2268
        %v2270 = vpop.f32.mrb[0].mxu0
        %2271 = vmatprep.mubr.f32.mxu0 0.0
        %2272 = vmatmul.mubr.f32.gmra.mrb[0].mxu0 %v1809
        %v2273 = vpop.f32.mrb[0].mxu0
        %v2274 = vadd.f32 %v2049, %v2273
        %v2275 = vpop.f32.mrb[0].mxu0
        %2276 = vmatprep.mubr.f32.mxu0 0.0
        %2277 = vmatmul.mubr.f32.gmra.mrb[0].mxu0 %v1812
        %v2278 = vpop.f32.mrb[0].mxu0
        %v2279 = vadd.f32 %v2054, %v2278
        %v2280 = vpop.f32.mrb[0].mxu0
        %2281 = vmatprep.mubr.f32.mxu0 0.0
        %2282 = vmatmul.mubr.f32.gmra.mrb[0].mxu0 %v1815
        %v2283 = vpop.f32.mrb[0].mxu0
        %v2284 = vadd.f32 %v2059, %v2283
        %v2285 = vpop.f32.mrb[0].mxu0
        %2286 = vmatprep.mubr.f32.mxu0 0.0
        %2287 = vmatmul.mubr.f32.gmra.mrb[0].mxu0 %v1818
        %v2288 = vpop.f32.mrb[0].mxu0
        %v2289 = vadd.f32 %v2064, %v2288
        %v2290 = vpop.f32.mrb[0].mxu0
        %2291 = vmatprep.mubr.f32.mxu0 0.0
        %2292 = vmatmul.mubr.f32.gmra.mrb[0].mxu0 %v1821
        %v2293 = vpop.f32.mrb[0].mxu0
        %v2294 = vadd.f32 %v2069, %v2293
        %v2295 = vpop.f32.mrb[0].mxu0
        %2296 = vmatprep.mubr.f32.mxu0 0.0
        %2297 = vmatmul.mubr.f32.gmra.mrb[0].mxu0 %v1824
        %v2298 = vpop.f32.mrb[0].mxu0
        %v2299 = vadd.f32 %v2074, %v2298
        %v2300 = vpop.f32.mrb[0].mxu0
        %2301 = vmatprep.mubr.f32.mxu0 0.0
        %2302 = vmatmul.mubr.f32.gmra.mrb[0].mxu0 %v1827
        %v2303 = vpop.f32.mrb[0].mxu0
        %v2304 = vadd.f32 %v2079, %v2303
        %v2305 = vpop.f32.mrb[0].mxu0
        %2306 = vmatprep.mubr.f32.mxu0 0.0
        %2307 = vmatmul.mubr.f32.gmra.mrb[0].mxu0 %v1830
        %v2308 = vpop.f32.mrb[0].mxu0
        %v2309 = vadd.f32 %v2084, %v2308
        %v2310 = vpop.f32.mrb[0].mxu0
        %2311 = vmatprep.mubr.f32.mxu0 0.0
        %2312 = vmatmul.mubr.f32.gmra.mrb[0].mxu0 %v1833
        %v2313 = vpop.f32.mrb[0].mxu0
        %v2314 = vadd.f32 %v2089, %v2313
        %v2315 = vpop.f32.mrb[0].mxu0
        %2316 = vmatprep.mubr.f32.mxu0 0.0
        %2317 = vmatmul.mubr.f32.gmra.mrb[0].mxu0 %v1836
        %v2318 = vpop.f32.mrb[0].mxu0
        %v2319 = vadd.f32 %v2094, %v2318
        %v2320 = vpop.f32.mrb[0].mxu0
        %2321 = vmatprep.mubr.f32.mxu0 0.0
        %2322 = vmatmul.mubr.f32.gmra.mrb[0].mxu0 %v1839
        %v2323 = vpop.f32.mrb[0].mxu0
        %v2324 = vadd.f32 %v2099, %v2323
        %v2325 = vpop.f32.mrb[0].mxu0
        %2326 = vmatprep.mubr.f32.mxu0 0.0
        %2327 = vmatmul.mubr.f32.gmra.mrb[0].mxu0 %v1842
        %v2328 = vpop.f32.mrb[0].mxu0
        %v2329 = vadd.f32 %v2104, %v2328
        %v2330 = vpop.f32.mrb[0].mxu0
        %2331 = vmatprep.mubr.f32.mxu0 0.0
        %2332 = vmatmul.mubr.f32.gmra.mrb[0].mxu0 %v1845
        %v2333 = vpop.f32.mrb[0].mxu0
        %v2334 = vadd.f32 %v2109, %v2333
        %v2335 = vpop.f32.mrb[0].mxu0
        %2336 = vmatprep.mubr.f32.mxu0 0.0
        %2337 = vmatmul.mubr.f32.gmra.mrb[0].mxu0 %v1848
        %v2338 = vpop.f32.mrb[0].mxu0
        %v2339 = vadd.f32 %v2114, %v2338
        %v2340 = vpop.f32.mrb[0].mxu0
        %2341 = vmatprep.mubr.f32.mxu0 0.0
        %2342 = vmatmul.mubr.f32.gmra.mrb[0].mxu0 %v1851
        %v2343 = vpop.f32.mrb[0].mxu0
        %v2344 = vadd.f32 %v2119, %v2343
        %v2345 = vpop.f32.mrb[0].mxu0
        %2346 = vmatprep.mubr.f32.mxu0 0.0
        %2347 = vmatmul.mubr.f32.gmra.mrb[0].mxu0 %v1854
        %v2348 = vpop.f32.mrb[0].mxu0
        %v2349 = vadd.f32 %v2124, %v2348
        %v2350 = vpop.f32.mrb[0].mxu0
        %2351 = vmatprep.mubr.f32.mxu0 0.0
        %2352 = vmatmul.mubr.f32.gmra.mrb[0].mxu0 %v1857
        %v2353 = vpop.f32.mrb[0].mxu0
        %v2354 = vadd.f32 %v2129, %v2353
        %v2355 = vpop.f32.mrb[0].mxu0
        %2356 = vdwg.mxu0
        %v2357 = vadd.f32 %v1603, %v2199
        %v2358 = vadd.f32 %v1608, %v2204
        %v2359 = vadd.f32 %v1613, %v2209
        %v2360 = vadd.f32 %v1618, %v2214
        %v2361 = vadd.f32 %v1623, %v2219
        %v2362 = vadd.f32 %v1628, %v2224
        %v2363 = vadd.f32 %v1633, %v2229
        %v2364 = vadd.f32 %v1638, %v2234
        %v2365 = vadd.f32 %v1643, %v2239
        %v2366 = vadd.f32 %v1648, %v2244
        %v2367 = vadd.f32 %v1653, %v2249
        %v2368 = vadd.f32 %v1658, %v2254
        %v2369 = vadd.f32 %v1663, %v2259
        %v2370 = vadd.f32 %v1668, %v2264
        %v2371 = vadd.f32 %v1673, %v2269
        %v2372 = vadd.f32 %v1678, %v2274
        %v2373 = vadd.f32 %v1683, %v2279
        %v2374 = vadd.f32 %v1688, %v2284
        %v2375 = vadd.f32 %v1693, %v2289
        %v2376 = vadd.f32 %v1698, %v2294
        %v2377 = vadd.f32 %v1703, %v2299
        %v2378 = vadd.f32 %v1708, %v2304
        %v2379 = vadd.f32 %v1713, %v2309
        %v2380 = vadd.f32 %v1718, %v2314
        %v2381 = vadd.f32 %v1723, %v2319
        %v2382 = vadd.f32 %v1728, %v2324
        %v2383 = vadd.f32 %v1733, %v2329
        %v2384 = vadd.f32 %v1738, %v2334
        %v2385 = vadd.f32 %v1743, %v2339
        %v2386 = vadd.f32 %v1748, %v2344
        %v2387 = vadd.f32 %v1753, %v2349
        %v2388 = vadd.f32 %v1758, %v2354
        %v2389 = vld [vmem:[#allocation9] sm:$0x1]
        %v2391 = vlaneseq
        %v2392 = vshrl.u32 %v2391, 7
        %v2393 = vsub.s32 0, %v2392
        %v2394 = vrot.slane %v2389, %v2393
        %v2396 = vadd.f32 %v2357, %v2394
        %v2397 = vadd.f32 %v2358, %v2394
        %v2398 = vadd.f32 %v2359, %v2394
        %v2399 = vadd.f32 %v2360, %v2394
        %v2400 = vadd.f32 %v2361, %v2394
        %v2401 = vadd.f32 %v2362, %v2394
        %v2402 = vadd.f32 %v2363, %v2394
        %v2403 = vadd.f32 %v2364, %v2394
        %v2404 = vadd.f32 %v2365, %v2394
        %v2405 = vadd.f32 %v2366, %v2394
        %v2406 = vadd.f32 %v2367, %v2394
        %v2407 = vadd.f32 %v2368, %v2394
        %v2408 = vadd.f32 %v2369, %v2394
        %v2409 = vadd.f32 %v2370, %v2394
        %v2410 = vadd.f32 %v2371, %v2394
        %v2411 = vadd.f32 %v2372, %v2394
        %v2412 = vadd.f32 %v2373, %v2394
        %v2413 = vadd.f32 %v2374, %v2394
        %v2414 = vadd.f32 %v2375, %v2394
        %v2415 = vadd.f32 %v2376, %v2394
        %v2416 = vadd.f32 %v2377, %v2394
        %v2417 = vadd.f32 %v2378, %v2394
        %v2418 = vadd.f32 %v2379, %v2394
        %v2419 = vadd.f32 %v2380, %v2394
        %v2420 = vadd.f32 %v2381, %v2394
        %v2421 = vadd.f32 %v2382, %v2394
        %v2422 = vadd.f32 %v2383, %v2394
        %v2423 = vadd.f32 %v2384, %v2394
        %v2424 = vadd.f32 %v2385, %v2394
        %v2425 = vadd.f32 %v2386, %v2394
        %v2426 = vadd.f32 %v2387, %v2394
        %v2427 = vadd.f32 %v2388, %v2394
        %v2428 = vmax.f32 %v2396, 0.0
        %v2429 = vmax.f32 %v2397, 0.0
        %v2430 = vmax.f32 %v2398, 0.0
        %v2431 = vmax.f32 %v2399, 0.0
        %v2432 = vmax.f32 %v2400, 0.0
        %v2433 = vmax.f32 %v2401, 0.0
        %v2434 = vmax.f32 %v2402, 0.0
        %v2435 = vmax.f32 %v2403, 0.0
        %v2436 = vmax.f32 %v2404, 0.0
        %v2437 = vmax.f32 %v2405, 0.0
        %v2438 = vmax.f32 %v2406, 0.0
        %v2439 = vmax.f32 %v2407, 0.0
        %v2440 = vmax.f32 %v2408, 0.0
        %v2441 = vmax.f32 %v2409, 0.0
        %v2442 = vmax.f32 %v2410, 0.0
        %v2443 = vmax.f32 %v2411, 0.0
        %v2444 = vmax.f32 %v2412, 0.0
        %v2445 = vmax.f32 %v2413, 0.0
        %v2446 = vmax.f32 %v2414, 0.0
        %v2447 = vmax.f32 %v2415, 0.0
        %v2448 = vmax.f32 %v2416, 0.0
        %v2449 = vmax.f32 %v2417, 0.0
        %v2450 = vmax.f32 %v2418, 0.0
        %v2451 = vmax.f32 %v2419, 0.0
        %v2452 = vmax.f32 %v2420, 0.0
        %v2453 = vmax.f32 %v2421, 0.0
        %v2454 = vmax.f32 %v2422, 0.0
        %v2455 = vmax.f32 %v2423, 0.0
        %v2456 = vmax.f32 %v2424, 0.0
        %v2457 = vmax.f32 %v2425, 0.0
        %v2458 = vmax.f32 %v2426, 0.0
        %v2459 = vmax.f32 %v2427, 0.0
        %2460 = vst [vmem:[%s343] sm:$0xff] %v2428
        %2461 = vst [vmem:[%s343 + $0x8] sm:$0xff] %v2429
        %2462 = vst [vmem:[%s343 + $0x10] sm:$0xff] %v2430
        %2463 = vst [vmem:[%s343 + $0x18] sm:$0xff] %v2431
        %2464 = vst [vmem:[%s343 + $0x20] sm:$0xff] %v2432
        %2465 = vst [vmem:[%s343 + $0x28] sm:$0xff] %v2433
        %2466 = vst [vmem:[%s343 + $0x30] sm:$0xff] %v2434
        %2467 = vst [vmem:[%s343 + $0x38] sm:$0xff] %v2435
        %2468 = vst [vmem:[%s343 + $0x40] sm:$0xff] %v2436
        %2469 = vst [vmem:[%s343 + $0x48] sm:$0xff] %v2437
        %2470 = vst [vmem:[%s343 + $0x50] sm:$0xff] %v2438
        %2471 = vst [vmem:[%s343 + $0x58] sm:$0xff] %v2439
        %2472 = vst [vmem:[%s343 + $0x60] sm:$0xff] %v2440
        %2473 = vst [vmem:[%s343 + $0x68] sm:$0xff] %v2441
        %2474 = vst [vmem:[%s343 + $0x70] sm:$0xff] %v2442
        %2475 = vst [vmem:[%s343 + $0x78] sm:$0xff] %v2443
        %2476 = vst [vmem:[%s343 + $0x80] sm:$0xff] %v2444
        %2477 = vst [vmem:[%s343 + $0x88] sm:$0xff] %v2445
        %2478 = vst [vmem:[%s343 + $0x90] sm:$0xff] %v2446
        %2479 = vst [vmem:[%s343 + $0x98] sm:$0xff] %v2447
        %2480 = vst [vmem:[%s343 + $0xa0] sm:$0xff] %v2448
        %2481 = vst [vmem:[%s343 + $0xa8] sm:$0xff] %v2449
        %2482 = vst [vmem:[%s343 + $0xb0] sm:$0xff] %v2450
        %2483 = vst [vmem:[%s343 + $0xb8] sm:$0xff] %v2451
        %2484 = vst [vmem:[%s343 + $0xc0] sm:$0xff] %v2452
        %2485 = vst [vmem:[%s343 + $0xc8] sm:$0xff] %v2453
        %2486 = vst [vmem:[%s343 + $0xd0] sm:$0xff] %v2454
        %2487 = vst [vmem:[%s343 + $0xd8] sm:$0xff] %v2455
        %2488 = vst [vmem:[%s343 + $0xe0] sm:$0xff] %v2456
        %2489 = vst [vmem:[%s343 + $0xe8] sm:$0xff] %v2457
        %2490 = vst [vmem:[%s343 + $0xf0] sm:$0xff] %v2458
        %2491 = vst [vmem:[%s343 + $0xf8] sm:$0xff] %v2459
        %s2492 = sand.u32 %s168, 1
        %s2493 = scalar_lea.sflag [#allocation5], %s2492
        %s2494 = sand.u32 %s168, 1
        %s2495 = smul.addr %s2494, 256
        %s2496 = scalar_lea.vmem [#allocation11], %s2495
        // Predicated region
        $region53: #{repvgg_block_pallas_nhwc.1} parent=35 // pred_check
          %p2497 = pneg %p178
        $region54: #{repvgg_block_pallas_nhwc.1} parent=35 // pred_check_branch
          %2499 = sbr.rel (%p2497) target = $region56
        $region55: #{repvgg_block_pallas_nhwc.1} parent=35 // pred_region
          %s2500 = smul.u32 16, %s32
          %s2502 = ssub.s32 4096, 4096
          %2503 = vsyncadd %s2493, %s2502
          %s2504 = smul.addr %s2500, 2
          %s2505 = sadd.s32 %s30, %s2504
          %s2506 = smul.addr %s31, 32
          %s2507 = sadd.s32 %s2505, %s2506
          %s2508 = smul.addr %s2507, 128
          %s2509 = scalar_lea.hbm %s4, %s2508
          %s2510 = sshll.u32 %s2496, 4
          %s2511 = int_to_ptr.vmem [resolvable:$true] %s2510
          %2516 = dma.vmem_to_hbm [thread:$0]  %s2511, 4096, %s2509, %s2493, 128, 128, 8
        $region56: #{repvgg_block_pallas_nhwc.1} parent=35 // pred_fallthru
          _
      $region36: #{repvgg_block_pallas_nhwc.1} parent=5 // pred_fallthru
        _
      %p2517 = scmp.le.s32.totalorder 2, %s20
      // Predicated region
      $region57: #{repvgg_block_pallas_nhwc.1} parent=5 // pred_check
        %p2518 = pneg %p2517
      $region58: #{repvgg_block_pallas_nhwc.1} parent=5 // pred_check_branch
        %2520 = sbr.rel (%p2518) target = $region60
      $region59: #{repvgg_block_pallas_nhwc.1} parent=5 // pred_region
        %s2521 = ssub.s32 %s20, 2
        // Predicated region
        $region61: #{repvgg_block_pallas_nhwc.1} parent=59 // pred_check
          %p2522 = pneg %p184
        $region62: #{repvgg_block_pallas_nhwc.1} parent=59 // pred_check_branch
          %2524 = sbr.rel (%p2522) target = $region64
        $region63: #{repvgg_block_pallas_nhwc.1} parent=59 // pred_region
          %s2525 = sand.u32 %s169, 1
          %s2526 = scalar_lea.sflag [#allocation5], %s2525
          %s2527 = sand.u32 %s169, 1
          %s2528 = smul.addr %s2527, 256
          %s2529 = scalar_lea.vmem [#allocation11], %s2528
          %2530 = dma.done %s2526, 4096
        $region64: #{repvgg_block_pallas_nhwc.1} parent=59 // pred_fallthru
          _
      $region60: #{repvgg_block_pallas_nhwc.1} parent=5 // pred_fallthru
        _
    $region6: #{repvgg_block_pallas_nhwc.1} parent=1 // loop_footer
      %s24 = sadd.s32 1, %s20
    $region7: #{repvgg_block_pallas_nhwc.1} parent=1 // loop_footer_branch
      %19 = sbr.rel target = $region3
    $region8: #{repvgg_block_pallas_nhwc.1} parent=1 // loop_exit
      _
    %2531 = vsyncpa [#allocation4], 1
    %s2532 = scalar_lea.sflag [#allocation4], 1
    %2533 = vsyncpa %s2532, 1
    %2534 = vsyncpa [#allocation7], 1
    %s2535 = scalar_lea.sflag [#allocation7], 1
    %2536 = vsyncpa %s2535, 1
    %2537 = vsyncpa [#allocation10], 1
    %2538 = vsyncpa [#allocation5], 1
    %s2539 = scalar_lea.sflag [#allocation5], 1
    %2540 = vsyncpa %s2539, 1

</llo_original>
